<compile_context>
chip_gen: v5e
topology: v5e:2x2
jax: 0.10.0
libtpu: 0.0.40
codegen_flags: <defaults>
</compile_context>

<pallas_src>
import functools

import jax
import jax.numpy as jnp
from jax.experimental import pallas as pl
from jax.experimental.pallas import tpu as pltpu


# --------------------------- fused forward kernel ----------------------------

def _fused_kernel(x_ref, *refs, T, Bp, H, D, L):
    """Whole BiLSTMPredictor forward in one kernel invocation.

    x_ref : (T*Bp, F)    time-major flat rows r = t*Bp + b (batch padded to Bp).
    refs  : [w_ih_0, b_0, w_hh_0, ..., w_ih_{L-1}, b_{L-1}, w_hh_{L-1},
             w1, b1, w2, b2,                       # MLP head
             out_ref,                              # (1, T*Bp)
             gx_sc, hf_sc, hb_sc]                  # VMEM scratch
      w_ih_l : (Cin_l, 8H)  [fwd 4H | bwd 4H] input weights (pre-transposed).
      b_l    : (1, 8H)      combined b_ih + b_hh, both directions.
      w_hh_l : (2H, 8H)     block-diagonal recurrent weights ([h_f|h_b] -> gates).
    """
    w_refs = refs[:3 * L]
    (w1_ref, b1_ref, w2_ref, b2_ref,
     out_ref, gx_sc, hf_sc, hb_sc) = refs[3 * L:]

    H4 = 4 * H
    unroll = True if T <= 16 else 8          # partial unroll for long sequences

    for layer in range(L):                   # static Python loop over layers
        w_ih_ref, b_ref, w_hh_ref = w_refs[3 * layer: 3 * layer + 3]

        # Hoisted input projection for ALL timesteps & both directions:
        # one (T*Bp, Cin) @ (Cin, 8H) matmul, off the serial critical path.
        if layer == 0:
            xin = x_ref[...]
        else:
            xin = jnp.concatenate([hf_sc[...], hb_sc[...]], axis=-1)  # (T*Bp, 2H)
        gx_sc[...] = (jnp.dot(xin, w_ih_ref[...],
                              preferred_element_type=jnp.float32) + b_ref[...])

        w_hh = w_hh_ref[...]                 # (2H, 8H), resident for the loop

        def step(s, carry):
            h, cf, cb = carry                # h: (Bp, 2H) = [h_f | h_b]
            # One MXU matmul feeds BOTH directions' recurrent gates.
            rec = jnp.dot(h, w_hh, preferred_element_type=jnp.float32)  # (Bp, 8H)

            rf = pl.multiple_of(s * Bp, Bp)              # forward row (time s)
            rb = pl.multiple_of((T - 1 - s) * Bp, Bp)    # backward row (time T-1-s)
            gf = gx_sc[pl.ds(rf, Bp), :][:, :H4]         # fwd input gates
            gb = gx_sc[pl.ds(rb, Bp), :][:, H4:]         # bwd input gates
            gates = jnp.concatenate([gf, gb], axis=-1) + rec            # (Bp, 8H)

            # 2 full-vector EUP passes instead of 8 sub-vreg passes.
            sig = jax.nn.sigmoid(gates)
            th = jnp.tanh(gates)

            # PyTorch gate order i, f, g, o within each direction's 4H block.
            cf_n = sig[:, H:2 * H] * cf + sig[:, 0:H] * th[:, 2 * H:3 * H]
            hf_n = sig[:, 3 * H:4 * H] * jnp.tanh(cf_n)
            cb_n = sig[:, 5 * H:6 * H] * cb + sig[:, 4 * H:5 * H] * th[:, 6 * H:7 * H]
            hb_n = sig[:, 7 * H:8 * H] * jnp.tanh(cb_n)

            hf_sc[pl.ds(rf, Bp), :] = hf_n               # fwd hidden at time s
            hb_sc[pl.ds(rb, Bp), :] = hb_n               # bwd hidden at time T-1-s
            return (jnp.concatenate([hf_n, hb_n], axis=-1), cf_n, cb_n)

        h0 = jnp.zeros((Bp, 2 * H), jnp.float32)
        c0 = jnp.zeros((Bp, H), jnp.float32)
        jax.lax.fori_loop(0, T, step, (h0, c0, c0), unroll=unroll)

    # ---- MLP head: Dense(2H->D) + LeakyReLU(0.01) + Linear(D->1) + Sigmoid ----
    # Transposed orientation so the (1, T*Bp) output row is lane-dense; the
    # dot_general contracts over the 2H axis of both operands (no explicit
    # transpose feeding the MXU).
    act = jnp.concatenate([hf_sc[...], hb_sc[...]], axis=-1)       # (T*Bp, 2H)
    zT = jax.lax.dot_general(
        w1_ref[...], act,
        dimension_numbers=(((1,), (1,)), ((), ())),
        preferred_element_type=jnp.float32) + b1_ref[...]          # (D, T*Bp)
    zT = jnp.where(zT > 0, zT, 0.01 * zT)                          # LeakyReLU
    yT = jnp.dot(w2_ref[...], zT,
                 preferred_element_type=jnp.float32) + b2_ref[...] # (1, T*Bp)
    out_ref[...] = jax.nn.sigmoid(yT)


# ------------------------------ python wrapper --------------------------------

def bilstm_predictor(x_btf, params):
    """x_btf: (B, T, input_size) batch-first, like the PyTorch module.
    Returns (B, T) == torch.flatten(sigmoid(...), start_dim=1)."""
    B, T, F = x_btf.shape
    H = params["lstm"][0]["w_hh_f"].shape[0]
    D = params["w1"].shape[0]
    L = len(params["lstm"])
    Bp = max(8, ((B + 7) // 8) * 8)          # pad batch to a sublane multiple

    # batch-first -> time-major flat rows r = t*Bp + b.
    xt = jnp.transpose(x_btf, (1, 0, 2))                     # (T, B, F)
    xt = jnp.pad(xt, ((0, 0), (0, Bp - B), (0, 0)))          # (T, Bp, F)
    x_flat = xt.reshape(T * Bp, F)

    # Pack per-layer weights into the kernel layout.
    packed = []
    for lyr in params["lstm"]:
        w_ih = jnp.concatenate([lyr["w_ih_f"], lyr["w_ih_b"]], axis=1)   # (Cin, 8H)
        b = jnp.concatenate([lyr["b_f"], lyr["b_b"]], axis=1)            # (1, 8H)
        w_hh = jnp.zeros((2 * H, 8 * H), jnp.float32)
        w_hh = w_hh.at[:H, :4 * H].set(lyr["w_hh_f"])
        w_hh = w_hh.at[H:, 4 * H:].set(lyr["w_hh_b"])                    # block-diag
        packed += [w_ih, b, w_hh]

    kernel = functools.partial(_fused_kernel, T=T, Bp=Bp, H=H, D=D, L=L)
    out = pl.pallas_call(
        kernel,
        out_shape=jax.ShapeDtypeStruct((1, T * Bp), jnp.float32),
        scratch_shapes=[
            pltpu.VMEM((T * Bp, 8 * H), jnp.float32),   # hoisted x @ W_ih (+ b)
            pltpu.VMEM((T * Bp, H), jnp.float32),       # fwd hidden, all t
            pltpu.VMEM((T * Bp, H), jnp.float32),       # bwd hidden, all t
        ],
    )(x_flat, *packed,
      params["w1"], params["b1"], params["w2"], params["b2"])

    return out.reshape(T, Bp)[:, :B].T                   # (B, T)


# --------------------------- deterministic params ----------------------------

def init_params(key, input_size, hidden_size, num_layers, dense_size):
    H, D = hidden_size, dense_size
    bound = 1.0 / float(H) ** 0.5
    layers = []
    for layer in range(num_layers):
        in_size = input_size if layer == 0 else 2 * H
        lyr = {}
        for tag in ("f", "b"):                           # forward / backward
            key, k1, k2, k3, k4 = jax.random.split(key, 5)
            lyr["w_ih_" + tag] = jax.random.uniform(
                k1, (in_size, 4 * H), jnp.float32, -bound, bound)
            lyr["w_hh_" + tag] = jax.random.uniform(
                k2, (H, 4 * H), jnp.float32, -bound, bound)
            b_ih = jax.random.uniform(k3, (4 * H,), jnp.float32, -bound, bound)
            b_hh = jax.random.uniform(k4, (4 * H,), jnp.float32, -bound, bound)
            lyr["b_" + tag] = (b_ih + b_hh)[None, :]
        layers.append(lyr)
    key, k1, k2, k3, k4 = jax.random.split(key, 5)
    bd = 1.0 / float(2 * H) ** 0.5
    bl = 1.0 / float(D) ** 0.5
    return {
        "lstm": layers,
        "w1": jax.random.uniform(k1, (D, 2 * H), jnp.float32, -bd, bd),
        "b1": jax.random.uniform(k2, (D, 1), jnp.float32, -bd, bd),
        "w2": jax.random.uniform(k3, (1, D), jnp.float32, -bl, bl),
        "b2": jax.random.uniform(k4, (1, 1), jnp.float32, -bl, bl),
    }


# ----------------------------- pure-JAX reference ----------------------------

def _ref_lstm_dir(x_tbf, w_ih, w_hh, b):
    H = w_hh.shape[0]

    def step(carry, x_t):
        h, c = carry
        gates = x_t @ w_ih + h @ w_hh + b
        i = jax.nn.sigmoid(gates[:, 0 * H:1 * H])
        f = jax.nn.sigmoid(gates[:, 1 * H:2 * H])
        g = jnp.tanh(gates[:, 2 * H:3 * H])
        o = jax.nn.sigmoid(gates[:, 3 * H:4 * H])
        c = f * c + i * g
        h = o * jnp.tanh(c)
        return (h, c), h

    B = x_tbf.shape[1]
    init = (jnp.zeros((B, H), jnp.float32), jnp.zeros((B, H), jnp.float32))
    _, hs = jax.lax.scan(step, init, x_tbf)
    return hs


def ref_forward(x_btf, params):
    B, T, _ = x_btf.shape
    h = jnp.transpose(x_btf, (1, 0, 2))                        # (T, B, F)
    for lyr in params["lstm"]:
        fwd = _ref_lstm_dir(h, lyr["w_ih_f"], lyr["w_hh_f"], lyr["b_f"])
        bwd = jnp.flip(_ref_lstm_dir(jnp.flip(h, 0),
                                     lyr["w_ih_b"], lyr["w_hh_b"], lyr["b_b"]), 0)
        h = jnp.concatenate([fwd, bwd], axis=-1)               # (T, B, 2H)
    feat = h.reshape(T * B, -1)
    z = feat @ params["w1"].T + params["b1"].T
    z = jnp.where(z > 0, z, 0.01 * z)
    y = jax.nn.sigmoid(z @ params["w2"].T + params["b2"])      # (T*B, 1)
    return y.reshape(T, B).T


# ----------------------------------- main -------------------------------------

if __name__ == "__main__":
    # BiLSTMPredictor(input_size=16, hidden_size=32, num_layers=2,
    #                 dense_size=16, bi=True, dropout=0) at small shapes.
    B, T = 2, 8
    INPUT_SIZE, HIDDEN_SIZE, NUM_LAYERS, DENSE_SIZE = 16, 32, 2, 16

    key = jax.random.PRNGKey(0)
    key, kx, kp = jax.random.split(key, 3)
    x = jax.random.normal(kx, (B, T, INPUT_SIZE), jnp.float32)
    params = init_params(kp, INPUT_SIZE, HIDDEN_SIZE, NUM_LAYERS, DENSE_SIZE)

    out = jax.block_until_ready(bilstm_predictor(x, params))
    ref = jax.block_until_ready(ref_forward(x, params))

    assert out.shape == (B, T), out.shape
    assert jnp.allclose(out, ref, atol=5e-2, rtol=5e-2), (
        float(jnp.max(jnp.abs(out - ref))))

    print("KERNEL_OK")
</pallas_src>

<mosaic_0001>
module attributes {stable_mosaic.version = 11 : i64} {
  func.func @_fused_kernel(%arg0: memref<64x16xf32, #tpu.memory_space<vmem>>, %arg1: memref<16x256xf32, #tpu.memory_space<vmem>>, %arg2: memref<1x256xf32, #tpu.memory_space<vmem>>, %arg3: memref<64x256xf32, #tpu.memory_space<vmem>>, %arg4: memref<64x256xf32, #tpu.memory_space<vmem>>, %arg5: memref<1x256xf32, #tpu.memory_space<vmem>>, %arg6: memref<64x256xf32, #tpu.memory_space<vmem>>, %arg7: memref<16x64xf32, #tpu.memory_space<vmem>>, %arg8: memref<16x1xf32, #tpu.memory_space<vmem>>, %arg9: memref<1x16xf32, #tpu.memory_space<vmem>>, %arg10: memref<1x1xf32, #tpu.memory_space<vmem>>, %arg11: memref<1x64xf32, #tpu.memory_space<vmem>>, %arg12: memref<64x256xf32, #tpu.memory_space<vmem>>, %arg13: memref<64x32xf32, #tpu.memory_space<vmem>>, %arg14: memref<64x32xf32, #tpu.memory_space<vmem>>) attributes {dimension_semantics = [], scalar_prefetch = 0 : i64, scratch_operands = 3 : i64, tpu.core_type = #tpu.core_type<tc>} {
    %c0 = arith.constant 0 : index
    %c0_0 = arith.constant 0 : index
    %0 = vector.load %arg0[%c0, %c0_0] : memref<64x16xf32, #tpu.memory_space<vmem>>, vector<64x16xf32>
    %c0_1 = arith.constant 0 : index
    %c0_2 = arith.constant 0 : index
    %1 = vector.load %arg1[%c0_1, %c0_2] : memref<16x256xf32, #tpu.memory_space<vmem>>, vector<16x256xf32>
    %cst = arith.constant dense<0.000000e+00> : vector<64x256xf32>
    %2 = tpu.matmul %0, %1, %cst {dimension_numbers = #tpu.dot_dimension_numbers<[1], [0], [0], [1], [0, 0, 1, 1], [], []>} : vector<64x16xf32>, vector<16x256xf32>, vector<64x256xf32> -> vector<64x256xf32>
    %c0_3 = arith.constant 0 : index
    %c0_4 = arith.constant 0 : index
    %3 = vector.load %arg2[%c0_3, %c0_4] : memref<1x256xf32, #tpu.memory_space<vmem>>, vector<1x256xf32>
    %4 = vector.broadcast %3 : vector<1x256xf32> to vector<64x256xf32>
    %5 = arith.addf %2, %4 : vector<64x256xf32>
    %c0_5 = arith.constant 0 : index
    %c0_6 = arith.constant 0 : index
    %6 = vector.load %arg12[%c0_5, %c0_6] : memref<64x256xf32, #tpu.memory_space<vmem>>, vector<64x256xf32>
    tpu.vector_store %arg12[%c0_5, %c0_6], %5 {strides = array<i32>} : memref<64x256xf32, #tpu.memory_space<vmem>>, vector<64x256xf32>,
    %c0_7 = arith.constant 0 : index
    %c0_8 = arith.constant 0 : index
    %7 = vector.load %arg3[%c0_7, %c0_8] : memref<64x256xf32, #tpu.memory_space<vmem>>, vector<64x256xf32>
    %cst_9 = arith.constant 0.000000e+00 : f32
    %8 = vector.broadcast %cst_9 : f32 to vector<8x64xf32>
    %cst_10 = arith.constant 0.000000e+00 : f32
    %9 = vector.broadcast %cst_10 : f32 to vector<8x32xf32>
    %c0_i32 = arith.constant 0 : i32
    %cst_11 = arith.constant dense<0.000000e+00> : vector<8x256xf32>
    %10 = tpu.matmul %8, %7, %cst_11 {dimension_numbers = #tpu.dot_dimension_numbers<[1], [0], [0], [1], [0, 0, 1, 1], [], []>} : vector<8x64xf32>, vector<64x256xf32>, vector<8x256xf32> -> vector<8x256xf32>
    %c8_i32 = arith.constant 8 : i32
    %11 = arith.muli %c0_i32, %c8_i32 : i32
    %12 = tpu.assume_multiple %11, 8 : i32
    %c7_i32 = arith.constant 7 : i32
    %13 = arith.subi %c7_i32, %c0_i32 : i32
    %c8_i32_12 = arith.constant 8 : i32
    %14 = arith.muli %13, %c8_i32_12 : i32
    %15 = tpu.assume_multiple %14, 8 : i32
    %16 = arith.index_cast %12 : i32 to index
    %c0_13 = arith.constant 0 : index
    %17 = vector.load %arg12[%16, %c0_13] : memref<64x256xf32, #tpu.memory_space<vmem>>, vector<8x256xf32>
    %18 = vector.extract_strided_slice %17 {offsets = [0, 0], sizes = [8, 128], strides = [1, 1]} : vector<8x256xf32> to vector<8x128xf32>
    %19 = arith.index_cast %15 : i32 to index
    %c0_14 = arith.constant 0 : index
    %20 = vector.load %arg12[%19, %c0_14] : memref<64x256xf32, #tpu.memory_space<vmem>>, vector<8x256xf32>
    %21 = vector.extract_strided_slice %20 {offsets = [0, 128], sizes = [8, 128], strides = [1, 1]} : vector<8x256xf32> to vector<8x128xf32>
    %22 = tpu.concatenate %18, %21 in 1 : vector<8x128xf32>, vector<8x128xf32> -> vector<8x256xf32>
    %23 = arith.addf %22, %10 : vector<8x256xf32>
    %24 = arith.negf %23 : vector<8x256xf32>
    %25 = math.exp %24 : vector<8x256xf32>
    %cst_15 = arith.constant 1.000000e+00 : f32
    %26 = vector.broadcast %cst_15 : f32 to vector<8x256xf32>
    %27 = arith.addf %26, %25 : vector<8x256xf32>
    %28 = arith.divf %26, %27 : vector<8x256xf32>
    %29 = math.tanh %23 : vector<8x256xf32>
    %30 = vector.extract_strided_slice %28 {offsets = [0, 32], sizes = [8, 32], strides = [1, 1]} : vector<8x256xf32> to vector<8x32xf32>
    %31 = arith.mulf %30, %9 : vector<8x32xf32>
    %32 = vector.extract_strided_slice %28 {offsets = [0, 0], sizes = [8, 32], strides = [1, 1]} : vector<8x256xf32> to vector<8x32xf32>
    %33 = vector.extract_strided_slice %29 {offsets = [0, 64], sizes = [8, 32], strides = [1, 1]} : vector<8x256xf32> to vector<8x32xf32>
    %34 = arith.mulf %32, %33 : vector<8x32xf32>
    %35 = arith.addf %31, %34 : vector<8x32xf32>
    %36 = vector.extract_strided_slice %28 {offsets = [0, 96], sizes = [8, 32], strides = [1, 1]} : vector<8x256xf32> to vector<8x32xf32>
    %37 = math.tanh %35 : vector<8x32xf32>
    %38 = arith.mulf %36, %37 : vector<8x32xf32>
    %39 = vector.extract_strided_slice %28 {offsets = [0, 160], sizes = [8, 32], strides = [1, 1]} : vector<8x256xf32> to vector<8x32xf32>
    %40 = arith.mulf %39, %9 : vector<8x32xf32>
    %41 = vector.extract_strided_slice %28 {offsets = [0, 128], sizes = [8, 32], strides = [1, 1]} : vector<8x256xf32> to vector<8x32xf32>
    %42 = vector.extract_strided_slice %29 {offsets = [0, 192], sizes = [8, 32], strides = [1, 1]} : vector<8x256xf32> to vector<8x32xf32>
    %43 = arith.mulf %41, %42 : vector<8x32xf32>
    %44 = arith.addf %40, %43 : vector<8x32xf32>
    %45 = vector.extract_strided_slice %28 {offsets = [0, 224], sizes = [8, 32], strides = [1, 1]} : vector<8x256xf32> to vector<8x32xf32>
    %46 = math.tanh %44 : vector<8x32xf32>
    %47 = arith.mulf %45, %46 : vector<8x32xf32>
    %48 = arith.index_cast %12 : i32 to index
    %c0_16 = arith.constant 0 : index
    %49 = vector.load %arg13[%48, %c0_16] : memref<64x32xf32, #tpu.memory_space<vmem>>, vector<8x32xf32>
    tpu.vector_store %arg13[%48, %c0_16], %38 {strides = array<i32>} : memref<64x32xf32, #tpu.memory_space<vmem>>, vector<8x32xf32>,
    %50 = arith.index_cast %15 : i32 to index
    %c0_17 = arith.constant 0 : index
    %51 = vector.load %arg14[%50, %c0_17] : memref<64x32xf32, #tpu.memory_space<vmem>>, vector<8x32xf32>
    tpu.vector_store %arg14[%50, %c0_17], %47 {strides = array<i32>} : memref<64x32xf32, #tpu.memory_space<vmem>>, vector<8x32xf32>,
    %52 = tpu.concatenate %38, %47 in 1 : vector<8x32xf32>, vector<8x32xf32> -> vector<8x64xf32>
    %c1_i32 = arith.constant 1 : i32
    %cst_18 = arith.constant dense<0.000000e+00> : vector<8x256xf32>
    %53 = tpu.matmul %52, %7, %cst_18 {dimension_numbers = #tpu.dot_dimension_numbers<[1], [0], [0], [1], [0, 0, 1, 1], [], []>} : vector<8x64xf32>, vector<64x256xf32>, vector<8x256xf32> -> vector<8x256xf32>
    %c8_i32_19 = arith.constant 8 : i32
    %54 = arith.muli %c1_i32, %c8_i32_19 : i32
    %55 = tpu.assume_multiple %54, 8 : i32
    %c7_i32_20 = arith.constant 7 : i32
    %56 = arith.subi %c7_i32_20, %c1_i32 : i32
    %c8_i32_21 = arith.constant 8 : i32
    %57 = arith.muli %56, %c8_i32_21 : i32
    %58 = tpu.assume_multiple %57, 8 : i32
    %59 = arith.index_cast %55 : i32 to index
    %c0_22 = arith.constant 0 : index
    %60 = vector.load %arg12[%59, %c0_22] : memref<64x256xf32, #tpu.memory_space<vmem>>, vector<8x256xf32>
    %61 = vector.extract_strided_slice %60 {offsets = [0, 0], sizes = [8, 128], strides = [1, 1]} : vector<8x256xf32> to vector<8x128xf32>
    %62 = arith.index_cast %58 : i32 to index
    %c0_23 = arith.constant 0 : index
    %63 = vector.load %arg12[%62, %c0_23] : memref<64x256xf32, #tpu.memory_space<vmem>>, vector<8x256xf32>
    %64 = vector.extract_strided_slice %63 {offsets = [0, 128], sizes = [8, 128], strides = [1, 1]} : vector<8x256xf32> to vector<8x128xf32>
    %65 = tpu.concatenate %61, %64 in 1 : vector<8x128xf32>, vector<8x128xf32> -> vector<8x256xf32>
    %66 = arith.addf %65, %53 : vector<8x256xf32>
    %67 = arith.negf %66 : vector<8x256xf32>
    %68 = math.exp %67 : vector<8x256xf32>
    %cst_24 = arith.constant 1.000000e+00 : f32
    %69 = vector.broadcast %cst_24 : f32 to vector<8x256xf32>
    %70 = arith.addf %69, %68 : vector<8x256xf32>
    %71 = arith.divf %69, %70 : vector<8x256xf32>
    %72 = math.tanh %66 : vector<8x256xf32>
    %73 = vector.extract_strided_slice %71 {offsets = [0, 32], sizes = [8, 32], strides = [1, 1]} : vector<8x256xf32> to vector<8x32xf32>
    %74 = arith.mulf %73, %35 : vector<8x32xf32>
    %75 = vector.extract_strided_slice %71 {offsets = [0, 0], sizes = [8, 32], strides = [1, 1]} : vector<8x256xf32> to vector<8x32xf32>
    %76 = vector.extract_strided_slice %72 {offsets = [0, 64], sizes = [8, 32], strides = [1, 1]} : vector<8x256xf32> to vector<8x32xf32>
    %77 = arith.mulf %75, %76 : vector<8x32xf32>
    %78 = arith.addf %74, %77 : vector<8x32xf32>
    %79 = vector.extract_strided_slice %71 {offsets = [0, 96], sizes = [8, 32], strides = [1, 1]} : vector<8x256xf32> to vector<8x32xf32>
    %80 = math.tanh %78 : vector<8x32xf32>
    %81 = arith.mulf %79, %80 : vector<8x32xf32>
    %82 = vector.extract_strided_slice %71 {offsets = [0, 160], sizes = [8, 32], strides = [1, 1]} : vector<8x256xf32> to vector<8x32xf32>
    %83 = arith.mulf %82, %44 : vector<8x32xf32>
    %84 = vector.extract_strided_slice %71 {offsets = [0, 128], sizes = [8, 32], strides = [1, 1]} : vector<8x256xf32> to vector<8x32xf32>
    %85 = vector.extract_strided_slice %72 {offsets = [0, 192], sizes = [8, 32], strides = [1, 1]} : vector<8x256xf32> to vector<8x32xf32>
    %86 = arith.mulf %84, %85 : vector<8x32xf32>
    %87 = arith.addf %83, %86 : vector<8x32xf32>
    %88 = vector.extract_strided_slice %71 {offsets = [0, 224], sizes = [8, 32], strides = [1, 1]} : vector<8x256xf32> to vector<8x32xf32>
    %89 = math.tanh %87 : vector<8x32xf32>
    %90 = arith.mulf %88, %89 : vector<8x32xf32>
    %91 = arith.index_cast %55 : i32 to index
    %c0_25 = arith.constant 0 : index
    %92 = vector.load %arg13[%91, %c0_25] : memref<64x32xf32, #tpu.memory_space<vmem>>, vector<8x32xf32>
    tpu.vector_store %arg13[%91, %c0_25], %81 {strides = array<i32>} : memref<64x32xf32, #tpu.memory_space<vmem>>, vector<8x32xf32>,
    %93 = arith.index_cast %58 : i32 to index
    %c0_26 = arith.constant 0 : index
    %94 = vector.load %arg14[%93, %c0_26] : memref<64x32xf32, #tpu.memory_space<vmem>>, vector<8x32xf32>
    tpu.vector_store %arg14[%93, %c0_26], %90 {strides = array<i32>} : memref<64x32xf32, #tpu.memory_space<vmem>>, vector<8x32xf32>,
    %95 = tpu.concatenate %81, %90 in 1 : vector<8x32xf32>, vector<8x32xf32> -> vector<8x64xf32>
    %c2_i32 = arith.constant 2 : i32
    %cst_27 = arith.constant dense<0.000000e+00> : vector<8x256xf32>
    %96 = tpu.matmul %95, %7, %cst_27 {dimension_numbers = #tpu.dot_dimension_numbers<[1], [0], [0], [1], [0, 0, 1, 1], [], []>} : vector<8x64xf32>, vector<64x256xf32>, vector<8x256xf32> -> vector<8x256xf32>
    %c8_i32_28 = arith.constant 8 : i32
    %97 = arith.muli %c2_i32, %c8_i32_28 : i32
    %98 = tpu.assume_multiple %97, 8 : i32
    %c7_i32_29 = arith.constant 7 : i32
    %99 = arith.subi %c7_i32_29, %c2_i32 : i32
    %c8_i32_30 = arith.constant 8 : i32
    %100 = arith.muli %99, %c8_i32_30 : i32
    %101 = tpu.assume_multiple %100, 8 : i32
    %102 = arith.index_cast %98 : i32 to index
    %c0_31 = arith.constant 0 : index
    %103 = vector.load %arg12[%102, %c0_31] : memref<64x256xf32, #tpu.memory_space<vmem>>, vector<8x256xf32>
    %104 = vector.extract_strided_slice %103 {offsets = [0, 0], sizes = [8, 128], strides = [1, 1]} : vector<8x256xf32> to vector<8x128xf32>
    %105 = arith.index_cast %101 : i32 to index
    %c0_32 = arith.constant 0 : index
    %106 = vector.load %arg12[%105, %c0_32] : memref<64x256xf32, #tpu.memory_space<vmem>>, vector<8x256xf32>
    %107 = vector.extract_strided_slice %106 {offsets = [0, 128], sizes = [8, 128], strides = [1, 1]} : vector<8x256xf32> to vector<8x128xf32>
    %108 = tpu.concatenate %104, %107 in 1 : vector<8x128xf32>, vector<8x128xf32> -> vector<8x256xf32>
    %109 = arith.addf %108, %96 : vector<8x256xf32>
    %110 = arith.negf %109 : vector<8x256xf32>
    %111 = math.exp %110 : vector<8x256xf32>
    %cst_33 = arith.constant 1.000000e+00 : f32
    %112 = vector.broadcast %cst_33 : f32 to vector<8x256xf32>
    %113 = arith.addf %112, %111 : vector<8x256xf32>
    %114 = arith.divf %112, %113 : vector<8x256xf32>
    %115 = math.tanh %109 : vector<8x256xf32>
    %116 = vector.extract_strided_slice %114 {offsets = [0, 32], sizes = [8, 32], strides = [1, 1]} : vector<8x256xf32> to vector<8x32xf32>
    %117 = arith.mulf %116, %78 : vector<8x32xf32>
    %118 = vector.extract_strided_slice %114 {offsets = [0, 0], sizes = [8, 32], strides = [1, 1]} : vector<8x256xf32> to vector<8x32xf32>
    %119 = vector.extract_strided_slice %115 {offsets = [0, 64], sizes = [8, 32], strides = [1, 1]} : vector<8x256xf32> to vector<8x32xf32>
    %120 = arith.mulf %118, %119 : vector<8x32xf32>
    %121 = arith.addf %117, %120 : vector<8x32xf32>
    %122 = vector.extract_strided_slice %114 {offsets = [0, 96], sizes = [8, 32], strides = [1, 1]} : vector<8x256xf32> to vector<8x32xf32>
    %123 = math.tanh %121 : vector<8x32xf32>
    %124 = arith.mulf %122, %123 : vector<8x32xf32>
    %125 = vector.extract_strided_slice %114 {offsets = [0, 160], sizes = [8, 32], strides = [1, 1]} : vector<8x256xf32> to vector<8x32xf32>
    %126 = arith.mulf %125, %87 : vector<8x32xf32>
    %127 = vector.extract_strided_slice %114 {offsets = [0, 128], sizes = [8, 32], strides = [1, 1]} : vector<8x256xf32> to vector<8x32xf32>
    %128 = vector.extract_strided_slice %115 {offsets = [0, 192], sizes = [8, 32], strides = [1, 1]} : vector<8x256xf32> to vector<8x32xf32>
    %129 = arith.mulf %127, %128 : vector<8x32xf32>
    %130 = arith.addf %126, %129 : vector<8x32xf32>
    %131 = vector.extract_strided_slice %114 {offsets = [0, 224], sizes = [8, 32], strides = [1, 1]} : vector<8x256xf32> to vector<8x32xf32>
    %132 = math.tanh %130 : vector<8x32xf32>
    %133 = arith.mulf %131, %132 : vector<8x32xf32>
    %134 = arith.index_cast %98 : i32 to index
    %c0_34 = arith.constant 0 : index
    %135 = vector.load %arg13[%134, %c0_34] : memref<64x32xf32, #tpu.memory_space<vmem>>, vector<8x32xf32>
    tpu.vector_store %arg13[%134, %c0_34], %124 {strides = array<i32>} : memref<64x32xf32, #tpu.memory_space<vmem>>, vector<8x32xf32>,
    %136 = arith.index_cast %101 : i32 to index
    %c0_35 = arith.constant 0 : index
    %137 = vector.load %arg14[%136, %c0_35] : memref<64x32xf32, #tpu.memory_space<vmem>>, vector<8x32xf32>
    tpu.vector_store %arg14[%136, %c0_35], %133 {strides = array<i32>} : memref<64x32xf32, #tpu.memory_space<vmem>>, vector<8x32xf32>,
    %138 = tpu.concatenate %124, %133 in 1 : vector<8x32xf32>, vector<8x32xf32> -> vector<8x64xf32>
    %c3_i32 = arith.constant 3 : i32
    %cst_36 = arith.constant dense<0.000000e+00> : vector<8x256xf32>
    %139 = tpu.matmul %138, %7, %cst_36 {dimension_numbers = #tpu.dot_dimension_numbers<[1], [0], [0], [1], [0, 0, 1, 1], [], []>} : vector<8x64xf32>, vector<64x256xf32>, vector<8x256xf32> -> vector<8x256xf32>
    %c8_i32_37 = arith.constant 8 : i32
    %140 = arith.muli %c3_i32, %c8_i32_37 : i32
    %141 = tpu.assume_multiple %140, 8 : i32
    %c7_i32_38 = arith.constant 7 : i32
    %142 = arith.subi %c7_i32_38, %c3_i32 : i32
    %c8_i32_39 = arith.constant 8 : i32
    %143 = arith.muli %142, %c8_i32_39 : i32
    %144 = tpu.assume_multiple %143, 8 : i32
    %145 = arith.index_cast %141 : i32 to index
    %c0_40 = arith.constant 0 : index
    %146 = vector.load %arg12[%145, %c0_40] : memref<64x256xf32, #tpu.memory_space<vmem>>, vector<8x256xf32>
    %147 = vector.extract_strided_slice %146 {offsets = [0, 0], sizes = [8, 128], strides = [1, 1]} : vector<8x256xf32> to vector<8x128xf32>
    %148 = arith.index_cast %144 : i32 to index
    %c0_41 = arith.constant 0 : index
    %149 = vector.load %arg12[%148, %c0_41] : memref<64x256xf32, #tpu.memory_space<vmem>>, vector<8x256xf32>
    %150 = vector.extract_strided_slice %149 {offsets = [0, 128], sizes = [8, 128], strides = [1, 1]} : vector<8x256xf32> to vector<8x128xf32>
    %151 = tpu.concatenate %147, %150 in 1 : vector<8x128xf32>, vector<8x128xf32> -> vector<8x256xf32>
    %152 = arith.addf %151, %139 : vector<8x256xf32>
    %153 = arith.negf %152 : vector<8x256xf32>
    %154 = math.exp %153 : vector<8x256xf32>
    %cst_42 = arith.constant 1.000000e+00 : f32
    %155 = vector.broadcast %cst_42 : f32 to vector<8x256xf32>
    %156 = arith.addf %155, %154 : vector<8x256xf32>
    %157 = arith.divf %155, %156 : vector<8x256xf32>
    %158 = math.tanh %152 : vector<8x256xf32>
    %159 = vector.extract_strided_slice %157 {offsets = [0, 32], sizes = [8, 32], strides = [1, 1]} : vector<8x256xf32> to vector<8x32xf32>
    %160 = arith.mulf %159, %121 : vector<8x32xf32>
    %161 = vector.extract_strided_slice %157 {offsets = [0, 0], sizes = [8, 32], strides = [1, 1]} : vector<8x256xf32> to vector<8x32xf32>
    %162 = vector.extract_strided_slice %158 {offsets = [0, 64], sizes = [8, 32], strides = [1, 1]} : vector<8x256xf32> to vector<8x32xf32>
    %163 = arith.mulf %161, %162 : vector<8x32xf32>
    %164 = arith.addf %160, %163 : vector<8x32xf32>
    %165 = vector.extract_strided_slice %157 {offsets = [0, 96], sizes = [8, 32], strides = [1, 1]} : vector<8x256xf32> to vector<8x32xf32>
    %166 = math.tanh %164 : vector<8x32xf32>
    %167 = arith.mulf %165, %166 : vector<8x32xf32>
    %168 = vector.extract_strided_slice %157 {offsets = [0, 160], sizes = [8, 32], strides = [1, 1]} : vector<8x256xf32> to vector<8x32xf32>
    %169 = arith.mulf %168, %130 : vector<8x32xf32>
    %170 = vector.extract_strided_slice %157 {offsets = [0, 128], sizes = [8, 32], strides = [1, 1]} : vector<8x256xf32> to vector<8x32xf32>
    %171 = vector.extract_strided_slice %158 {offsets = [0, 192], sizes = [8, 32], strides = [1, 1]} : vector<8x256xf32> to vector<8x32xf32>
    %172 = arith.mulf %170, %171 : vector<8x32xf32>
    %173 = arith.addf %169, %172 : vector<8x32xf32>
    %174 = vector.extract_strided_slice %157 {offsets = [0, 224], sizes = [8, 32], strides = [1, 1]} : vector<8x256xf32> to vector<8x32xf32>
    %175 = math.tanh %173 : vector<8x32xf32>
    %176 = arith.mulf %174, %175 : vector<8x32xf32>
    %177 = arith.index_cast %141 : i32 to index
    %c0_43 = arith.constant 0 : index
    %178 = vector.load %arg13[%177, %c0_43] : memref<64x32xf32, #tpu.memory_space<vmem>>, vector<8x32xf32>
    tpu.vector_store %arg13[%177, %c0_43], %167 {strides = array<i32>} : memref<64x32xf32, #tpu.memory_space<vmem>>, vector<8x32xf32>,
    %179 = arith.index_cast %144 : i32 to index
    %c0_44 = arith.constant 0 : index
    %180 = vector.load %arg14[%179, %c0_44] : memref<64x32xf32, #tpu.memory_space<vmem>>, vector<8x32xf32>
    tpu.vector_store %arg14[%179, %c0_44], %176 {strides = array<i32>} : memref<64x32xf32, #tpu.memory_space<vmem>>, vector<8x32xf32>,
    %181 = tpu.concatenate %167, %176 in 1 : vector<8x32xf32>, vector<8x32xf32> -> vector<8x64xf32>
    %c4_i32 = arith.constant 4 : i32
    %cst_45 = arith.constant dense<0.000000e+00> : vector<8x256xf32>
    %182 = tpu.matmul %181, %7, %cst_45 {dimension_numbers = #tpu.dot_dimension_numbers<[1], [0], [0], [1], [0, 0, 1, 1], [], []>} : vector<8x64xf32>, vector<64x256xf32>, vector<8x256xf32> -> vector<8x256xf32>
    %c8_i32_46 = arith.constant 8 : i32
    %183 = arith.muli %c4_i32, %c8_i32_46 : i32
    %184 = tpu.assume_multiple %183, 8 : i32
    %c7_i32_47 = arith.constant 7 : i32
    %185 = arith.subi %c7_i32_47, %c4_i32 : i32
    %c8_i32_48 = arith.constant 8 : i32
    %186 = arith.muli %185, %c8_i32_48 : i32
    %187 = tpu.assume_multiple %186, 8 : i32
    %188 = arith.index_cast %184 : i32 to index
    %c0_49 = arith.constant 0 : index
    %189 = vector.load %arg12[%188, %c0_49] : memref<64x256xf32, #tpu.memory_space<vmem>>, vector<8x256xf32>
    %190 = vector.extract_strided_slice %189 {offsets = [0, 0], sizes = [8, 128], strides = [1, 1]} : vector<8x256xf32> to vector<8x128xf32>
    %191 = arith.index_cast %187 : i32 to index
    %c0_50 = arith.constant 0 : index
    %192 = vector.load %arg12[%191, %c0_50] : memref<64x256xf32, #tpu.memory_space<vmem>>, vector<8x256xf32>
    %193 = vector.extract_strided_slice %192 {offsets = [0, 128], sizes = [8, 128], strides = [1, 1]} : vector<8x256xf32> to vector<8x128xf32>
    %194 = tpu.concatenate %190, %193 in 1 : vector<8x128xf32>, vector<8x128xf32> -> vector<8x256xf32>
    %195 = arith.addf %194, %182 : vector<8x256xf32>
    %196 = arith.negf %195 : vector<8x256xf32>
    %197 = math.exp %196 : vector<8x256xf32>
    %cst_51 = arith.constant 1.000000e+00 : f32
    %198 = vector.broadcast %cst_51 : f32 to vector<8x256xf32>
    %199 = arith.addf %198, %197 : vector<8x256xf32>
    %200 = arith.divf %198, %199 : vector<8x256xf32>
    %201 = math.tanh %195 : vector<8x256xf32>
    %202 = vector.extract_strided_slice %200 {offsets = [0, 32], sizes = [8, 32], strides = [1, 1]} : vector<8x256xf32> to vector<8x32xf32>
    %203 = arith.mulf %202, %164 : vector<8x32xf32>
    %204 = vector.extract_strided_slice %200 {offsets = [0, 0], sizes = [8, 32], strides = [1, 1]} : vector<8x256xf32> to vector<8x32xf32>
    %205 = vector.extract_strided_slice %201 {offsets = [0, 64], sizes = [8, 32], strides = [1, 1]} : vector<8x256xf32> to vector<8x32xf32>
    %206 = arith.mulf %204, %205 : vector<8x32xf32>
    %207 = arith.addf %203, %206 : vector<8x32xf32>
    %208 = vector.extract_strided_slice %200 {offsets = [0, 96], sizes = [8, 32], strides = [1, 1]} : vector<8x256xf32> to vector<8x32xf32>
    %209 = math.tanh %207 : vector<8x32xf32>
    %210 = arith.mulf %208, %209 : vector<8x32xf32>
    %211 = vector.extract_strided_slice %200 {offsets = [0, 160], sizes = [8, 32], strides = [1, 1]} : vector<8x256xf32> to vector<8x32xf32>
    %212 = arith.mulf %211, %173 : vector<8x32xf32>
    %213 = vector.extract_strided_slice %200 {offsets = [0, 128], sizes = [8, 32], strides = [1, 1]} : vector<8x256xf32> to vector<8x32xf32>
    %214 = vector.extract_strided_slice %201 {offsets = [0, 192], sizes = [8, 32], strides = [1, 1]} : vector<8x256xf32> to vector<8x32xf32>
    %215 = arith.mulf %213, %214 : vector<8x32xf32>
    %216 = arith.addf %212, %215 : vector<8x32xf32>
    %217 = vector.extract_strided_slice %200 {offsets = [0, 224], sizes = [8, 32], strides = [1, 1]} : vector<8x256xf32> to vector<8x32xf32>
    %218 = math.tanh %216 : vector<8x32xf32>
    %219 = arith.mulf %217, %218 : vector<8x32xf32>
    %220 = arith.index_cast %184 : i32 to index
    %c0_52 = arith.constant 0 : index
    %221 = vector.load %arg13[%220, %c0_52] : memref<64x32xf32, #tpu.memory_space<vmem>>, vector<8x32xf32>
    tpu.vector_store %arg13[%220, %c0_52], %210 {strides = array<i32>} : memref<64x32xf32, #tpu.memory_space<vmem>>, vector<8x32xf32>,
    %222 = arith.index_cast %187 : i32 to index
    %c0_53 = arith.constant 0 : index
    %223 = vector.load %arg14[%222, %c0_53] : memref<64x32xf32, #tpu.memory_space<vmem>>, vector<8x32xf32>
    tpu.vector_store %arg14[%222, %c0_53], %219 {strides = array<i32>} : memref<64x32xf32, #tpu.memory_space<vmem>>, vector<8x32xf32>,
    %224 = tpu.concatenate %210, %219 in 1 : vector<8x32xf32>, vector<8x32xf32> -> vector<8x64xf32>
    %c5_i32 = arith.constant 5 : i32
    %cst_54 = arith.constant dense<0.000000e+00> : vector<8x256xf32>
    %225 = tpu.matmul %224, %7, %cst_54 {dimension_numbers = #tpu.dot_dimension_numbers<[1], [0], [0], [1], [0, 0, 1, 1], [], []>} : vector<8x64xf32>, vector<64x256xf32>, vector<8x256xf32> -> vector<8x256xf32>
    %c8_i32_55 = arith.constant 8 : i32
    %226 = arith.muli %c5_i32, %c8_i32_55 : i32
    %227 = tpu.assume_multiple %226, 8 : i32
    %c7_i32_56 = arith.constant 7 : i32
    %228 = arith.subi %c7_i32_56, %c5_i32 : i32
    %c8_i32_57 = arith.constant 8 : i32
    %229 = arith.muli %228, %c8_i32_57 : i32
    %230 = tpu.assume_multiple %229, 8 : i32
    %231 = arith.index_cast %227 : i32 to index
    %c0_58 = arith.constant 0 : index
    %232 = vector.load %arg12[%231, %c0_58] : memref<64x256xf32, #tpu.memory_space<vmem>>, vector<8x256xf32>
    %233 = vector.extract_strided_slice %232 {offsets = [0, 0], sizes = [8, 128], strides = [1, 1]} : vector<8x256xf32> to vector<8x128xf32>
    %234 = arith.index_cast %230 : i32 to index
    %c0_59 = arith.constant 0 : index
    %235 = vector.load %arg12[%234, %c0_59] : memref<64x256xf32, #tpu.memory_space<vmem>>, vector<8x256xf32>
    %236 = vector.extract_strided_slice %235 {offsets = [0, 128], sizes = [8, 128], strides = [1, 1]} : vector<8x256xf32> to vector<8x128xf32>
    %237 = tpu.concatenate %233, %236 in 1 : vector<8x128xf32>, vector<8x128xf32> -> vector<8x256xf32>
    %238 = arith.addf %237, %225 : vector<8x256xf32>
    %239 = arith.negf %238 : vector<8x256xf32>
    %240 = math.exp %239 : vector<8x256xf32>
    %cst_60 = arith.constant 1.000000e+00 : f32
    %241 = vector.broadcast %cst_60 : f32 to vector<8x256xf32>
    %242 = arith.addf %241, %240 : vector<8x256xf32>
    %243 = arith.divf %241, %242 : vector<8x256xf32>
    %244 = math.tanh %238 : vector<8x256xf32>
    %245 = vector.extract_strided_slice %243 {offsets = [0, 32], sizes = [8, 32], strides = [1, 1]} : vector<8x256xf32> to vector<8x32xf32>
    %246 = arith.mulf %245, %207 : vector<8x32xf32>
    %247 = vector.extract_strided_slice %243 {offsets = [0, 0], sizes = [8, 32], strides = [1, 1]} : vector<8x256xf32> to vector<8x32xf32>
    %248 = vector.extract_strided_slice %244 {offsets = [0, 64], sizes = [8, 32], strides = [1, 1]} : vector<8x256xf32> to vector<8x32xf32>
    %249 = arith.mulf %247, %248 : vector<8x32xf32>
    %250 = arith.addf %246, %249 : vector<8x32xf32>
    %251 = vector.extract_strided_slice %243 {offsets = [0, 96], sizes = [8, 32], strides = [1, 1]} : vector<8x256xf32> to vector<8x32xf32>
    %252 = math.tanh %250 : vector<8x32xf32>
    %253 = arith.mulf %251, %252 : vector<8x32xf32>
    %254 = vector.extract_strided_slice %243 {offsets = [0, 160], sizes = [8, 32], strides = [1, 1]} : vector<8x256xf32> to vector<8x32xf32>
    %255 = arith.mulf %254, %216 : vector<8x32xf32>
    %256 = vector.extract_strided_slice %243 {offsets = [0, 128], sizes = [8, 32], strides = [1, 1]} : vector<8x256xf32> to vector<8x32xf32>
    %257 = vector.extract_strided_slice %244 {offsets = [0, 192], sizes = [8, 32], strides = [1, 1]} : vector<8x256xf32> to vector<8x32xf32>
    %258 = arith.mulf %256, %257 : vector<8x32xf32>
    %259 = arith.addf %255, %258 : vector<8x32xf32>
    %260 = vector.extract_strided_slice %243 {offsets = [0, 224], sizes = [8, 32], strides = [1, 1]} : vector<8x256xf32> to vector<8x32xf32>
    %261 = math.tanh %259 : vector<8x32xf32>
    %262 = arith.mulf %260, %261 : vector<8x32xf32>
    %263 = arith.index_cast %227 : i32 to index
    %c0_61 = arith.constant 0 : index
    %264 = vector.load %arg13[%263, %c0_61] : memref<64x32xf32, #tpu.memory_space<vmem>>, vector<8x32xf32>
    tpu.vector_store %arg13[%263, %c0_61], %253 {strides = array<i32>} : memref<64x32xf32, #tpu.memory_space<vmem>>, vector<8x32xf32>,
    %265 = arith.index_cast %230 : i32 to index
    %c0_62 = arith.constant 0 : index
    %266 = vector.load %arg14[%265, %c0_62] : memref<64x32xf32, #tpu.memory_space<vmem>>, vector<8x32xf32>
    tpu.vector_store %arg14[%265, %c0_62], %262 {strides = array<i32>} : memref<64x32xf32, #tpu.memory_space<vmem>>, vector<8x32xf32>,
    %267 = tpu.concatenate %253, %262 in 1 : vector<8x32xf32>, vector<8x32xf32> -> vector<8x64xf32>
    %c6_i32 = arith.constant 6 : i32
    %cst_63 = arith.constant dense<0.000000e+00> : vector<8x256xf32>
    %268 = tpu.matmul %267, %7, %cst_63 {dimension_numbers = #tpu.dot_dimension_numbers<[1], [0], [0], [1], [0, 0, 1, 1], [], []>} : vector<8x64xf32>, vector<64x256xf32>, vector<8x256xf32> -> vector<8x256xf32>
    %c8_i32_64 = arith.constant 8 : i32
    %269 = arith.muli %c6_i32, %c8_i32_64 : i32
    %270 = tpu.assume_multiple %269, 8 : i32
    %c7_i32_65 = arith.constant 7 : i32
    %271 = arith.subi %c7_i32_65, %c6_i32 : i32
    %c8_i32_66 = arith.constant 8 : i32
    %272 = arith.muli %271, %c8_i32_66 : i32
    %273 = tpu.assume_multiple %272, 8 : i32
    %274 = arith.index_cast %270 : i32 to index
    %c0_67 = arith.constant 0 : index
    %275 = vector.load %arg12[%274, %c0_67] : memref<64x256xf32, #tpu.memory_space<vmem>>, vector<8x256xf32>
    %276 = vector.extract_strided_slice %275 {offsets = [0, 0], sizes = [8, 128], strides = [1, 1]} : vector<8x256xf32> to vector<8x128xf32>
    %277 = arith.index_cast %273 : i32 to index
    %c0_68 = arith.constant 0 : index
    %278 = vector.load %arg12[%277, %c0_68] : memref<64x256xf32, #tpu.memory_space<vmem>>, vector<8x256xf32>
    %279 = vector.extract_strided_slice %278 {offsets = [0, 128], sizes = [8, 128], strides = [1, 1]} : vector<8x256xf32> to vector<8x128xf32>
    %280 = tpu.concatenate %276, %279 in 1 : vector<8x128xf32>, vector<8x128xf32> -> vector<8x256xf32>
    %281 = arith.addf %280, %268 : vector<8x256xf32>
    %282 = arith.negf %281 : vector<8x256xf32>
    %283 = math.exp %282 : vector<8x256xf32>
    %cst_69 = arith.constant 1.000000e+00 : f32
    %284 = vector.broadcast %cst_69 : f32 to vector<8x256xf32>
    %285 = arith.addf %284, %283 : vector<8x256xf32>
    %286 = arith.divf %284, %285 : vector<8x256xf32>
    %287 = math.tanh %281 : vector<8x256xf32>
    %288 = vector.extract_strided_slice %286 {offsets = [0, 32], sizes = [8, 32], strides = [1, 1]} : vector<8x256xf32> to vector<8x32xf32>
    %289 = arith.mulf %288, %250 : vector<8x32xf32>
    %290 = vector.extract_strided_slice %286 {offsets = [0, 0], sizes = [8, 32], strides = [1, 1]} : vector<8x256xf32> to vector<8x32xf32>
    %291 = vector.extract_strided_slice %287 {offsets = [0, 64], sizes = [8, 32], strides = [1, 1]} : vector<8x256xf32> to vector<8x32xf32>
    %292 = arith.mulf %290, %291 : vector<8x32xf32>
    %293 = arith.addf %289, %292 : vector<8x32xf32>
    %294 = vector.extract_strided_slice %286 {offsets = [0, 96], sizes = [8, 32], strides = [1, 1]} : vector<8x256xf32> to vector<8x32xf32>
    %295 = math.tanh %293 : vector<8x32xf32>
    %296 = arith.mulf %294, %295 : vector<8x32xf32>
    %297 = vector.extract_strided_slice %286 {offsets = [0, 160], sizes = [8, 32], strides = [1, 1]} : vector<8x256xf32> to vector<8x32xf32>
    %298 = arith.mulf %297, %259 : vector<8x32xf32>
    %299 = vector.extract_strided_slice %286 {offsets = [0, 128], sizes = [8, 32], strides = [1, 1]} : vector<8x256xf32> to vector<8x32xf32>
    %300 = vector.extract_strided_slice %287 {offsets = [0, 192], sizes = [8, 32], strides = [1, 1]} : vector<8x256xf32> to vector<8x32xf32>
    %301 = arith.mulf %299, %300 : vector<8x32xf32>
    %302 = arith.addf %298, %301 : vector<8x32xf32>
    %303 = vector.extract_strided_slice %286 {offsets = [0, 224], sizes = [8, 32], strides = [1, 1]} : vector<8x256xf32> to vector<8x32xf32>
    %304 = math.tanh %302 : vector<8x32xf32>
    %305 = arith.mulf %303, %304 : vector<8x32xf32>
    %306 = arith.index_cast %270 : i32 to index
    %c0_70 = arith.constant 0 : index
    %307 = vector.load %arg13[%306, %c0_70] : memref<64x32xf32, #tpu.memory_space<vmem>>, vector<8x32xf32>
    tpu.vector_store %arg13[%306, %c0_70], %296 {strides = array<i32>} : memref<64x32xf32, #tpu.memory_space<vmem>>, vector<8x32xf32>,
    %308 = arith.index_cast %273 : i32 to index
    %c0_71 = arith.constant 0 : index
    %309 = vector.load %arg14[%308, %c0_71] : memref<64x32xf32, #tpu.memory_space<vmem>>, vector<8x32xf32>
    tpu.vector_store %arg14[%308, %c0_71], %305 {strides = array<i32>} : memref<64x32xf32, #tpu.memory_space<vmem>>, vector<8x32xf32>,
    %310 = tpu.concatenate %296, %305 in 1 : vector<8x32xf32>, vector<8x32xf32> -> vector<8x64xf32>
    %c7_i32_72 = arith.constant 7 : i32
    %cst_73 = arith.constant dense<0.000000e+00> : vector<8x256xf32>
    %311 = tpu.matmul %310, %7, %cst_73 {dimension_numbers = #tpu.dot_dimension_numbers<[1], [0], [0], [1], [0, 0, 1, 1], [], []>} : vector<8x64xf32>, vector<64x256xf32>, vector<8x256xf32> -> vector<8x256xf32>
    %c8_i32_74 = arith.constant 8 : i32
    %312 = arith.muli %c7_i32_72, %c8_i32_74 : i32
    %313 = tpu.assume_multiple %312, 8 : i32
    %c7_i32_75 = arith.constant 7 : i32
    %314 = arith.subi %c7_i32_75, %c7_i32_72 : i32
    %c8_i32_76 = arith.constant 8 : i32
    %315 = arith.muli %314, %c8_i32_76 : i32
    %316 = tpu.assume_multiple %315, 8 : i32
    %317 = arith.index_cast %313 : i32 to index
    %c0_77 = arith.constant 0 : index
    %318 = vector.load %arg12[%317, %c0_77] : memref<64x256xf32, #tpu.memory_space<vmem>>, vector<8x256xf32>
    %319 = vector.extract_strided_slice %318 {offsets = [0, 0], sizes = [8, 128], strides = [1, 1]} : vector<8x256xf32> to vector<8x128xf32>
    %320 = arith.index_cast %316 : i32 to index
    %c0_78 = arith.constant 0 : index
    %321 = vector.load %arg12[%320, %c0_78] : memref<64x256xf32, #tpu.memory_space<vmem>>, vector<8x256xf32>
    %322 = vector.extract_strided_slice %321 {offsets = [0, 128], sizes = [8, 128], strides = [1, 1]} : vector<8x256xf32> to vector<8x128xf32>
    %323 = tpu.concatenate %319, %322 in 1 : vector<8x128xf32>, vector<8x128xf32> -> vector<8x256xf32>
    %324 = arith.addf %323, %311 : vector<8x256xf32>
    %325 = arith.negf %324 : vector<8x256xf32>
    %326 = math.exp %325 : vector<8x256xf32>
    %cst_79 = arith.constant 1.000000e+00 : f32
    %327 = vector.broadcast %cst_79 : f32 to vector<8x256xf32>
    %328 = arith.addf %327, %326 : vector<8x256xf32>
    %329 = arith.divf %327, %328 : vector<8x256xf32>
    %330 = math.tanh %324 : vector<8x256xf32>
    %331 = vector.extract_strided_slice %329 {offsets = [0, 32], sizes = [8, 32], strides = [1, 1]} : vector<8x256xf32> to vector<8x32xf32>
    %332 = arith.mulf %331, %293 : vector<8x32xf32>
    %333 = vector.extract_strided_slice %329 {offsets = [0, 0], sizes = [8, 32], strides = [1, 1]} : vector<8x256xf32> to vector<8x32xf32>
    %334 = vector.extract_strided_slice %330 {offsets = [0, 64], sizes = [8, 32], strides = [1, 1]} : vector<8x256xf32> to vector<8x32xf32>
    %335 = arith.mulf %333, %334 : vector<8x32xf32>
    %336 = arith.addf %332, %335 : vector<8x32xf32>
    %337 = vector.extract_strided_slice %329 {offsets = [0, 96], sizes = [8, 32], strides = [1, 1]} : vector<8x256xf32> to vector<8x32xf32>
    %338 = math.tanh %336 : vector<8x32xf32>
    %339 = arith.mulf %337, %338 : vector<8x32xf32>
    %340 = vector.extract_strided_slice %329 {offsets = [0, 160], sizes = [8, 32], strides = [1, 1]} : vector<8x256xf32> to vector<8x32xf32>
    %341 = arith.mulf %340, %302 : vector<8x32xf32>
    %342 = vector.extract_strided_slice %329 {offsets = [0, 128], sizes = [8, 32], strides = [1, 1]} : vector<8x256xf32> to vector<8x32xf32>
    %343 = vector.extract_strided_slice %330 {offsets = [0, 192], sizes = [8, 32], strides = [1, 1]} : vector<8x256xf32> to vector<8x32xf32>
    %344 = arith.mulf %342, %343 : vector<8x32xf32>
    %345 = arith.addf %341, %344 : vector<8x32xf32>
    %346 = vector.extract_strided_slice %329 {offsets = [0, 224], sizes = [8, 32], strides = [1, 1]} : vector<8x256xf32> to vector<8x32xf32>
    %347 = math.tanh %345 : vector<8x32xf32>
    %348 = arith.mulf %346, %347 : vector<8x32xf32>
    %349 = arith.index_cast %313 : i32 to index
    %c0_80 = arith.constant 0 : index
    %350 = vector.load %arg13[%349, %c0_80] : memref<64x32xf32, #tpu.memory_space<vmem>>, vector<8x32xf32>
    tpu.vector_store %arg13[%349, %c0_80], %339 {strides = array<i32>} : memref<64x32xf32, #tpu.memory_space<vmem>>, vector<8x32xf32>,
    %351 = arith.index_cast %316 : i32 to index
    %c0_81 = arith.constant 0 : index
    %352 = vector.load %arg14[%351, %c0_81] : memref<64x32xf32, #tpu.memory_space<vmem>>, vector<8x32xf32>
    tpu.vector_store %arg14[%351, %c0_81], %348 {strides = array<i32>} : memref<64x32xf32, #tpu.memory_space<vmem>>, vector<8x32xf32>,
    %353 = tpu.concatenate %339, %348 in 1 : vector<8x32xf32>, vector<8x32xf32> -> vector<8x64xf32>
    %c8_i32_82 = arith.constant 8 : i32
    %c0_83 = arith.constant 0 : index
    %c0_84 = arith.constant 0 : index
    %354 = vector.load %arg13[%c0_83, %c0_84] : memref<64x32xf32, #tpu.memory_space<vmem>>, vector<64x32xf32>
    %c0_85 = arith.constant 0 : index
    %c0_86 = arith.constant 0 : index
    %355 = vector.load %arg14[%c0_85, %c0_86] : memref<64x32xf32, #tpu.memory_space<vmem>>, vector<64x32xf32>
    %356 = tpu.concatenate %354, %355 in 1 : vector<64x32xf32>, vector<64x32xf32> -> vector<64x64xf32>
    %c0_87 = arith.constant 0 : index
    %c0_88 = arith.constant 0 : index
    %357 = vector.load %arg4[%c0_87, %c0_88] : memref<64x256xf32, #tpu.memory_space<vmem>>, vector<64x256xf32>
    %cst_89 = arith.constant dense<0.000000e+00> : vector<64x256xf32>
    %358 = tpu.matmul %356, %357, %cst_89 {dimension_numbers = #tpu.dot_dimension_numbers<[1], [0], [0], [1], [0, 0, 1, 1], [], []>} : vector<64x64xf32>, vector<64x256xf32>, vector<64x256xf32> -> vector<64x256xf32>
    %c0_90 = arith.constant 0 : index
    %c0_91 = arith.constant 0 : index
    %359 = vector.load %arg5[%c0_90, %c0_91] : memref<1x256xf32, #tpu.memory_space<vmem>>, vector<1x256xf32>
    %360 = vector.broadcast %359 : vector<1x256xf32> to vector<64x256xf32>
    %361 = arith.addf %358, %360 : vector<64x256xf32>
    %c0_92 = arith.constant 0 : index
    %c0_93 = arith.constant 0 : index
    %362 = vector.load %arg12[%c0_92, %c0_93] : memref<64x256xf32, #tpu.memory_space<vmem>>, vector<64x256xf32>
    tpu.vector_store %arg12[%c0_92, %c0_93], %361 {strides = array<i32>} : memref<64x256xf32, #tpu.memory_space<vmem>>, vector<64x256xf32>,
    %c0_94 = arith.constant 0 : index
    %c0_95 = arith.constant 0 : index
    %363 = vector.load %arg6[%c0_94, %c0_95] : memref<64x256xf32, #tpu.memory_space<vmem>>, vector<64x256xf32>
    %cst_96 = arith.constant 0.000000e+00 : f32
    %364 = vector.broadcast %cst_96 : f32 to vector<8x64xf32>
    %cst_97 = arith.constant 0.000000e+00 : f32
    %365 = vector.broadcast %cst_97 : f32 to vector<8x32xf32>
    %c0_i32_98 = arith.constant 0 : i32
    %cst_99 = arith.constant dense<0.000000e+00> : vector<8x256xf32>
    %366 = tpu.matmul %364, %363, %cst_99 {dimension_numbers = #tpu.dot_dimension_numbers<[1], [0], [0], [1], [0, 0, 1, 1], [], []>} : vector<8x64xf32>, vector<64x256xf32>, vector<8x256xf32> -> vector<8x256xf32>
    %c8_i32_100 = arith.constant 8 : i32
    %367 = arith.muli %c0_i32_98, %c8_i32_100 : i32
    %368 = tpu.assume_multiple %367, 8 : i32
    %c7_i32_101 = arith.constant 7 : i32
    %369 = arith.subi %c7_i32_101, %c0_i32_98 : i32
    %c8_i32_102 = arith.constant 8 : i32
    %370 = arith.muli %369, %c8_i32_102 : i32
    %371 = tpu.assume_multiple %370, 8 : i32
    %372 = arith.index_cast %368 : i32 to index
    %c0_103 = arith.constant 0 : index
    %373 = vector.load %arg12[%372, %c0_103] : memref<64x256xf32, #tpu.memory_space<vmem>>, vector<8x256xf32>
    %374 = vector.extract_strided_slice %373 {offsets = [0, 0], sizes = [8, 128], strides = [1, 1]} : vector<8x256xf32> to vector<8x128xf32>
    %375 = arith.index_cast %371 : i32 to index
    %c0_104 = arith.constant 0 : index
    %376 = vector.load %arg12[%375, %c0_104] : memref<64x256xf32, #tpu.memory_space<vmem>>, vector<8x256xf32>
    %377 = vector.extract_strided_slice %376 {offsets = [0, 128], sizes = [8, 128], strides = [1, 1]} : vector<8x256xf32> to vector<8x128xf32>
    %378 = tpu.concatenate %374, %377 in 1 : vector<8x128xf32>, vector<8x128xf32> -> vector<8x256xf32>
    %379 = arith.addf %378, %366 : vector<8x256xf32>
    %380 = arith.negf %379 : vector<8x256xf32>
    %381 = math.exp %380 : vector<8x256xf32>
    %cst_105 = arith.constant 1.000000e+00 : f32
    %382 = vector.broadcast %cst_105 : f32 to vector<8x256xf32>
    %383 = arith.addf %382, %381 : vector<8x256xf32>
    %384 = arith.divf %382, %383 : vector<8x256xf32>
    %385 = math.tanh %379 : vector<8x256xf32>
    %386 = vector.extract_strided_slice %384 {offsets = [0, 32], sizes = [8, 32], strides = [1, 1]} : vector<8x256xf32> to vector<8x32xf32>
    %387 = arith.mulf %386, %365 : vector<8x32xf32>
    %388 = vector.extract_strided_slice %384 {offsets = [0, 0], sizes = [8, 32], strides = [1, 1]} : vector<8x256xf32> to vector<8x32xf32>
    %389 = vector.extract_strided_slice %385 {offsets = [0, 64], sizes = [8, 32], strides = [1, 1]} : vector<8x256xf32> to vector<8x32xf32>
    %390 = arith.mulf %388, %389 : vector<8x32xf32>
    %391 = arith.addf %387, %390 : vector<8x32xf32>
    %392 = vector.extract_strided_slice %384 {offsets = [0, 96], sizes = [8, 32], strides = [1, 1]} : vector<8x256xf32> to vector<8x32xf32>
    %393 = math.tanh %391 : vector<8x32xf32>
    %394 = arith.mulf %392, %393 : vector<8x32xf32>
    %395 = vector.extract_strided_slice %384 {offsets = [0, 160], sizes = [8, 32], strides = [1, 1]} : vector<8x256xf32> to vector<8x32xf32>
    %396 = arith.mulf %395, %365 : vector<8x32xf32>
    %397 = vector.extract_strided_slice %384 {offsets = [0, 128], sizes = [8, 32], strides = [1, 1]} : vector<8x256xf32> to vector<8x32xf32>
    %398 = vector.extract_strided_slice %385 {offsets = [0, 192], sizes = [8, 32], strides = [1, 1]} : vector<8x256xf32> to vector<8x32xf32>
    %399 = arith.mulf %397, %398 : vector<8x32xf32>
    %400 = arith.addf %396, %399 : vector<8x32xf32>
    %401 = vector.extract_strided_slice %384 {offsets = [0, 224], sizes = [8, 32], strides = [1, 1]} : vector<8x256xf32> to vector<8x32xf32>
    %402 = math.tanh %400 : vector<8x32xf32>
    %403 = arith.mulf %401, %402 : vector<8x32xf32>
    %404 = arith.index_cast %368 : i32 to index
    %c0_106 = arith.constant 0 : index
    %405 = vector.load %arg13[%404, %c0_106] : memref<64x32xf32, #tpu.memory_space<vmem>>, vector<8x32xf32>
    tpu.vector_store %arg13[%404, %c0_106], %394 {strides = array<i32>} : memref<64x32xf32, #tpu.memory_space<vmem>>, vector<8x32xf32>,
    %406 = arith.index_cast %371 : i32 to index
    %c0_107 = arith.constant 0 : index
    %407 = vector.load %arg14[%406, %c0_107] : memref<64x32xf32, #tpu.memory_space<vmem>>, vector<8x32xf32>
    tpu.vector_store %arg14[%406, %c0_107], %403 {strides = array<i32>} : memref<64x32xf32, #tpu.memory_space<vmem>>, vector<8x32xf32>,
    %408 = tpu.concatenate %394, %403 in 1 : vector<8x32xf32>, vector<8x32xf32> -> vector<8x64xf32>
    %c1_i32_108 = arith.constant 1 : i32
    %cst_109 = arith.constant dense<0.000000e+00> : vector<8x256xf32>
    %409 = tpu.matmul %408, %363, %cst_109 {dimension_numbers = #tpu.dot_dimension_numbers<[1], [0], [0], [1], [0, 0, 1, 1], [], []>} : vector<8x64xf32>, vector<64x256xf32>, vector<8x256xf32> -> vector<8x256xf32>
    %c8_i32_110 = arith.constant 8 : i32
    %410 = arith.muli %c1_i32_108, %c8_i32_110 : i32
    %411 = tpu.assume_multiple %410, 8 : i32
    %c7_i32_111 = arith.constant 7 : i32
    %412 = arith.subi %c7_i32_111, %c1_i32_108 : i32
    %c8_i32_112 = arith.constant 8 : i32
    %413 = arith.muli %412, %c8_i32_112 : i32
    %414 = tpu.assume_multiple %413, 8 : i32
    %415 = arith.index_cast %411 : i32 to index
    %c0_113 = arith.constant 0 : index
    %416 = vector.load %arg12[%415, %c0_113] : memref<64x256xf32, #tpu.memory_space<vmem>>, vector<8x256xf32>
    %417 = vector.extract_strided_slice %416 {offsets = [0, 0], sizes = [8, 128], strides = [1, 1]} : vector<8x256xf32> to vector<8x128xf32>
    %418 = arith.index_cast %414 : i32 to index
    %c0_114 = arith.constant 0 : index
    %419 = vector.load %arg12[%418, %c0_114] : memref<64x256xf32, #tpu.memory_space<vmem>>, vector<8x256xf32>
    %420 = vector.extract_strided_slice %419 {offsets = [0, 128], sizes = [8, 128], strides = [1, 1]} : vector<8x256xf32> to vector<8x128xf32>
    %421 = tpu.concatenate %417, %420 in 1 : vector<8x128xf32>, vector<8x128xf32> -> vector<8x256xf32>
    %422 = arith.addf %421, %409 : vector<8x256xf32>
    %423 = arith.negf %422 : vector<8x256xf32>
    %424 = math.exp %423 : vector<8x256xf32>
    %cst_115 = arith.constant 1.000000e+00 : f32
    %425 = vector.broadcast %cst_115 : f32 to vector<8x256xf32>
    %426 = arith.addf %425, %424 : vector<8x256xf32>
    %427 = arith.divf %425, %426 : vector<8x256xf32>
    %428 = math.tanh %422 : vector<8x256xf32>
    %429 = vector.extract_strided_slice %427 {offsets = [0, 32], sizes = [8, 32], strides = [1, 1]} : vector<8x256xf32> to vector<8x32xf32>
    %430 = arith.mulf %429, %391 : vector<8x32xf32>
    %431 = vector.extract_strided_slice %427 {offsets = [0, 0], sizes = [8, 32], strides = [1, 1]} : vector<8x256xf32> to vector<8x32xf32>
    %432 = vector.extract_strided_slice %428 {offsets = [0, 64], sizes = [8, 32], strides = [1, 1]} : vector<8x256xf32> to vector<8x32xf32>
    %433 = arith.mulf %431, %432 : vector<8x32xf32>
    %434 = arith.addf %430, %433 : vector<8x32xf32>
    %435 = vector.extract_strided_slice %427 {offsets = [0, 96], sizes = [8, 32], strides = [1, 1]} : vector<8x256xf32> to vector<8x32xf32>
    %436 = math.tanh %434 : vector<8x32xf32>
    %437 = arith.mulf %435, %436 : vector<8x32xf32>
    %438 = vector.extract_strided_slice %427 {offsets = [0, 160], sizes = [8, 32], strides = [1, 1]} : vector<8x256xf32> to vector<8x32xf32>
    %439 = arith.mulf %438, %400 : vector<8x32xf32>
    %440 = vector.extract_strided_slice %427 {offsets = [0, 128], sizes = [8, 32], strides = [1, 1]} : vector<8x256xf32> to vector<8x32xf32>
    %441 = vector.extract_strided_slice %428 {offsets = [0, 192], sizes = [8, 32], strides = [1, 1]} : vector<8x256xf32> to vector<8x32xf32>
    %442 = arith.mulf %440, %441 : vector<8x32xf32>
    %443 = arith.addf %439, %442 : vector<8x32xf32>
    %444 = vector.extract_strided_slice %427 {offsets = [0, 224], sizes = [8, 32], strides = [1, 1]} : vector<8x256xf32> to vector<8x32xf32>
    %445 = math.tanh %443 : vector<8x32xf32>
    %446 = arith.mulf %444, %445 : vector<8x32xf32>
    %447 = arith.index_cast %411 : i32 to index
    %c0_116 = arith.constant 0 : index
    %448 = vector.load %arg13[%447, %c0_116] : memref<64x32xf32, #tpu.memory_space<vmem>>, vector<8x32xf32>
    tpu.vector_store %arg13[%447, %c0_116], %437 {strides = array<i32>} : memref<64x32xf32, #tpu.memory_space<vmem>>, vector<8x32xf32>,
    %449 = arith.index_cast %414 : i32 to index
    %c0_117 = arith.constant 0 : index
    %450 = vector.load %arg14[%449, %c0_117] : memref<64x32xf32, #tpu.memory_space<vmem>>, vector<8x32xf32>
    tpu.vector_store %arg14[%449, %c0_117], %446 {strides = array<i32>} : memref<64x32xf32, #tpu.memory_space<vmem>>, vector<8x32xf32>,
    %451 = tpu.concatenate %437, %446 in 1 : vector<8x32xf32>, vector<8x32xf32> -> vector<8x64xf32>
    %c2_i32_118 = arith.constant 2 : i32
    %cst_119 = arith.constant dense<0.000000e+00> : vector<8x256xf32>
    %452 = tpu.matmul %451, %363, %cst_119 {dimension_numbers = #tpu.dot_dimension_numbers<[1], [0], [0], [1], [0, 0, 1, 1], [], []>} : vector<8x64xf32>, vector<64x256xf32>, vector<8x256xf32> -> vector<8x256xf32>
    %c8_i32_120 = arith.constant 8 : i32
    %453 = arith.muli %c2_i32_118, %c8_i32_120 : i32
    %454 = tpu.assume_multiple %453, 8 : i32
    %c7_i32_121 = arith.constant 7 : i32
    %455 = arith.subi %c7_i32_121, %c2_i32_118 : i32
    %c8_i32_122 = arith.constant 8 : i32
    %456 = arith.muli %455, %c8_i32_122 : i32
    %457 = tpu.assume_multiple %456, 8 : i32
    %458 = arith.index_cast %454 : i32 to index
    %c0_123 = arith.constant 0 : index
    %459 = vector.load %arg12[%458, %c0_123] : memref<64x256xf32, #tpu.memory_space<vmem>>, vector<8x256xf32>
    %460 = vector.extract_strided_slice %459 {offsets = [0, 0], sizes = [8, 128], strides = [1, 1]} : vector<8x256xf32> to vector<8x128xf32>
    %461 = arith.index_cast %457 : i32 to index
    %c0_124 = arith.constant 0 : index
    %462 = vector.load %arg12[%461, %c0_124] : memref<64x256xf32, #tpu.memory_space<vmem>>, vector<8x256xf32>
    %463 = vector.extract_strided_slice %462 {offsets = [0, 128], sizes = [8, 128], strides = [1, 1]} : vector<8x256xf32> to vector<8x128xf32>
    %464 = tpu.concatenate %460, %463 in 1 : vector<8x128xf32>, vector<8x128xf32> -> vector<8x256xf32>
    %465 = arith.addf %464, %452 : vector<8x256xf32>
    %466 = arith.negf %465 : vector<8x256xf32>
    %467 = math.exp %466 : vector<8x256xf32>
    %cst_125 = arith.constant 1.000000e+00 : f32
    %468 = vector.broadcast %cst_125 : f32 to vector<8x256xf32>
    %469 = arith.addf %468, %467 : vector<8x256xf32>
    %470 = arith.divf %468, %469 : vector<8x256xf32>
    %471 = math.tanh %465 : vector<8x256xf32>
    %472 = vector.extract_strided_slice %470 {offsets = [0, 32], sizes = [8, 32], strides = [1, 1]} : vector<8x256xf32> to vector<8x32xf32>
    %473 = arith.mulf %472, %434 : vector<8x32xf32>
    %474 = vector.extract_strided_slice %470 {offsets = [0, 0], sizes = [8, 32], strides = [1, 1]} : vector<8x256xf32> to vector<8x32xf32>
    %475 = vector.extract_strided_slice %471 {offsets = [0, 64], sizes = [8, 32], strides = [1, 1]} : vector<8x256xf32> to vector<8x32xf32>
    %476 = arith.mulf %474, %475 : vector<8x32xf32>
    %477 = arith.addf %473, %476 : vector<8x32xf32>
    %478 = vector.extract_strided_slice %470 {offsets = [0, 96], sizes = [8, 32], strides = [1, 1]} : vector<8x256xf32> to vector<8x32xf32>
    %479 = math.tanh %477 : vector<8x32xf32>
    %480 = arith.mulf %478, %479 : vector<8x32xf32>
    %481 = vector.extract_strided_slice %470 {offsets = [0, 160], sizes = [8, 32], strides = [1, 1]} : vector<8x256xf32> to vector<8x32xf32>
    %482 = arith.mulf %481, %443 : vector<8x32xf32>
    %483 = vector.extract_strided_slice %470 {offsets = [0, 128], sizes = [8, 32], strides = [1, 1]} : vector<8x256xf32> to vector<8x32xf32>
    %484 = vector.extract_strided_slice %471 {offsets = [0, 192], sizes = [8, 32], strides = [1, 1]} : vector<8x256xf32> to vector<8x32xf32>
    %485 = arith.mulf %483, %484 : vector<8x32xf32>
    %486 = arith.addf %482, %485 : vector<8x32xf32>
    %487 = vector.extract_strided_slice %470 {offsets = [0, 224], sizes = [8, 32], strides = [1, 1]} : vector<8x256xf32> to vector<8x32xf32>
    %488 = math.tanh %486 : vector<8x32xf32>
    %489 = arith.mulf %487, %488 : vector<8x32xf32>
    %490 = arith.index_cast %454 : i32 to index
    %c0_126 = arith.constant 0 : index
    %491 = vector.load %arg13[%490, %c0_126] : memref<64x32xf32, #tpu.memory_space<vmem>>, vector<8x32xf32>
    tpu.vector_store %arg13[%490, %c0_126], %480 {strides = array<i32>} : memref<64x32xf32, #tpu.memory_space<vmem>>, vector<8x32xf32>,
    %492 = arith.index_cast %457 : i32 to index
    %c0_127 = arith.constant 0 : index
    %493 = vector.load %arg14[%492, %c0_127] : memref<64x32xf32, #tpu.memory_space<vmem>>, vector<8x32xf32>
    tpu.vector_store %arg14[%492, %c0_127], %489 {strides = array<i32>} : memref<64x32xf32, #tpu.memory_space<vmem>>, vector<8x32xf32>,
    %494 = tpu.concatenate %480, %489 in 1 : vector<8x32xf32>, vector<8x32xf32> -> vector<8x64xf32>
    %c3_i32_128 = arith.constant 3 : i32
    %cst_129 = arith.constant dense<0.000000e+00> : vector<8x256xf32>
    %495 = tpu.matmul %494, %363, %cst_129 {dimension_numbers = #tpu.dot_dimension_numbers<[1], [0], [0], [1], [0, 0, 1, 1], [], []>} : vector<8x64xf32>, vector<64x256xf32>, vector<8x256xf32> -> vector<8x256xf32>
    %c8_i32_130 = arith.constant 8 : i32
    %496 = arith.muli %c3_i32_128, %c8_i32_130 : i32
    %497 = tpu.assume_multiple %496, 8 : i32
    %c7_i32_131 = arith.constant 7 : i32
    %498 = arith.subi %c7_i32_131, %c3_i32_128 : i32
    %c8_i32_132 = arith.constant 8 : i32
    %499 = arith.muli %498, %c8_i32_132 : i32
    %500 = tpu.assume_multiple %499, 8 : i32
    %501 = arith.index_cast %497 : i32 to index
    %c0_133 = arith.constant 0 : index
    %502 = vector.load %arg12[%501, %c0_133] : memref<64x256xf32, #tpu.memory_space<vmem>>, vector<8x256xf32>
    %503 = vector.extract_strided_slice %502 {offsets = [0, 0], sizes = [8, 128], strides = [1, 1]} : vector<8x256xf32> to vector<8x128xf32>
    %504 = arith.index_cast %500 : i32 to index
    %c0_134 = arith.constant 0 : index
    %505 = vector.load %arg12[%504, %c0_134] : memref<64x256xf32, #tpu.memory_space<vmem>>, vector<8x256xf32>
    %506 = vector.extract_strided_slice %505 {offsets = [0, 128], sizes = [8, 128], strides = [1, 1]} : vector<8x256xf32> to vector<8x128xf32>
    %507 = tpu.concatenate %503, %506 in 1 : vector<8x128xf32>, vector<8x128xf32> -> vector<8x256xf32>
    %508 = arith.addf %507, %495 : vector<8x256xf32>
    %509 = arith.negf %508 : vector<8x256xf32>
    %510 = math.exp %509 : vector<8x256xf32>
    %cst_135 = arith.constant 1.000000e+00 : f32
    %511 = vector.broadcast %cst_135 : f32 to vector<8x256xf32>
    %512 = arith.addf %511, %510 : vector<8x256xf32>
    %513 = arith.divf %511, %512 : vector<8x256xf32>
    %514 = math.tanh %508 : vector<8x256xf32>
    %515 = vector.extract_strided_slice %513 {offsets = [0, 32], sizes = [8, 32], strides = [1, 1]} : vector<8x256xf32> to vector<8x32xf32>
    %516 = arith.mulf %515, %477 : vector<8x32xf32>
    %517 = vector.extract_strided_slice %513 {offsets = [0, 0], sizes = [8, 32], strides = [1, 1]} : vector<8x256xf32> to vector<8x32xf32>
    %518 = vector.extract_strided_slice %514 {offsets = [0, 64], sizes = [8, 32], strides = [1, 1]} : vector<8x256xf32> to vector<8x32xf32>
    %519 = arith.mulf %517, %518 : vector<8x32xf32>
    %520 = arith.addf %516, %519 : vector<8x32xf32>
    %521 = vector.extract_strided_slice %513 {offsets = [0, 96], sizes = [8, 32], strides = [1, 1]} : vector<8x256xf32> to vector<8x32xf32>
    %522 = math.tanh %520 : vector<8x32xf32>
    %523 = arith.mulf %521, %522 : vector<8x32xf32>
    %524 = vector.extract_strided_slice %513 {offsets = [0, 160], sizes = [8, 32], strides = [1, 1]} : vector<8x256xf32> to vector<8x32xf32>
    %525 = arith.mulf %524, %486 : vector<8x32xf32>
    %526 = vector.extract_strided_slice %513 {offsets = [0, 128], sizes = [8, 32], strides = [1, 1]} : vector<8x256xf32> to vector<8x32xf32>
    %527 = vector.extract_strided_slice %514 {offsets = [0, 192], sizes = [8, 32], strides = [1, 1]} : vector<8x256xf32> to vector<8x32xf32>
    %528 = arith.mulf %526, %527 : vector<8x32xf32>
    %529 = arith.addf %525, %528 : vector<8x32xf32>
    %530 = vector.extract_strided_slice %513 {offsets = [0, 224], sizes = [8, 32], strides = [1, 1]} : vector<8x256xf32> to vector<8x32xf32>
    %531 = math.tanh %529 : vector<8x32xf32>
    %532 = arith.mulf %530, %531 : vector<8x32xf32>
    %533 = arith.index_cast %497 : i32 to index
    %c0_136 = arith.constant 0 : index
    %534 = vector.load %arg13[%533, %c0_136] : memref<64x32xf32, #tpu.memory_space<vmem>>, vector<8x32xf32>
    tpu.vector_store %arg13[%533, %c0_136], %523 {strides = array<i32>} : memref<64x32xf32, #tpu.memory_space<vmem>>, vector<8x32xf32>,
    %535 = arith.index_cast %500 : i32 to index
    %c0_137 = arith.constant 0 : index
    %536 = vector.load %arg14[%535, %c0_137] : memref<64x32xf32, #tpu.memory_space<vmem>>, vector<8x32xf32>
    tpu.vector_store %arg14[%535, %c0_137], %532 {strides = array<i32>} : memref<64x32xf32, #tpu.memory_space<vmem>>, vector<8x32xf32>,
    %537 = tpu.concatenate %523, %532 in 1 : vector<8x32xf32>, vector<8x32xf32> -> vector<8x64xf32>
    %c4_i32_138 = arith.constant 4 : i32
    %cst_139 = arith.constant dense<0.000000e+00> : vector<8x256xf32>
    %538 = tpu.matmul %537, %363, %cst_139 {dimension_numbers = #tpu.dot_dimension_numbers<[1], [0], [0], [1], [0, 0, 1, 1], [], []>} : vector<8x64xf32>, vector<64x256xf32>, vector<8x256xf32> -> vector<8x256xf32>
    %c8_i32_140 = arith.constant 8 : i32
    %539 = arith.muli %c4_i32_138, %c8_i32_140 : i32
    %540 = tpu.assume_multiple %539, 8 : i32
    %c7_i32_141 = arith.constant 7 : i32
    %541 = arith.subi %c7_i32_141, %c4_i32_138 : i32
    %c8_i32_142 = arith.constant 8 : i32
    %542 = arith.muli %541, %c8_i32_142 : i32
    %543 = tpu.assume_multiple %542, 8 : i32
    %544 = arith.index_cast %540 : i32 to index
    %c0_143 = arith.constant 0 : index
    %545 = vector.load %arg12[%544, %c0_143] : memref<64x256xf32, #tpu.memory_space<vmem>>, vector<8x256xf32>
    %546 = vector.extract_strided_slice %545 {offsets = [0, 0], sizes = [8, 128], strides = [1, 1]} : vector<8x256xf32> to vector<8x128xf32>
    %547 = arith.index_cast %543 : i32 to index
    %c0_144 = arith.constant 0 : index
    %548 = vector.load %arg12[%547, %c0_144] : memref<64x256xf32, #tpu.memory_space<vmem>>, vector<8x256xf32>
    %549 = vector.extract_strided_slice %548 {offsets = [0, 128], sizes = [8, 128], strides = [1, 1]} : vector<8x256xf32> to vector<8x128xf32>
    %550 = tpu.concatenate %546, %549 in 1 : vector<8x128xf32>, vector<8x128xf32> -> vector<8x256xf32>
    %551 = arith.addf %550, %538 : vector<8x256xf32>
    %552 = arith.negf %551 : vector<8x256xf32>
    %553 = math.exp %552 : vector<8x256xf32>
    %cst_145 = arith.constant 1.000000e+00 : f32
    %554 = vector.broadcast %cst_145 : f32 to vector<8x256xf32>
    %555 = arith.addf %554, %553 : vector<8x256xf32>
    %556 = arith.divf %554, %555 : vector<8x256xf32>
    %557 = math.tanh %551 : vector<8x256xf32>
    %558 = vector.extract_strided_slice %556 {offsets = [0, 32], sizes = [8, 32], strides = [1, 1]} : vector<8x256xf32> to vector<8x32xf32>
    %559 = arith.mulf %558, %520 : vector<8x32xf32>
    %560 = vector.extract_strided_slice %556 {offsets = [0, 0], sizes = [8, 32], strides = [1, 1]} : vector<8x256xf32> to vector<8x32xf32>
    %561 = vector.extract_strided_slice %557 {offsets = [0, 64], sizes = [8, 32], strides = [1, 1]} : vector<8x256xf32> to vector<8x32xf32>
    %562 = arith.mulf %560, %561 : vector<8x32xf32>
    %563 = arith.addf %559, %562 : vector<8x32xf32>
    %564 = vector.extract_strided_slice %556 {offsets = [0, 96], sizes = [8, 32], strides = [1, 1]} : vector<8x256xf32> to vector<8x32xf32>
    %565 = math.tanh %563 : vector<8x32xf32>
    %566 = arith.mulf %564, %565 : vector<8x32xf32>
    %567 = vector.extract_strided_slice %556 {offsets = [0, 160], sizes = [8, 32], strides = [1, 1]} : vector<8x256xf32> to vector<8x32xf32>
    %568 = arith.mulf %567, %529 : vector<8x32xf32>
    %569 = vector.extract_strided_slice %556 {offsets = [0, 128], sizes = [8, 32], strides = [1, 1]} : vector<8x256xf32> to vector<8x32xf32>
    %570 = vector.extract_strided_slice %557 {offsets = [0, 192], sizes = [8, 32], strides = [1, 1]} : vector<8x256xf32> to vector<8x32xf32>
    %571 = arith.mulf %569, %570 : vector<8x32xf32>
    %572 = arith.addf %568, %571 : vector<8x32xf32>
    %573 = vector.extract_strided_slice %556 {offsets = [0, 224], sizes = [8, 32], strides = [1, 1]} : vector<8x256xf32> to vector<8x32xf32>
    %574 = math.tanh %572 : vector<8x32xf32>
    %575 = arith.mulf %573, %574 : vector<8x32xf32>
    %576 = arith.index_cast %540 : i32 to index
    %c0_146 = arith.constant 0 : index
    %577 = vector.load %arg13[%576, %c0_146] : memref<64x32xf32, #tpu.memory_space<vmem>>, vector<8x32xf32>
    tpu.vector_store %arg13[%576, %c0_146], %566 {strides = array<i32>} : memref<64x32xf32, #tpu.memory_space<vmem>>, vector<8x32xf32>,
    %578 = arith.index_cast %543 : i32 to index
    %c0_147 = arith.constant 0 : index
    %579 = vector.load %arg14[%578, %c0_147] : memref<64x32xf32, #tpu.memory_space<vmem>>, vector<8x32xf32>
    tpu.vector_store %arg14[%578, %c0_147], %575 {strides = array<i32>} : memref<64x32xf32, #tpu.memory_space<vmem>>, vector<8x32xf32>,
    %580 = tpu.concatenate %566, %575 in 1 : vector<8x32xf32>, vector<8x32xf32> -> vector<8x64xf32>
    %c5_i32_148 = arith.constant 5 : i32
    %cst_149 = arith.constant dense<0.000000e+00> : vector<8x256xf32>
    %581 = tpu.matmul %580, %363, %cst_149 {dimension_numbers = #tpu.dot_dimension_numbers<[1], [0], [0], [1], [0, 0, 1, 1], [], []>} : vector<8x64xf32>, vector<64x256xf32>, vector<8x256xf32> -> vector<8x256xf32>
    %c8_i32_150 = arith.constant 8 : i32
    %582 = arith.muli %c5_i32_148, %c8_i32_150 : i32
    %583 = tpu.assume_multiple %582, 8 : i32
    %c7_i32_151 = arith.constant 7 : i32
    %584 = arith.subi %c7_i32_151, %c5_i32_148 : i32
    %c8_i32_152 = arith.constant 8 : i32
    %585 = arith.muli %584, %c8_i32_152 : i32
    %586 = tpu.assume_multiple %585, 8 : i32
    %587 = arith.index_cast %583 : i32 to index
    %c0_153 = arith.constant 0 : index
    %588 = vector.load %arg12[%587, %c0_153] : memref<64x256xf32, #tpu.memory_space<vmem>>, vector<8x256xf32>
    %589 = vector.extract_strided_slice %588 {offsets = [0, 0], sizes = [8, 128], strides = [1, 1]} : vector<8x256xf32> to vector<8x128xf32>
    %590 = arith.index_cast %586 : i32 to index
    %c0_154 = arith.constant 0 : index
    %591 = vector.load %arg12[%590, %c0_154] : memref<64x256xf32, #tpu.memory_space<vmem>>, vector<8x256xf32>
    %592 = vector.extract_strided_slice %591 {offsets = [0, 128], sizes = [8, 128], strides = [1, 1]} : vector<8x256xf32> to vector<8x128xf32>
    %593 = tpu.concatenate %589, %592 in 1 : vector<8x128xf32>, vector<8x128xf32> -> vector<8x256xf32>
    %594 = arith.addf %593, %581 : vector<8x256xf32>
    %595 = arith.negf %594 : vector<8x256xf32>
    %596 = math.exp %595 : vector<8x256xf32>
    %cst_155 = arith.constant 1.000000e+00 : f32
    %597 = vector.broadcast %cst_155 : f32 to vector<8x256xf32>
    %598 = arith.addf %597, %596 : vector<8x256xf32>
    %599 = arith.divf %597, %598 : vector<8x256xf32>
    %600 = math.tanh %594 : vector<8x256xf32>
    %601 = vector.extract_strided_slice %599 {offsets = [0, 32], sizes = [8, 32], strides = [1, 1]} : vector<8x256xf32> to vector<8x32xf32>
    %602 = arith.mulf %601, %563 : vector<8x32xf32>
    %603 = vector.extract_strided_slice %599 {offsets = [0, 0], sizes = [8, 32], strides = [1, 1]} : vector<8x256xf32> to vector<8x32xf32>
    %604 = vector.extract_strided_slice %600 {offsets = [0, 64], sizes = [8, 32], strides = [1, 1]} : vector<8x256xf32> to vector<8x32xf32>
    %605 = arith.mulf %603, %604 : vector<8x32xf32>
    %606 = arith.addf %602, %605 : vector<8x32xf32>
    %607 = vector.extract_strided_slice %599 {offsets = [0, 96], sizes = [8, 32], strides = [1, 1]} : vector<8x256xf32> to vector<8x32xf32>
    %608 = math.tanh %606 : vector<8x32xf32>
    %609 = arith.mulf %607, %608 : vector<8x32xf32>
    %610 = vector.extract_strided_slice %599 {offsets = [0, 160], sizes = [8, 32], strides = [1, 1]} : vector<8x256xf32> to vector<8x32xf32>
    %611 = arith.mulf %610, %572 : vector<8x32xf32>
    %612 = vector.extract_strided_slice %599 {offsets = [0, 128], sizes = [8, 32], strides = [1, 1]} : vector<8x256xf32> to vector<8x32xf32>
    %613 = vector.extract_strided_slice %600 {offsets = [0, 192], sizes = [8, 32], strides = [1, 1]} : vector<8x256xf32> to vector<8x32xf32>
    %614 = arith.mulf %612, %613 : vector<8x32xf32>
    %615 = arith.addf %611, %614 : vector<8x32xf32>
    %616 = vector.extract_strided_slice %599 {offsets = [0, 224], sizes = [8, 32], strides = [1, 1]} : vector<8x256xf32> to vector<8x32xf32>
    %617 = math.tanh %615 : vector<8x32xf32>
    %618 = arith.mulf %616, %617 : vector<8x32xf32>
    %619 = arith.index_cast %583 : i32 to index
    %c0_156 = arith.constant 0 : index
    %620 = vector.load %arg13[%619, %c0_156] : memref<64x32xf32, #tpu.memory_space<vmem>>, vector<8x32xf32>
    tpu.vector_store %arg13[%619, %c0_156], %609 {strides = array<i32>} : memref<64x32xf32, #tpu.memory_space<vmem>>, vector<8x32xf32>,
    %621 = arith.index_cast %586 : i32 to index
    %c0_157 = arith.constant 0 : index
    %622 = vector.load %arg14[%621, %c0_157] : memref<64x32xf32, #tpu.memory_space<vmem>>, vector<8x32xf32>
    tpu.vector_store %arg14[%621, %c0_157], %618 {strides = array<i32>} : memref<64x32xf32, #tpu.memory_space<vmem>>, vector<8x32xf32>,
    %623 = tpu.concatenate %609, %618 in 1 : vector<8x32xf32>, vector<8x32xf32> -> vector<8x64xf32>
    %c6_i32_158 = arith.constant 6 : i32
    %cst_159 = arith.constant dense<0.000000e+00> : vector<8x256xf32>
    %624 = tpu.matmul %623, %363, %cst_159 {dimension_numbers = #tpu.dot_dimension_numbers<[1], [0], [0], [1], [0, 0, 1, 1], [], []>} : vector<8x64xf32>, vector<64x256xf32>, vector<8x256xf32> -> vector<8x256xf32>
    %c8_i32_160 = arith.constant 8 : i32
    %625 = arith.muli %c6_i32_158, %c8_i32_160 : i32
    %626 = tpu.assume_multiple %625, 8 : i32
    %c7_i32_161 = arith.constant 7 : i32
    %627 = arith.subi %c7_i32_161, %c6_i32_158 : i32
    %c8_i32_162 = arith.constant 8 : i32
    %628 = arith.muli %627, %c8_i32_162 : i32
    %629 = tpu.assume_multiple %628, 8 : i32
    %630 = arith.index_cast %626 : i32 to index
    %c0_163 = arith.constant 0 : index
    %631 = vector.load %arg12[%630, %c0_163] : memref<64x256xf32, #tpu.memory_space<vmem>>, vector<8x256xf32>
    %632 = vector.extract_strided_slice %631 {offsets = [0, 0], sizes = [8, 128], strides = [1, 1]} : vector<8x256xf32> to vector<8x128xf32>
    %633 = arith.index_cast %629 : i32 to index
    %c0_164 = arith.constant 0 : index
    %634 = vector.load %arg12[%633, %c0_164] : memref<64x256xf32, #tpu.memory_space<vmem>>, vector<8x256xf32>
    %635 = vector.extract_strided_slice %634 {offsets = [0, 128], sizes = [8, 128], strides = [1, 1]} : vector<8x256xf32> to vector<8x128xf32>
    %636 = tpu.concatenate %632, %635 in 1 : vector<8x128xf32>, vector<8x128xf32> -> vector<8x256xf32>
    %637 = arith.addf %636, %624 : vector<8x256xf32>
    %638 = arith.negf %637 : vector<8x256xf32>
    %639 = math.exp %638 : vector<8x256xf32>
    %cst_165 = arith.constant 1.000000e+00 : f32
    %640 = vector.broadcast %cst_165 : f32 to vector<8x256xf32>
    %641 = arith.addf %640, %639 : vector<8x256xf32>
    %642 = arith.divf %640, %641 : vector<8x256xf32>
    %643 = math.tanh %637 : vector<8x256xf32>
    %644 = vector.extract_strided_slice %642 {offsets = [0, 32], sizes = [8, 32], strides = [1, 1]} : vector<8x256xf32> to vector<8x32xf32>
    %645 = arith.mulf %644, %606 : vector<8x32xf32>
    %646 = vector.extract_strided_slice %642 {offsets = [0, 0], sizes = [8, 32], strides = [1, 1]} : vector<8x256xf32> to vector<8x32xf32>
    %647 = vector.extract_strided_slice %643 {offsets = [0, 64], sizes = [8, 32], strides = [1, 1]} : vector<8x256xf32> to vector<8x32xf32>
    %648 = arith.mulf %646, %647 : vector<8x32xf32>
    %649 = arith.addf %645, %648 : vector<8x32xf32>
    %650 = vector.extract_strided_slice %642 {offsets = [0, 96], sizes = [8, 32], strides = [1, 1]} : vector<8x256xf32> to vector<8x32xf32>
    %651 = math.tanh %649 : vector<8x32xf32>
    %652 = arith.mulf %650, %651 : vector<8x32xf32>
    %653 = vector.extract_strided_slice %642 {offsets = [0, 160], sizes = [8, 32], strides = [1, 1]} : vector<8x256xf32> to vector<8x32xf32>
    %654 = arith.mulf %653, %615 : vector<8x32xf32>
    %655 = vector.extract_strided_slice %642 {offsets = [0, 128], sizes = [8, 32], strides = [1, 1]} : vector<8x256xf32> to vector<8x32xf32>
    %656 = vector.extract_strided_slice %643 {offsets = [0, 192], sizes = [8, 32], strides = [1, 1]} : vector<8x256xf32> to vector<8x32xf32>
    %657 = arith.mulf %655, %656 : vector<8x32xf32>
    %658 = arith.addf %654, %657 : vector<8x32xf32>
    %659 = vector.extract_strided_slice %642 {offsets = [0, 224], sizes = [8, 32], strides = [1, 1]} : vector<8x256xf32> to vector<8x32xf32>
    %660 = math.tanh %658 : vector<8x32xf32>
    %661 = arith.mulf %659, %660 : vector<8x32xf32>
    %662 = arith.index_cast %626 : i32 to index
    %c0_166 = arith.constant 0 : index
    %663 = vector.load %arg13[%662, %c0_166] : memref<64x32xf32, #tpu.memory_space<vmem>>, vector<8x32xf32>
    tpu.vector_store %arg13[%662, %c0_166], %652 {strides = array<i32>} : memref<64x32xf32, #tpu.memory_space<vmem>>, vector<8x32xf32>,
    %664 = arith.index_cast %629 : i32 to index
    %c0_167 = arith.constant 0 : index
    %665 = vector.load %arg14[%664, %c0_167] : memref<64x32xf32, #tpu.memory_space<vmem>>, vector<8x32xf32>
    tpu.vector_store %arg14[%664, %c0_167], %661 {strides = array<i32>} : memref<64x32xf32, #tpu.memory_space<vmem>>, vector<8x32xf32>,
    %666 = tpu.concatenate %652, %661 in 1 : vector<8x32xf32>, vector<8x32xf32> -> vector<8x64xf32>
    %c7_i32_168 = arith.constant 7 : i32
    %cst_169 = arith.constant dense<0.000000e+00> : vector<8x256xf32>
    %667 = tpu.matmul %666, %363, %cst_169 {dimension_numbers = #tpu.dot_dimension_numbers<[1], [0], [0], [1], [0, 0, 1, 1], [], []>} : vector<8x64xf32>, vector<64x256xf32>, vector<8x256xf32> -> vector<8x256xf32>
    %c8_i32_170 = arith.constant 8 : i32
    %668 = arith.muli %c7_i32_168, %c8_i32_170 : i32
    %669 = tpu.assume_multiple %668, 8 : i32
    %c7_i32_171 = arith.constant 7 : i32
    %670 = arith.subi %c7_i32_171, %c7_i32_168 : i32
    %c8_i32_172 = arith.constant 8 : i32
    %671 = arith.muli %670, %c8_i32_172 : i32
    %672 = tpu.assume_multiple %671, 8 : i32
    %673 = arith.index_cast %669 : i32 to index
    %c0_173 = arith.constant 0 : index
    %674 = vector.load %arg12[%673, %c0_173] : memref<64x256xf32, #tpu.memory_space<vmem>>, vector<8x256xf32>
    %675 = vector.extract_strided_slice %674 {offsets = [0, 0], sizes = [8, 128], strides = [1, 1]} : vector<8x256xf32> to vector<8x128xf32>
    %676 = arith.index_cast %672 : i32 to index
    %c0_174 = arith.constant 0 : index
    %677 = vector.load %arg12[%676, %c0_174] : memref<64x256xf32, #tpu.memory_space<vmem>>, vector<8x256xf32>
    %678 = vector.extract_strided_slice %677 {offsets = [0, 128], sizes = [8, 128], strides = [1, 1]} : vector<8x256xf32> to vector<8x128xf32>
    %679 = tpu.concatenate %675, %678 in 1 : vector<8x128xf32>, vector<8x128xf32> -> vector<8x256xf32>
    %680 = arith.addf %679, %667 : vector<8x256xf32>
    %681 = arith.negf %680 : vector<8x256xf32>
    %682 = math.exp %681 : vector<8x256xf32>
    %cst_175 = arith.constant 1.000000e+00 : f32
    %683 = vector.broadcast %cst_175 : f32 to vector<8x256xf32>
    %684 = arith.addf %683, %682 : vector<8x256xf32>
    %685 = arith.divf %683, %684 : vector<8x256xf32>
    %686 = math.tanh %680 : vector<8x256xf32>
    %687 = vector.extract_strided_slice %685 {offsets = [0, 32], sizes = [8, 32], strides = [1, 1]} : vector<8x256xf32> to vector<8x32xf32>
    %688 = arith.mulf %687, %649 : vector<8x32xf32>
    %689 = vector.extract_strided_slice %685 {offsets = [0, 0], sizes = [8, 32], strides = [1, 1]} : vector<8x256xf32> to vector<8x32xf32>
    %690 = vector.extract_strided_slice %686 {offsets = [0, 64], sizes = [8, 32], strides = [1, 1]} : vector<8x256xf32> to vector<8x32xf32>
    %691 = arith.mulf %689, %690 : vector<8x32xf32>
    %692 = arith.addf %688, %691 : vector<8x32xf32>
    %693 = vector.extract_strided_slice %685 {offsets = [0, 96], sizes = [8, 32], strides = [1, 1]} : vector<8x256xf32> to vector<8x32xf32>
    %694 = math.tanh %692 : vector<8x32xf32>
    %695 = arith.mulf %693, %694 : vector<8x32xf32>
    %696 = vector.extract_strided_slice %685 {offsets = [0, 160], sizes = [8, 32], strides = [1, 1]} : vector<8x256xf32> to vector<8x32xf32>
    %697 = arith.mulf %696, %658 : vector<8x32xf32>
    %698 = vector.extract_strided_slice %685 {offsets = [0, 128], sizes = [8, 32], strides = [1, 1]} : vector<8x256xf32> to vector<8x32xf32>
    %699 = vector.extract_strided_slice %686 {offsets = [0, 192], sizes = [8, 32], strides = [1, 1]} : vector<8x256xf32> to vector<8x32xf32>
    %700 = arith.mulf %698, %699 : vector<8x32xf32>
    %701 = arith.addf %697, %700 : vector<8x32xf32>
    %702 = vector.extract_strided_slice %685 {offsets = [0, 224], sizes = [8, 32], strides = [1, 1]} : vector<8x256xf32> to vector<8x32xf32>
    %703 = math.tanh %701 : vector<8x32xf32>
    %704 = arith.mulf %702, %703 : vector<8x32xf32>
    %705 = arith.index_cast %669 : i32 to index
    %c0_176 = arith.constant 0 : index
    %706 = vector.load %arg13[%705, %c0_176] : memref<64x32xf32, #tpu.memory_space<vmem>>, vector<8x32xf32>
    tpu.vector_store %arg13[%705, %c0_176], %695 {strides = array<i32>} : memref<64x32xf32, #tpu.memory_space<vmem>>, vector<8x32xf32>,
    %707 = arith.index_cast %672 : i32 to index
    %c0_177 = arith.constant 0 : index
    %708 = vector.load %arg14[%707, %c0_177] : memref<64x32xf32, #tpu.memory_space<vmem>>, vector<8x32xf32>
    tpu.vector_store %arg14[%707, %c0_177], %704 {strides = array<i32>} : memref<64x32xf32, #tpu.memory_space<vmem>>, vector<8x32xf32>,
    %709 = tpu.concatenate %695, %704 in 1 : vector<8x32xf32>, vector<8x32xf32> -> vector<8x64xf32>
    %c8_i32_178 = arith.constant 8 : i32
    %c0_179 = arith.constant 0 : index
    %c0_180 = arith.constant 0 : index
    %710 = vector.load %arg13[%c0_179, %c0_180] : memref<64x32xf32, #tpu.memory_space<vmem>>, vector<64x32xf32>
    %c0_181 = arith.constant 0 : index
    %c0_182 = arith.constant 0 : index
    %711 = vector.load %arg14[%c0_181, %c0_182] : memref<64x32xf32, #tpu.memory_space<vmem>>, vector<64x32xf32>
    %712 = tpu.concatenate %710, %711 in 1 : vector<64x32xf32>, vector<64x32xf32> -> vector<64x64xf32>
    %c0_183 = arith.constant 0 : index
    %c0_184 = arith.constant 0 : index
    %713 = vector.load %arg7[%c0_183, %c0_184] : memref<16x64xf32, #tpu.memory_space<vmem>>, vector<16x64xf32>
    %cst_185 = arith.constant dense<0.000000e+00> : vector<16x64xf32>
    %714 = tpu.matmul %713, %712, %cst_185 {dimension_numbers = #tpu.dot_dimension_numbers<[1], [1], [0], [0], [0, 0, 1, 0], [], []>} : vector<16x64xf32>, vector<64x64xf32>, vector<16x64xf32> -> vector<16x64xf32>
    %c0_186 = arith.constant 0 : index
    %c0_187 = arith.constant 0 : index
    %715 = vector.load %arg8[%c0_186, %c0_187] : memref<16x1xf32, #tpu.memory_space<vmem>>, vector<16x1xf32>
    %716 = vector.broadcast %715 : vector<16x1xf32> to vector<16x64xf32>
    %717 = arith.addf %714, %716 : vector<16x64xf32>
    %cst_188 = arith.constant 0.000000e+00 : f32
    %718 = vector.broadcast %cst_188 : f32 to vector<16x64xf32>
    %719 = arith.cmpf ogt, %717, %718 : vector<16x64xf32>
    %cst_189 = arith.constant 0.00999999977 : f32
    %720 = vector.broadcast %cst_189 : f32 to vector<16x64xf32>
    %721 = arith.mulf %720, %717 : vector<16x64xf32>
    %722 = arith.select %719, %717, %721 : vector<16x64xi1>, vector<16x64xf32>
    %c0_190 = arith.constant 0 : index
    %c0_191 = arith.constant 0 : index
    %723 = vector.load %arg9[%c0_190, %c0_191] : memref<1x16xf32, #tpu.memory_space<vmem>>, vector<1x16xf32>
    %cst_192 = arith.constant dense<0.000000e+00> : vector<1x64xf32>
    %724 = tpu.matmul %723, %722, %cst_192 {dimension_numbers = #tpu.dot_dimension_numbers<[1], [0], [0], [1], [0, 0, 1, 1], [], []>} : vector<1x16xf32>, vector<16x64xf32>, vector<1x64xf32> -> vector<1x64xf32>
    %c0_193 = arith.constant 0 : index
    %c0_194 = arith.constant 0 : index
    %725 = vector.load %arg10[%c0_193, %c0_194] : memref<1x1xf32, #tpu.memory_space<vmem>>, vector<1x1xf32>
    %726 = vector.broadcast %725 : vector<1x1xf32> to vector<1x64xf32>
    %727 = arith.addf %724, %726 : vector<1x64xf32>
    %728 = arith.negf %727 : vector<1x64xf32>
    %729 = math.exp %728 : vector<1x64xf32>
    %cst_195 = arith.constant 1.000000e+00 : f32
    %730 = vector.broadcast %cst_195 : f32 to vector<1x64xf32>
    %731 = arith.addf %730, %729 : vector<1x64xf32>
    %732 = arith.divf %730, %731 : vector<1x64xf32>
    %c0_196 = arith.constant 0 : index
    %c0_197 = arith.constant 0 : index
    %733 = vector.load %arg11[%c0_196, %c0_197] : memref<1x64xf32, #tpu.memory_space<vmem>>, vector<1x64xf32>
    tpu.vector_store %arg11[%c0_196, %c0_197], %732 {strides = array<i32>} : memref<1x64xf32, #tpu.memory_space<vmem>>, vector<1x64xf32>,
    return
  }
}

</mosaic_0001>

<llo_original>
// kernel: tpu_custom_call.1
$region0: #{tpu_custom_call.1}
  #allocation0 [shape = 'u32[]', space=smem, size = 0x4, offset = 0x4, fixed_abs, tag = 'smem constant byte address 0x4 - core index']
  #allocation1 [shape = 'u32[72,128]{1,0:T(1,128)}', space=vmem, size = 0x9000, scoped, tag = 'internal scratch']
  #allocation2 [shape = 'f32[64,256]{1,0:T(8,128)}', space=vmem, size = 0x10000, scoped, tag = 'scratch operand']
  #allocation3 [shape = 'f32[64,32]{1,0:T(8,128)}', space=vmem, size = 0x8000, scoped, tag = 'scratch operand']
  #allocation4 [shape = 'f32[64,32]{1,0:T(8,128)}', space=vmem, size = 0x8000, scoped, tag = 'scratch operand']
  #allocation5 [shape = 'f32[1,1]{1,0:T(1,128)S(1)}', space=vmem, size = 0x200, scoped, tag = 'scoped memory for tpu_custom_call.1']
  %s0 = inlined_call_operand.vmem [shape: f32[64,16], index: 0, kind: input, shape index: {}]
  %s1 = inlined_call_operand.vmem [shape: f32[16,256], index: 1, kind: input, shape index: {}]
  %s2 = inlined_call_operand.vmem [shape: f32[1,256], index: 2, kind: input, shape index: {}]
  %s3 = inlined_call_operand.hbm [shape: f32[64,256], index: 3, kind: input, shape index: {}]
  %s4 = inlined_call_operand.hbm [shape: f32[64,256], index: 4, kind: input, shape index: {}]
  %s5 = inlined_call_operand.vmem [shape: f32[1,256], index: 5, kind: input, shape index: {}]
  %s6 = inlined_call_operand.hbm [shape: f32[64,256], index: 6, kind: input, shape index: {}]
  %s7 = inlined_call_operand.vmem [shape: f32[16,64], index: 7, kind: input, shape index: {}]
  %s8 = inlined_call_operand.vmem [shape: f32[16,1], index: 8, kind: input, shape index: {}]
  %s9 = inlined_call_operand.vmem [shape: f32[1,16], index: 9, kind: input, shape index: {}]
  %s10 = inlined_call_operand.<no memory space> [shape: f32[1,1], index: 10, kind: input, shape index: {}]
  %s11 = inlined_call_operand.hbm [shape: f32[1,64], index: 11, kind: output, shape index: {}]
  %s12 = sld [smem:[#allocation0]]
  $region66: #{tpu_custom_call.1} parent=0
    _
  %s14 = ssub.s32 1, %s12
  %s15 = scalar_select 0, %s14, %s12
  %v16 = vstv %s10
  %17 = vst [vmem:[#allocation5] sm:$0x1] %v16
  $region1: #{tpu_custom_call.1} parent=0
    #allocation6 [shape = 'u8[65536]{0}', space=vmem, size = 0x10000, scoped, tag = 'input window, operand 3, single buffered']
    #allocation7 [shape = 's32[1]{0}', space=sflag, size = 0x4, scoped, tag = 'scoped memory for tpu_custom_call.1']
    #allocation8 [shape = 's32[1]{0}', space=sflag, size = 0x4, scoped, tag = 'scoped memory for tpu_custom_call.1']
    #allocation9 [shape = 'u8[65536]{0}', space=vmem, size = 0x10000, scoped, tag = 'input window, operand 4, single buffered']
    #allocation10 [shape = 's32[1]{0}', space=sflag, size = 0x4, scoped, tag = 'scoped memory for tpu_custom_call.1']
    #allocation11 [shape = 'u8[65536]{0}', space=vmem, size = 0x10000, scoped, tag = 'input window, operand 6, single buffered']
    #allocation12 [shape = 'u8[512]{0}', space=vmem, size = 0x400, scoped, tag = 'output window, operand 0, single buffered']
    %18 = vsyncpa [#allocation7], 0
    %19 = vsyncpa [#allocation10], 0
    %20 = vsyncpa [#allocation8], 0
    // Predicated region
    $region2: #{tpu_custom_call.1} parent=1 // pred_check
      _
    $region3: #{tpu_custom_call.1} parent=1 // pred_check_branch
      %22 = sbr.rel (0) target = $region5
    $region4: #{tpu_custom_call.1} parent=1 // pred_region
      _
    $region5: #{tpu_custom_call.1} parent=1 // pred_fallthru
      _
    // Predicated region
    $region6: #{tpu_custom_call.1} parent=1 // pred_check
      _
    $region7: #{tpu_custom_call.1} parent=1 // pred_check_branch
      %24 = sbr.rel (0) target = $region9
    $region8: #{tpu_custom_call.1} parent=1 // pred_region
      _
    $region9: #{tpu_custom_call.1} parent=1 // pred_fallthru
      _
    // Predicated region
    $region10: #{tpu_custom_call.1} parent=1 // pred_check
      _
    $region11: #{tpu_custom_call.1} parent=1 // pred_check_branch
      %26 = sbr.rel (0) target = $region13
    $region12: #{tpu_custom_call.1} parent=1 // pred_region
      _
    $region13: #{tpu_custom_call.1} parent=1 // pred_fallthru
      _
    // Predicated region
    $region14: #{tpu_custom_call.1} parent=1 // pred_check
      _
    $region15: #{tpu_custom_call.1} parent=1 // pred_check_branch
      %28 = sbr.rel (0) target = $region17
    $region16: #{tpu_custom_call.1} parent=1 // pred_region
      %30 = vsyncadd [#allocation7], 0
      %s31 = sshll.u32 %s3, 4
      %s32 = int_to_ptr.hbm [resolvable:$true] %s31
      %s33 = sshll.u32 [#allocation6], 4
      %s34 = int_to_ptr.vmem [resolvable:$true] %s33
      %39 = dma.hbm_to_vmem [thread:$0]  %s32, 2048, %s34, [#allocation7], 256, 256, 16
    $region17: #{tpu_custom_call.1} parent=1 // pred_fallthru
      _
    // Predicated region
    $region18: #{tpu_custom_call.1} parent=1 // pred_check
      _
    $region19: #{tpu_custom_call.1} parent=1 // pred_check_branch
      %41 = sbr.rel (0) target = $region21
    $region20: #{tpu_custom_call.1} parent=1 // pred_region
      %43 = vsyncadd [#allocation10], 0
      %s44 = sshll.u32 %s4, 4
      %s45 = int_to_ptr.hbm [resolvable:$true] %s44
      %s46 = sshll.u32 [#allocation9], 4
      %s47 = int_to_ptr.vmem [resolvable:$true] %s46
      %52 = dma.hbm_to_vmem [thread:$0]  %s45, 2048, %s47, [#allocation10], 256, 256, 16
    $region21: #{tpu_custom_call.1} parent=1 // pred_fallthru
      _
    // Predicated region
    $region22: #{tpu_custom_call.1} parent=1 // pred_check
      _
    $region23: #{tpu_custom_call.1} parent=1 // pred_check_branch
      %54 = sbr.rel (0) target = $region25
    $region24: #{tpu_custom_call.1} parent=1 // pred_region
      _
    $region25: #{tpu_custom_call.1} parent=1 // pred_fallthru
      _
    // Predicated region
    $region26: #{tpu_custom_call.1} parent=1 // pred_check
      _
    $region27: #{tpu_custom_call.1} parent=1 // pred_check_branch
      %56 = sbr.rel (0) target = $region29
    $region28: #{tpu_custom_call.1} parent=1 // pred_region
      %58 = vsyncadd [#allocation10], 0
      %s59 = sshll.u32 %s6, 4
      %s60 = int_to_ptr.hbm [resolvable:$true] %s59
      %s61 = sshll.u32 [#allocation11], 4
      %s62 = int_to_ptr.vmem [resolvable:$true] %s61
      %67 = dma.hbm_to_vmem [thread:$0]  %s60, 2048, %s62, [#allocation10], 256, 256, 16
    $region29: #{tpu_custom_call.1} parent=1 // pred_fallthru
      _
    // Predicated region
    $region30: #{tpu_custom_call.1} parent=1 // pred_check
      _
    $region31: #{tpu_custom_call.1} parent=1 // pred_check_branch
      %69 = sbr.rel (0) target = $region33
    $region32: #{tpu_custom_call.1} parent=1 // pred_region
      _
    $region33: #{tpu_custom_call.1} parent=1 // pred_fallthru
      _
    // Predicated region
    $region34: #{tpu_custom_call.1} parent=1 // pred_check
      _
    $region35: #{tpu_custom_call.1} parent=1 // pred_check_branch
      %71 = sbr.rel (0) target = $region37
    $region36: #{tpu_custom_call.1} parent=1 // pred_region
      _
    $region37: #{tpu_custom_call.1} parent=1 // pred_fallthru
      _
    // Predicated region
    $region38: #{tpu_custom_call.1} parent=1 // pred_check
      _
    $region39: #{tpu_custom_call.1} parent=1 // pred_check_branch
      %73 = sbr.rel (0) target = $region41
    $region40: #{tpu_custom_call.1} parent=1 // pred_region
      _
    $region41: #{tpu_custom_call.1} parent=1 // pred_fallthru
      _
    // Predicated region
    $region42: #{tpu_custom_call.1} parent=1 // pred_check
      _
    $region43: #{tpu_custom_call.1} parent=1 // pred_check_branch
      %75 = sbr.rel (0) target = $region45
    $region44: #{tpu_custom_call.1} parent=1 // pred_region
      _
    $region45: #{tpu_custom_call.1} parent=1 // pred_fallthru
      _
    // Predicated region
    $region46: #{tpu_custom_call.1} parent=1 // pred_check
      _
    $region47: #{tpu_custom_call.1} parent=1 // pred_check_branch
      %77 = sbr.rel (0) target = $region49
    $region48: #{tpu_custom_call.1} parent=1 // pred_region
      %79 = dma.done [#allocation7], 2048
    $region49: #{tpu_custom_call.1} parent=1 // pred_fallthru
      _
    // Predicated region
    $region50: #{tpu_custom_call.1} parent=1 // pred_check
      _
    $region51: #{tpu_custom_call.1} parent=1 // pred_check_branch
      %81 = sbr.rel (0) target = $region53
    $region52: #{tpu_custom_call.1} parent=1 // pred_region
      %83 = dma.done [#allocation10], 2048
    $region53: #{tpu_custom_call.1} parent=1 // pred_fallthru
      _
    // Predicated region
    $region54: #{tpu_custom_call.1} parent=1 // pred_check
      _
    $region55: #{tpu_custom_call.1} parent=1 // pred_check_branch
      %85 = sbr.rel (0) target = $region57
    $region56: #{tpu_custom_call.1} parent=1 // pred_region
      %87 = dma.done [#allocation10], 2048
    $region57: #{tpu_custom_call.1} parent=1 // pred_fallthru
      _
    %v88 = vld [vmem:[%s0] sm:$0xff]
    %v89 = vld [vmem:[%s0 + $0x8] sm:$0xff]
    %v90 = vld [vmem:[%s0 + $0x10] sm:$0xff]
    %v91 = vld [vmem:[%s0 + $0x18] sm:$0xff]
    %v92 = vld [vmem:[%s0 + $0x20] sm:$0xff]
    %v93 = vld [vmem:[%s0 + $0x28] sm:$0xff]
    %v94 = vld [vmem:[%s0 + $0x30] sm:$0xff]
    %v95 = vld [vmem:[%s0 + $0x38] sm:$0xff]
    %v96 = vld [vmem:[%s1] sm:$0xff]
    %v97 = vld [vmem:[%s1 + $0x8] sm:$0xff]
    %v98 = vld [vmem:[%s1 + $0x10] sm:$0xff]
    %v99 = vld [vmem:[%s1 + $0x18] sm:$0xff]
    %v100 = vld [vmem:[%s2] sm:$0x3]
    %v102 = vperm.slane %v100, 0
    %v103 = vperm.slane %v100, 1
    %vm106 = vcmask 130048
    %v108 = vsel %vm106, %v88, 0
    %v111 = vsel %vm106, %v89, 0
    %v114 = vsel %vm106, %v90, 0
    %v117 = vsel %vm106, %v91, 0
    %v120 = vsel %vm106, %v92, 0
    %v123 = vsel %vm106, %v93, 0
    %v126 = vsel %vm106, %v94, 0
    %v129 = vsel %vm106, %v95, 0
    %131 = vmatpush.msra.mxu0 0.0
    %132 = vmatpush.msra.mxu0 0.0
    %133 = vmatpush.msra.mxu0 0.0
    %134 = vmatpush.msra.mxu0 0.0
    %135 = vmatpush.msra.mxu0 0.0
    %136 = vmatpush.msra.mxu0 0.0
    %137 = vmatpush.msra.mxu0 0.0
    %138 = vmatpush.msra.mxu0 0.0
    %139 = vmatpush.msra.mxu0 0.0
    %140 = vmatpush.msra.mxu0 0.0
    %141 = vmatpush.msra.mxu0 0.0
    %142 = vmatpush.msra.mxu0 0.0
    %143 = vmatpush.msra.mxu0 0.0
    %144 = vmatpush.msra.mxu0 0.0
    %145 = vmatpush.msra.mxu0 %v98
    %146 = vmatpush.msra.mxu0 %v96
    %147 = vmatmul.f32.gmra.mxu0 %v108
    %v148 = vpop.f32.mrf.mxu0
    %v149 = vadd.f32 %v102, %v148
    %150 = vmatmul.f32.gmra.mxu0 %v111
    %v151 = vpop.f32.mrf.mxu0
    %v152 = vadd.f32 %v102, %v151
    %153 = vmatmul.f32.gmra.mxu0 %v114
    %v154 = vpop.f32.mrf.mxu0
    %v155 = vadd.f32 %v102, %v154
    %156 = vmatmul.f32.gmra.mxu0 %v117
    %v157 = vpop.f32.mrf.mxu0
    %v158 = vadd.f32 %v102, %v157
    %159 = vmatmul.f32.gmra.mxu0 %v120
    %v160 = vpop.f32.mrf.mxu0
    %v161 = vadd.f32 %v102, %v160
    %162 = vmatmul.f32.gmra.mxu0 %v123
    %v163 = vpop.f32.mrf.mxu0
    %v164 = vadd.f32 %v102, %v163
    %165 = vmatmul.f32.gmra.mxu0 %v126
    %v166 = vpop.f32.mrf.mxu0
    %v167 = vadd.f32 %v102, %v166
    %168 = vmatmul.f32.gmra.mxu0 %v129
    %v169 = vpop.f32.mrf.mxu0
    %v170 = vadd.f32 %v102, %v169
    %171 = vdwg.mxu0
    %172 = vmatpush.msra.mxu0 0.0
    %173 = vmatpush.msra.mxu0 0.0
    %174 = vmatpush.msra.mxu0 0.0
    %175 = vmatpush.msra.mxu0 0.0
    %176 = vmatpush.msra.mxu0 0.0
    %177 = vmatpush.msra.mxu0 0.0
    %178 = vmatpush.msra.mxu0 0.0
    %179 = vmatpush.msra.mxu0 0.0
    %180 = vmatpush.msra.mxu0 0.0
    %181 = vmatpush.msra.mxu0 0.0
    %182 = vmatpush.msra.mxu0 0.0
    %183 = vmatpush.msra.mxu0 0.0
    %184 = vmatpush.msra.mxu0 0.0
    %185 = vmatpush.msra.mxu0 0.0
    %186 = vmatpush.msra.mxu0 %v99
    %187 = vmatpush.msra.mxu0 %v97
    %188 = vmatmul.f32.gmra.mxu0 %v108
    %v189 = vpop.f32.mrf.mxu0
    %v190 = vadd.f32 %v103, %v189
    %191 = vmatmul.f32.gmra.mxu0 %v111
    %v192 = vpop.f32.mrf.mxu0
    %v193 = vadd.f32 %v103, %v192
    %194 = vmatmul.f32.gmra.mxu0 %v114
    %v195 = vpop.f32.mrf.mxu0
    %v196 = vadd.f32 %v103, %v195
    %197 = vmatmul.f32.gmra.mxu0 %v117
    %v198 = vpop.f32.mrf.mxu0
    %v199 = vadd.f32 %v103, %v198
    %200 = vmatmul.f32.gmra.mxu0 %v120
    %v201 = vpop.f32.mrf.mxu0
    %v202 = vadd.f32 %v103, %v201
    %203 = vmatmul.f32.gmra.mxu0 %v123
    %v204 = vpop.f32.mrf.mxu0
    %v205 = vadd.f32 %v103, %v204
    %206 = vmatmul.f32.gmra.mxu0 %v126
    %v207 = vpop.f32.mrf.mxu0
    %v208 = vadd.f32 %v103, %v207
    %209 = vmatmul.f32.gmra.mxu0 %v129
    %v210 = vpop.f32.mrf.mxu0
    %v211 = vadd.f32 %v103, %v210
    %212 = vdwg.mxu0
    %213 = vst [vmem:[#allocation2] sm:$0xff] %v149
    %214 = vst [vmem:[#allocation2 + $0x8] sm:$0xff] %v190
    %215 = vst [vmem:[#allocation2 + $0x10] sm:$0xff] %v152
    %216 = vst [vmem:[#allocation2 + $0x18] sm:$0xff] %v193
    %217 = vst [vmem:[#allocation2 + $0x20] sm:$0xff] %v155
    %218 = vst [vmem:[#allocation2 + $0x28] sm:$0xff] %v196
    %219 = vst [vmem:[#allocation2 + $0x30] sm:$0xff] %v158
    %220 = vst [vmem:[#allocation2 + $0x38] sm:$0xff] %v199
    %221 = vst [vmem:[#allocation2 + $0x40] sm:$0xff] %v161
    %222 = vst [vmem:[#allocation2 + $0x48] sm:$0xff] %v202
    %223 = vst [vmem:[#allocation2 + $0x50] sm:$0xff] %v164
    %224 = vst [vmem:[#allocation2 + $0x58] sm:$0xff] %v205
    %225 = vst [vmem:[#allocation2 + $0x60] sm:$0xff] %v167
    %226 = vst [vmem:[#allocation2 + $0x68] sm:$0xff] %v208
    %227 = vst [vmem:[#allocation2 + $0x70] sm:$0xff] %v170
    %228 = vst [vmem:[#allocation2 + $0x78] sm:$0xff] %v211
    %v229 = vld [vmem:[#allocation6] sm:$0xff]
    %v230 = vld [vmem:[#allocation6 + $0x8] sm:$0xff]
    %v231 = vld [vmem:[#allocation6 + $0x10] sm:$0xff]
    %v232 = vld [vmem:[#allocation6 + $0x18] sm:$0xff]
    %v233 = vld [vmem:[#allocation6 + $0x20] sm:$0xff]
    %v234 = vld [vmem:[#allocation6 + $0x28] sm:$0xff]
    %v235 = vld [vmem:[#allocation6 + $0x30] sm:$0xff]
    %v236 = vld [vmem:[#allocation6 + $0x38] sm:$0xff]
    %v237 = vld [vmem:[#allocation6 + $0x40] sm:$0xff]
    %v238 = vld [vmem:[#allocation6 + $0x48] sm:$0xff]
    %v239 = vld [vmem:[#allocation6 + $0x50] sm:$0xff]
    %v240 = vld [vmem:[#allocation6 + $0x58] sm:$0xff]
    %v241 = vld [vmem:[#allocation6 + $0x60] sm:$0xff]
    %v242 = vld [vmem:[#allocation6 + $0x68] sm:$0xff]
    %v243 = vld [vmem:[#allocation6 + $0x70] sm:$0xff]
    %v244 = vld [vmem:[#allocation6 + $0x78] sm:$0xff]
    %vm245 = vcmask 523264
    %v247 = vsel %vm245, 0.0, 0
    %249 = vmatpush.msra.mxu0 0.0
    %250 = vmatpush.msra.mxu0 0.0
    %251 = vmatpush.msra.mxu0 0.0
    %252 = vmatpush.msra.mxu0 0.0
    %253 = vmatpush.msra.mxu0 0.0
    %254 = vmatpush.msra.mxu0 0.0
    %255 = vmatpush.msra.mxu0 0.0
    %256 = vmatpush.msra.mxu0 0.0
    %257 = vmatpush.msra.mxu0 %v243
    %258 = vmatpush.msra.mxu0 %v241
    %259 = vmatpush.msra.mxu0 %v239
    %260 = vmatpush.msra.mxu0 %v237
    %261 = vmatpush.msra.mxu0 %v235
    %262 = vmatpush.msra.mxu0 %v233
    %263 = vmatpush.msra.mxu0 %v231
    %264 = vmatpush.msra.mxu0 %v229
    %265 = vmatmul.f32.gmra.mxu0 %v247
    %v266 = vpop.f32.mrf.mxu0
    %v267 = vadd.f32 0.0, %v266
    %268 = vdwg.mxu0
    %269 = vmatpush.msra.mxu0 0.0
    %270 = vmatpush.msra.mxu0 0.0
    %271 = vmatpush.msra.mxu0 0.0
    %272 = vmatpush.msra.mxu0 0.0
    %273 = vmatpush.msra.mxu0 0.0
    %274 = vmatpush.msra.mxu0 0.0
    %275 = vmatpush.msra.mxu0 0.0
    %276 = vmatpush.msra.mxu0 0.0
    %277 = vmatpush.msra.mxu0 %v244
    %278 = vmatpush.msra.mxu0 %v242
    %279 = vmatpush.msra.mxu0 %v240
    %280 = vmatpush.msra.mxu0 %v238
    %281 = vmatpush.msra.mxu0 %v236
    %282 = vmatpush.msra.mxu0 %v234
    %283 = vmatpush.msra.mxu0 %v232
    %284 = vmatpush.msra.mxu0 %v230
    %285 = vmatmul.f32.gmra.mxu0 %v247
    %v286 = vpop.f32.mrf.mxu0
    %v287 = vadd.f32 0.0, %v286
    %288 = vdwg.mxu0
    %s289 = smul.u32 0, 2
    %s290 = smul.addr %s289, 8
    %s291 = scalar_lea.vmem [#allocation2], %s290
    %v292 = vld [vmem:[%s291] sm:$0xff]
    %s293 = smul.u32 7, 2
    %s294 = smul.addr %s293, 8
    %s295 = scalar_lea.vmem [#allocation2], %s294
    %v296 = vld [vmem:[%s295 + $0x8] sm:$0xff]
    %v297 = vadd.f32 %v292, %v267
    %v298 = vadd.f32 %v296, %v287
    %v299 = vxor.u32 %v297, 2147483648
    %v300 = vxor.u32 %v298, 2147483648
    %v301 = vmul.f32 %v299, 1.442695
    %v302 = vpow.pop %v301
    %v303 = vmul.f32 %v300, 1.442695
    %v304 = vpow.pop %v303
    %v305 = vadd.f32 %v302, 1.0
    %v306 = vadd.f32 %v304, 1.0
    %v307 = vrcp.pop %v305
    %v308 = vmul.f32 %v305, %v307
    %v309 = vsub.f32 1.0, %v308
    %v310 = vmul.f32 %v307, %v309
    %v311 = vadd.f32 %v307, %v310
    %vm312 = vweird.f32 %v305
    %vm313 = vweird.f32 %v307
    %vm314 = vmor %vm312, %vm313
    %v315 = vsel %vm314, %v307, %v311
    %v316 = vand.u32 2147483647, %v305
    %vm317 = vcmp.eq.f32.partialorder %v316, 8.507059e+37
    %v318 = vand.u32 %v305, 2147483648
    %v319 = vor.u32 1.1754944e-38, %v318
    %v320 = vsel %vm317, %v319, %v315
    %v321 = vmul.f32 1.0, %v320
    %v322 = vrcp.pop %v306
    %v323 = vmul.f32 %v306, %v322
    %v324 = vsub.f32 1.0, %v323
    %v325 = vmul.f32 %v322, %v324
    %v326 = vadd.f32 %v322, %v325
    %vm327 = vweird.f32 %v306
    %vm328 = vweird.f32 %v322
    %vm329 = vmor %vm327, %vm328
    %v330 = vsel %vm329, %v322, %v326
    %v331 = vand.u32 2147483647, %v306
    %vm332 = vcmp.eq.f32.partialorder %v331, 8.507059e+37
    %v333 = vand.u32 %v306, 2147483648
    %v334 = vor.u32 1.1754944e-38, %v333
    %v335 = vsel %vm332, %v334, %v330
    %v336 = vmul.f32 1.0, %v335
    %v337 = vtanh.pop %v297
    %v338 = vtanh.pop %v298
    %v339 = vmul.f32 %v321, 0.0
    %341 = vrot.lane.b32.xlu0 %v337, 64
    %v342 = vpop.permute.xlu0 %341
    %v344 = vmul.f32 %v321, %v342
    %346 = vrot.lane.b32.xlu0 %v344, 32
    %v347 = vpop.permute.xlu0 %346
    %v349 = vadd.f32 %v339, %v347
    %v350 = vtanh.pop %v349
    %352 = vrot.lane.b32.xlu0 %v350, 64
    %v353 = vpop.permute.xlu0 %352
    %v355 = vmul.f32 %v321, %v353
    %v356 = vmul.f32 %v336, 0.0
    %358 = vrot.lane.b32.xlu0 %v338, 64
    %v359 = vpop.permute.xlu0 %358
    %v361 = vmul.f32 %v336, %v359
    %363 = vrot.lane.b32.xlu0 %v361, 32
    %v364 = vpop.permute.xlu0 %363
    %v366 = vadd.f32 %v356, %v364
    %v367 = vtanh.pop %v366
    %369 = vrot.lane.b32.xlu0 %v367, 64
    %v370 = vpop.permute.xlu0 %369
    %v372 = vmul.f32 %v336, %v370
    %374 = vrot.lane.b32.xlu0 %v355, 32
    %v375 = vpop.permute.xlu0 %374
    %vm377 = vcmask 261120
    %378 = vst.msk [vmem:[#allocation3] sm:$0xff] %vm377, %v375
    %380 = vrot.lane.b32.xlu0 %v372, 32
    %v381 = vpop.permute.xlu0 %380
    %s383 = scalar_lea.vmem [#allocation4], 56
    %384 = vst.msk [vmem:[%s383] sm:$0xff] %vm377, %v381
    %385 = vrot.lane.b32.xlu0 %v372, 64
    %v386 = vpop.permute.xlu0 %385
    %v388 = vsel %vm377, %v375, %v386
    %v390 = vsel %vm245, %v388, 0
    %392 = vmatpush.msra.mxu0 0.0
    %393 = vmatpush.msra.mxu0 0.0
    %394 = vmatpush.msra.mxu0 0.0
    %395 = vmatpush.msra.mxu0 0.0
    %396 = vmatpush.msra.mxu0 0.0
    %397 = vmatpush.msra.mxu0 0.0
    %398 = vmatpush.msra.mxu0 0.0
    %399 = vmatpush.msra.mxu0 0.0
    %400 = vmatpush.msra.mxu0 %v243
    %401 = vmatpush.msra.mxu0 %v241
    %402 = vmatpush.msra.mxu0 %v239
    %403 = vmatpush.msra.mxu0 %v237
    %404 = vmatpush.msra.mxu0 %v235
    %405 = vmatpush.msra.mxu0 %v233
    %406 = vmatpush.msra.mxu0 %v231
    %407 = vmatpush.msra.mxu0 %v229
    %408 = vmatmul.f32.gmra.mxu0 %v390
    %v409 = vpop.f32.mrf.mxu0
    %v410 = vadd.f32 0.0, %v409
    %411 = vdwg.mxu0
    %412 = vmatpush.msra.mxu0 0.0
    %413 = vmatpush.msra.mxu0 0.0
    %414 = vmatpush.msra.mxu0 0.0
    %415 = vmatpush.msra.mxu0 0.0
    %416 = vmatpush.msra.mxu0 0.0
    %417 = vmatpush.msra.mxu0 0.0
    %418 = vmatpush.msra.mxu0 0.0
    %419 = vmatpush.msra.mxu0 0.0
    %420 = vmatpush.msra.mxu0 %v244
    %421 = vmatpush.msra.mxu0 %v242
    %422 = vmatpush.msra.mxu0 %v240
    %423 = vmatpush.msra.mxu0 %v238
    %424 = vmatpush.msra.mxu0 %v236
    %425 = vmatpush.msra.mxu0 %v234
    %426 = vmatpush.msra.mxu0 %v232
    %427 = vmatpush.msra.mxu0 %v230
    %428 = vmatmul.f32.gmra.mxu0 %v390
    %v429 = vpop.f32.mrf.mxu0
    %v430 = vadd.f32 0.0, %v429
    %431 = vdwg.mxu0
    %s432 = smul.u32 1, 2
    %s433 = smul.addr %s432, 8
    %s434 = scalar_lea.vmem [#allocation2], %s433
    %v435 = vld [vmem:[%s434] sm:$0xff]
    %s436 = smul.u32 6, 2
    %s437 = smul.addr %s436, 8
    %s438 = scalar_lea.vmem [#allocation2], %s437
    %v439 = vld [vmem:[%s438 + $0x8] sm:$0xff]
    %v440 = vadd.f32 %v435, %v410
    %v441 = vadd.f32 %v439, %v430
    %v442 = vxor.u32 %v440, 2147483648
    %v443 = vxor.u32 %v441, 2147483648
    %v444 = vmul.f32 %v442, 1.442695
    %v445 = vpow.pop %v444
    %v446 = vmul.f32 %v443, 1.442695
    %v447 = vpow.pop %v446
    %v448 = vadd.f32 %v445, 1.0
    %v449 = vadd.f32 %v447, 1.0
    %v450 = vrcp.pop %v448
    %v451 = vmul.f32 %v448, %v450
    %v452 = vsub.f32 1.0, %v451
    %v453 = vmul.f32 %v450, %v452
    %v454 = vadd.f32 %v450, %v453
    %vm455 = vweird.f32 %v448
    %vm456 = vweird.f32 %v450
    %vm457 = vmor %vm455, %vm456
    %v458 = vsel %vm457, %v450, %v454
    %v459 = vand.u32 2147483647, %v448
    %vm460 = vcmp.eq.f32.partialorder %v459, 8.507059e+37
    %v461 = vand.u32 %v448, 2147483648
    %v462 = vor.u32 1.1754944e-38, %v461
    %v463 = vsel %vm460, %v462, %v458
    %v464 = vmul.f32 1.0, %v463
    %v465 = vrcp.pop %v449
    %v466 = vmul.f32 %v449, %v465
    %v467 = vsub.f32 1.0, %v466
    %v468 = vmul.f32 %v465, %v467
    %v469 = vadd.f32 %v465, %v468
    %vm470 = vweird.f32 %v449
    %vm471 = vweird.f32 %v465
    %vm472 = vmor %vm470, %vm471
    %v473 = vsel %vm472, %v465, %v469
    %v474 = vand.u32 2147483647, %v449
    %vm475 = vcmp.eq.f32.partialorder %v474, 8.507059e+37
    %v476 = vand.u32 %v449, 2147483648
    %v477 = vor.u32 1.1754944e-38, %v476
    %v478 = vsel %vm475, %v477, %v473
    %v479 = vmul.f32 1.0, %v478
    %v480 = vtanh.pop %v440
    %v481 = vtanh.pop %v441
    %v482 = vmul.f32 %v464, %v349
    %484 = vrot.lane.b32.xlu0 %v480, 64
    %v485 = vpop.permute.xlu0 %484
    %v487 = vmul.f32 %v464, %v485
    %489 = vrot.lane.b32.xlu0 %v487, 32
    %v490 = vpop.permute.xlu0 %489
    %v492 = vadd.f32 %v482, %v490
    %v493 = vtanh.pop %v492
    %495 = vrot.lane.b32.xlu0 %v493, 64
    %v496 = vpop.permute.xlu0 %495
    %v498 = vmul.f32 %v464, %v496
    %v499 = vmul.f32 %v479, %v366
    %501 = vrot.lane.b32.xlu0 %v481, 64
    %v502 = vpop.permute.xlu0 %501
    %v504 = vmul.f32 %v479, %v502
    %506 = vrot.lane.b32.xlu0 %v504, 32
    %v507 = vpop.permute.xlu0 %506
    %v509 = vadd.f32 %v499, %v507
    %v510 = vtanh.pop %v509
    %512 = vrot.lane.b32.xlu0 %v510, 64
    %v513 = vpop.permute.xlu0 %512
    %v515 = vmul.f32 %v479, %v513
    %517 = vrot.lane.b32.xlu0 %v498, 32
    %v518 = vpop.permute.xlu0 %517
    %s520 = scalar_lea.vmem [#allocation3], 8
    %521 = vst.msk [vmem:[%s520] sm:$0xff] %vm377, %v518
    %523 = vrot.lane.b32.xlu0 %v515, 32
    %v524 = vpop.permute.xlu0 %523
    %s526 = scalar_lea.vmem [#allocation4], 48
    %527 = vst.msk [vmem:[%s526] sm:$0xff] %vm377, %v524
    %528 = vrot.lane.b32.xlu0 %v515, 64
    %v529 = vpop.permute.xlu0 %528
    %v531 = vsel %vm377, %v518, %v529
    %v533 = vsel %vm245, %v531, 0
    %535 = vmatpush.msra.mxu0 0.0
    %536 = vmatpush.msra.mxu0 0.0
    %537 = vmatpush.msra.mxu0 0.0
    %538 = vmatpush.msra.mxu0 0.0
    %539 = vmatpush.msra.mxu0 0.0
    %540 = vmatpush.msra.mxu0 0.0
    %541 = vmatpush.msra.mxu0 0.0
    %542 = vmatpush.msra.mxu0 0.0
    %543 = vmatpush.msra.mxu0 %v243
    %544 = vmatpush.msra.mxu0 %v241
    %545 = vmatpush.msra.mxu0 %v239
    %546 = vmatpush.msra.mxu0 %v237
    %547 = vmatpush.msra.mxu0 %v235
    %548 = vmatpush.msra.mxu0 %v233
    %549 = vmatpush.msra.mxu0 %v231
    %550 = vmatpush.msra.mxu0 %v229
    %551 = vmatmul.f32.gmra.mxu0 %v533
    %v552 = vpop.f32.mrf.mxu0
    %v553 = vadd.f32 0.0, %v552
    %554 = vdwg.mxu0
    %555 = vmatpush.msra.mxu0 0.0
    %556 = vmatpush.msra.mxu0 0.0
    %557 = vmatpush.msra.mxu0 0.0
    %558 = vmatpush.msra.mxu0 0.0
    %559 = vmatpush.msra.mxu0 0.0
    %560 = vmatpush.msra.mxu0 0.0
    %561 = vmatpush.msra.mxu0 0.0
    %562 = vmatpush.msra.mxu0 0.0
    %563 = vmatpush.msra.mxu0 %v244
    %564 = vmatpush.msra.mxu0 %v242
    %565 = vmatpush.msra.mxu0 %v240
    %566 = vmatpush.msra.mxu0 %v238
    %567 = vmatpush.msra.mxu0 %v236
    %568 = vmatpush.msra.mxu0 %v234
    %569 = vmatpush.msra.mxu0 %v232
    %570 = vmatpush.msra.mxu0 %v230
    %571 = vmatmul.f32.gmra.mxu0 %v533
    %v572 = vpop.f32.mrf.mxu0
    %v573 = vadd.f32 0.0, %v572
    %574 = vdwg.mxu0
    %s575 = smul.u32 2, 2
    %s576 = smul.addr %s575, 8
    %s577 = scalar_lea.vmem [#allocation2], %s576
    %v578 = vld [vmem:[%s577] sm:$0xff]
    %s579 = smul.u32 5, 2
    %s580 = smul.addr %s579, 8
    %s581 = scalar_lea.vmem [#allocation2], %s580
    %v582 = vld [vmem:[%s581 + $0x8] sm:$0xff]
    %v583 = vadd.f32 %v578, %v553
    %v584 = vadd.f32 %v582, %v573
    %v585 = vxor.u32 %v583, 2147483648
    %v586 = vxor.u32 %v584, 2147483648
    %v587 = vmul.f32 %v585, 1.442695
    %v588 = vpow.pop %v587
    %v589 = vmul.f32 %v586, 1.442695
    %v590 = vpow.pop %v589
    %v591 = vadd.f32 %v588, 1.0
    %v592 = vadd.f32 %v590, 1.0
    %v593 = vrcp.pop %v591
    %v594 = vmul.f32 %v591, %v593
    %v595 = vsub.f32 1.0, %v594
    %v596 = vmul.f32 %v593, %v595
    %v597 = vadd.f32 %v593, %v596
    %vm598 = vweird.f32 %v591
    %vm599 = vweird.f32 %v593
    %vm600 = vmor %vm598, %vm599
    %v601 = vsel %vm600, %v593, %v597
    %v602 = vand.u32 2147483647, %v591
    %vm603 = vcmp.eq.f32.partialorder %v602, 8.507059e+37
    %v604 = vand.u32 %v591, 2147483648
    %v605 = vor.u32 1.1754944e-38, %v604
    %v606 = vsel %vm603, %v605, %v601
    %v607 = vmul.f32 1.0, %v606
    %v608 = vrcp.pop %v592
    %v609 = vmul.f32 %v592, %v608
    %v610 = vsub.f32 1.0, %v609
    %v611 = vmul.f32 %v608, %v610
    %v612 = vadd.f32 %v608, %v611
    %vm613 = vweird.f32 %v592
    %vm614 = vweird.f32 %v608
    %vm615 = vmor %vm613, %vm614
    %v616 = vsel %vm615, %v608, %v612
    %v617 = vand.u32 2147483647, %v592
    %vm618 = vcmp.eq.f32.partialorder %v617, 8.507059e+37
    %v619 = vand.u32 %v592, 2147483648
    %v620 = vor.u32 1.1754944e-38, %v619
    %v621 = vsel %vm618, %v620, %v616
    %v622 = vmul.f32 1.0, %v621
    %v623 = vtanh.pop %v583
    %v624 = vtanh.pop %v584
    %v625 = vmul.f32 %v607, %v492
    %627 = vrot.lane.b32.xlu0 %v623, 64
    %v628 = vpop.permute.xlu0 %627
    %v630 = vmul.f32 %v607, %v628
    %632 = vrot.lane.b32.xlu0 %v630, 32
    %v633 = vpop.permute.xlu0 %632
    %v635 = vadd.f32 %v625, %v633
    %v636 = vtanh.pop %v635
    %638 = vrot.lane.b32.xlu0 %v636, 64
    %v639 = vpop.permute.xlu0 %638
    %v641 = vmul.f32 %v607, %v639
    %v642 = vmul.f32 %v622, %v509
    %644 = vrot.lane.b32.xlu0 %v624, 64
    %v645 = vpop.permute.xlu0 %644
    %v647 = vmul.f32 %v622, %v645
    %649 = vrot.lane.b32.xlu0 %v647, 32
    %v650 = vpop.permute.xlu0 %649
    %v652 = vadd.f32 %v642, %v650
    %v653 = vtanh.pop %v652
    %655 = vrot.lane.b32.xlu0 %v653, 64
    %v656 = vpop.permute.xlu0 %655
    %v658 = vmul.f32 %v622, %v656
    %660 = vrot.lane.b32.xlu0 %v641, 32
    %v661 = vpop.permute.xlu0 %660
    %s663 = scalar_lea.vmem [#allocation3], 16
    %664 = vst.msk [vmem:[%s663] sm:$0xff] %vm377, %v661
    %666 = vrot.lane.b32.xlu0 %v658, 32
    %v667 = vpop.permute.xlu0 %666
    %s669 = scalar_lea.vmem [#allocation4], 40
    %670 = vst.msk [vmem:[%s669] sm:$0xff] %vm377, %v667
    %671 = vrot.lane.b32.xlu0 %v658, 64
    %v672 = vpop.permute.xlu0 %671
    %v674 = vsel %vm377, %v661, %v672
    %v676 = vsel %vm245, %v674, 0
    %678 = vmatpush.msra.mxu0 0.0
    %679 = vmatpush.msra.mxu0 0.0
    %680 = vmatpush.msra.mxu0 0.0
    %681 = vmatpush.msra.mxu0 0.0
    %682 = vmatpush.msra.mxu0 0.0
    %683 = vmatpush.msra.mxu0 0.0
    %684 = vmatpush.msra.mxu0 0.0
    %685 = vmatpush.msra.mxu0 0.0
    %686 = vmatpush.msra.mxu0 %v243
    %687 = vmatpush.msra.mxu0 %v241
    %688 = vmatpush.msra.mxu0 %v239
    %689 = vmatpush.msra.mxu0 %v237
    %690 = vmatpush.msra.mxu0 %v235
    %691 = vmatpush.msra.mxu0 %v233
    %692 = vmatpush.msra.mxu0 %v231
    %693 = vmatpush.msra.mxu0 %v229
    %694 = vmatmul.f32.gmra.mxu0 %v676
    %v695 = vpop.f32.mrf.mxu0
    %v696 = vadd.f32 0.0, %v695
    %697 = vdwg.mxu0
    %698 = vmatpush.msra.mxu0 0.0
    %699 = vmatpush.msra.mxu0 0.0
    %700 = vmatpush.msra.mxu0 0.0
    %701 = vmatpush.msra.mxu0 0.0
    %702 = vmatpush.msra.mxu0 0.0
    %703 = vmatpush.msra.mxu0 0.0
    %704 = vmatpush.msra.mxu0 0.0
    %705 = vmatpush.msra.mxu0 0.0
    %706 = vmatpush.msra.mxu0 %v244
    %707 = vmatpush.msra.mxu0 %v242
    %708 = vmatpush.msra.mxu0 %v240
    %709 = vmatpush.msra.mxu0 %v238
    %710 = vmatpush.msra.mxu0 %v236
    %711 = vmatpush.msra.mxu0 %v234
    %712 = vmatpush.msra.mxu0 %v232
    %713 = vmatpush.msra.mxu0 %v230
    %714 = vmatmul.f32.gmra.mxu0 %v676
    %v715 = vpop.f32.mrf.mxu0
    %v716 = vadd.f32 0.0, %v715
    %717 = vdwg.mxu0
    %s718 = smul.u32 3, 2
    %s719 = smul.addr %s718, 8
    %s720 = scalar_lea.vmem [#allocation2], %s719
    %v721 = vld [vmem:[%s720] sm:$0xff]
    %s722 = smul.u32 4, 2
    %s723 = smul.addr %s722, 8
    %s724 = scalar_lea.vmem [#allocation2], %s723
    %v725 = vld [vmem:[%s724 + $0x8] sm:$0xff]
    %v726 = vadd.f32 %v721, %v696
    %v727 = vadd.f32 %v725, %v716
    %v728 = vxor.u32 %v726, 2147483648
    %v729 = vxor.u32 %v727, 2147483648
    %v730 = vmul.f32 %v728, 1.442695
    %v731 = vpow.pop %v730
    %v732 = vmul.f32 %v729, 1.442695
    %v733 = vpow.pop %v732
    %v734 = vadd.f32 %v731, 1.0
    %v735 = vadd.f32 %v733, 1.0
    %v736 = vrcp.pop %v734
    %v737 = vmul.f32 %v734, %v736
    %v738 = vsub.f32 1.0, %v737
    %v739 = vmul.f32 %v736, %v738
    %v740 = vadd.f32 %v736, %v739
    %vm741 = vweird.f32 %v734
    %vm742 = vweird.f32 %v736
    %vm743 = vmor %vm741, %vm742
    %v744 = vsel %vm743, %v736, %v740
    %v745 = vand.u32 2147483647, %v734
    %vm746 = vcmp.eq.f32.partialorder %v745, 8.507059e+37
    %v747 = vand.u32 %v734, 2147483648
    %v748 = vor.u32 1.1754944e-38, %v747
    %v749 = vsel %vm746, %v748, %v744
    %v750 = vmul.f32 1.0, %v749
    %v751 = vrcp.pop %v735
    %v752 = vmul.f32 %v735, %v751
    %v753 = vsub.f32 1.0, %v752
    %v754 = vmul.f32 %v751, %v753
    %v755 = vadd.f32 %v751, %v754
    %vm756 = vweird.f32 %v735
    %vm757 = vweird.f32 %v751
    %vm758 = vmor %vm756, %vm757
    %v759 = vsel %vm758, %v751, %v755
    %v760 = vand.u32 2147483647, %v735
    %vm761 = vcmp.eq.f32.partialorder %v760, 8.507059e+37
    %v762 = vand.u32 %v735, 2147483648
    %v763 = vor.u32 1.1754944e-38, %v762
    %v764 = vsel %vm761, %v763, %v759
    %v765 = vmul.f32 1.0, %v764
    %v766 = vtanh.pop %v726
    %v767 = vtanh.pop %v727
    %v768 = vmul.f32 %v750, %v635
    %770 = vrot.lane.b32.xlu0 %v766, 64
    %v771 = vpop.permute.xlu0 %770
    %v773 = vmul.f32 %v750, %v771
    %775 = vrot.lane.b32.xlu0 %v773, 32
    %v776 = vpop.permute.xlu0 %775
    %v778 = vadd.f32 %v768, %v776
    %v779 = vtanh.pop %v778
    %781 = vrot.lane.b32.xlu0 %v779, 64
    %v782 = vpop.permute.xlu0 %781
    %v784 = vmul.f32 %v750, %v782
    %v785 = vmul.f32 %v765, %v652
    %787 = vrot.lane.b32.xlu0 %v767, 64
    %v788 = vpop.permute.xlu0 %787
    %v790 = vmul.f32 %v765, %v788
    %792 = vrot.lane.b32.xlu0 %v790, 32
    %v793 = vpop.permute.xlu0 %792
    %v795 = vadd.f32 %v785, %v793
    %v796 = vtanh.pop %v795
    %798 = vrot.lane.b32.xlu0 %v796, 64
    %v799 = vpop.permute.xlu0 %798
    %v801 = vmul.f32 %v765, %v799
    %803 = vrot.lane.b32.xlu0 %v784, 32
    %v804 = vpop.permute.xlu0 %803
    %s806 = scalar_lea.vmem [#allocation3], 24
    %807 = vst.msk [vmem:[%s806] sm:$0xff] %vm377, %v804
    %809 = vrot.lane.b32.xlu0 %v801, 32
    %v810 = vpop.permute.xlu0 %809
    %s812 = scalar_lea.vmem [#allocation4], 32
    %813 = vst.msk [vmem:[%s812] sm:$0xff] %vm377, %v810
    %814 = vrot.lane.b32.xlu0 %v801, 64
    %v815 = vpop.permute.xlu0 %814
    %v817 = vsel %vm377, %v804, %v815
    %v819 = vsel %vm245, %v817, 0
    %821 = vmatpush.msra.mxu0 0.0
    %822 = vmatpush.msra.mxu0 0.0
    %823 = vmatpush.msra.mxu0 0.0
    %824 = vmatpush.msra.mxu0 0.0
    %825 = vmatpush.msra.mxu0 0.0
    %826 = vmatpush.msra.mxu0 0.0
    %827 = vmatpush.msra.mxu0 0.0
    %828 = vmatpush.msra.mxu0 0.0
    %829 = vmatpush.msra.mxu0 %v243
    %830 = vmatpush.msra.mxu0 %v241
    %831 = vmatpush.msra.mxu0 %v239
    %832 = vmatpush.msra.mxu0 %v237
    %833 = vmatpush.msra.mxu0 %v235
    %834 = vmatpush.msra.mxu0 %v233
    %835 = vmatpush.msra.mxu0 %v231
    %836 = vmatpush.msra.mxu0 %v229
    %837 = vmatmul.f32.gmra.mxu0 %v819
    %v838 = vpop.f32.mrf.mxu0
    %v839 = vadd.f32 0.0, %v838
    %840 = vdwg.mxu0
    %841 = vmatpush.msra.mxu0 0.0
    %842 = vmatpush.msra.mxu0 0.0
    %843 = vmatpush.msra.mxu0 0.0
    %844 = vmatpush.msra.mxu0 0.0
    %845 = vmatpush.msra.mxu0 0.0
    %846 = vmatpush.msra.mxu0 0.0
    %847 = vmatpush.msra.mxu0 0.0
    %848 = vmatpush.msra.mxu0 0.0
    %849 = vmatpush.msra.mxu0 %v244
    %850 = vmatpush.msra.mxu0 %v242
    %851 = vmatpush.msra.mxu0 %v240
    %852 = vmatpush.msra.mxu0 %v238
    %853 = vmatpush.msra.mxu0 %v236
    %854 = vmatpush.msra.mxu0 %v234
    %855 = vmatpush.msra.mxu0 %v232
    %856 = vmatpush.msra.mxu0 %v230
    %857 = vmatmul.f32.gmra.mxu0 %v819
    %v858 = vpop.f32.mrf.mxu0
    %v859 = vadd.f32 0.0, %v858
    %860 = vdwg.mxu0
    %v861 = vld [vmem:[%s724] sm:$0xff]
    %v862 = vld [vmem:[%s720 + $0x8] sm:$0xff]
    %v863 = vadd.f32 %v861, %v839
    %v864 = vadd.f32 %v862, %v859
    %v865 = vxor.u32 %v863, 2147483648
    %v866 = vxor.u32 %v864, 2147483648
    %v867 = vmul.f32 %v865, 1.442695
    %v868 = vpow.pop %v867
    %v869 = vmul.f32 %v866, 1.442695
    %v870 = vpow.pop %v869
    %v871 = vadd.f32 %v868, 1.0
    %v872 = vadd.f32 %v870, 1.0
    %v873 = vrcp.pop %v871
    %v874 = vmul.f32 %v871, %v873
    %v875 = vsub.f32 1.0, %v874
    %v876 = vmul.f32 %v873, %v875
    %v877 = vadd.f32 %v873, %v876
    %vm878 = vweird.f32 %v871
    %vm879 = vweird.f32 %v873
    %vm880 = vmor %vm878, %vm879
    %v881 = vsel %vm880, %v873, %v877
    %v882 = vand.u32 2147483647, %v871
    %vm883 = vcmp.eq.f32.partialorder %v882, 8.507059e+37
    %v884 = vand.u32 %v871, 2147483648
    %v885 = vor.u32 1.1754944e-38, %v884
    %v886 = vsel %vm883, %v885, %v881
    %v887 = vmul.f32 1.0, %v886
    %v888 = vrcp.pop %v872
    %v889 = vmul.f32 %v872, %v888
    %v890 = vsub.f32 1.0, %v889
    %v891 = vmul.f32 %v888, %v890
    %v892 = vadd.f32 %v888, %v891
    %vm893 = vweird.f32 %v872
    %vm894 = vweird.f32 %v888
    %vm895 = vmor %vm893, %vm894
    %v896 = vsel %vm895, %v888, %v892
    %v897 = vand.u32 2147483647, %v872
    %vm898 = vcmp.eq.f32.partialorder %v897, 8.507059e+37
    %v899 = vand.u32 %v872, 2147483648
    %v900 = vor.u32 1.1754944e-38, %v899
    %v901 = vsel %vm898, %v900, %v896
    %v902 = vmul.f32 1.0, %v901
    %v903 = vtanh.pop %v863
    %v904 = vtanh.pop %v864
    %v905 = vmul.f32 %v887, %v778
    %907 = vrot.lane.b32.xlu0 %v903, 64
    %v908 = vpop.permute.xlu0 %907
    %v910 = vmul.f32 %v887, %v908
    %912 = vrot.lane.b32.xlu0 %v910, 32
    %v913 = vpop.permute.xlu0 %912
    %v915 = vadd.f32 %v905, %v913
    %v916 = vtanh.pop %v915
    %918 = vrot.lane.b32.xlu0 %v916, 64
    %v919 = vpop.permute.xlu0 %918
    %v921 = vmul.f32 %v887, %v919
    %v922 = vmul.f32 %v902, %v795
    %924 = vrot.lane.b32.xlu0 %v904, 64
    %v925 = vpop.permute.xlu0 %924
    %v927 = vmul.f32 %v902, %v925
    %929 = vrot.lane.b32.xlu0 %v927, 32
    %v930 = vpop.permute.xlu0 %929
    %v932 = vadd.f32 %v922, %v930
    %v933 = vtanh.pop %v932
    %935 = vrot.lane.b32.xlu0 %v933, 64
    %v936 = vpop.permute.xlu0 %935
    %v938 = vmul.f32 %v902, %v936
    %940 = vrot.lane.b32.xlu0 %v921, 32
    %v941 = vpop.permute.xlu0 %940
    %s943 = scalar_lea.vmem [#allocation3], 32
    %944 = vst.msk [vmem:[%s943] sm:$0xff] %vm377, %v941
    %946 = vrot.lane.b32.xlu0 %v938, 32
    %v947 = vpop.permute.xlu0 %946
    %s949 = scalar_lea.vmem [#allocation4], 24
    %950 = vst.msk [vmem:[%s949] sm:$0xff] %vm377, %v947
    %951 = vrot.lane.b32.xlu0 %v938, 64
    %v952 = vpop.permute.xlu0 %951
    %v954 = vsel %vm377, %v941, %v952
    %v956 = vsel %vm245, %v954, 0
    %958 = vmatpush.msra.mxu0 0.0
    %959 = vmatpush.msra.mxu0 0.0
    %960 = vmatpush.msra.mxu0 0.0
    %961 = vmatpush.msra.mxu0 0.0
    %962 = vmatpush.msra.mxu0 0.0
    %963 = vmatpush.msra.mxu0 0.0
    %964 = vmatpush.msra.mxu0 0.0
    %965 = vmatpush.msra.mxu0 0.0
    %966 = vmatpush.msra.mxu0 %v243
    %967 = vmatpush.msra.mxu0 %v241
    %968 = vmatpush.msra.mxu0 %v239
    %969 = vmatpush.msra.mxu0 %v237
    %970 = vmatpush.msra.mxu0 %v235
    %971 = vmatpush.msra.mxu0 %v233
    %972 = vmatpush.msra.mxu0 %v231
    %973 = vmatpush.msra.mxu0 %v229
    %974 = vmatmul.f32.gmra.mxu0 %v956
    %v975 = vpop.f32.mrf.mxu0
    %v976 = vadd.f32 0.0, %v975
    %977 = vdwg.mxu0
    %978 = vmatpush.msra.mxu0 0.0
    %979 = vmatpush.msra.mxu0 0.0
    %980 = vmatpush.msra.mxu0 0.0
    %981 = vmatpush.msra.mxu0 0.0
    %982 = vmatpush.msra.mxu0 0.0
    %983 = vmatpush.msra.mxu0 0.0
    %984 = vmatpush.msra.mxu0 0.0
    %985 = vmatpush.msra.mxu0 0.0
    %986 = vmatpush.msra.mxu0 %v244
    %987 = vmatpush.msra.mxu0 %v242
    %988 = vmatpush.msra.mxu0 %v240
    %989 = vmatpush.msra.mxu0 %v238
    %990 = vmatpush.msra.mxu0 %v236
    %991 = vmatpush.msra.mxu0 %v234
    %992 = vmatpush.msra.mxu0 %v232
    %993 = vmatpush.msra.mxu0 %v230
    %994 = vmatmul.f32.gmra.mxu0 %v956
    %v995 = vpop.f32.mrf.mxu0
    %v996 = vadd.f32 0.0, %v995
    %997 = vdwg.mxu0
    %v998 = vld [vmem:[%s581] sm:$0xff]
    %v999 = vld [vmem:[%s577 + $0x8] sm:$0xff]
    %v1000 = vadd.f32 %v998, %v976
    %v1001 = vadd.f32 %v999, %v996
    %v1002 = vxor.u32 %v1000, 2147483648
    %v1003 = vxor.u32 %v1001, 2147483648
    %v1004 = vmul.f32 %v1002, 1.442695
    %v1005 = vpow.pop %v1004
    %v1006 = vmul.f32 %v1003, 1.442695
    %v1007 = vpow.pop %v1006
    %v1008 = vadd.f32 %v1005, 1.0
    %v1009 = vadd.f32 %v1007, 1.0
    %v1010 = vrcp.pop %v1008
    %v1011 = vmul.f32 %v1008, %v1010
    %v1012 = vsub.f32 1.0, %v1011
    %v1013 = vmul.f32 %v1010, %v1012
    %v1014 = vadd.f32 %v1010, %v1013
    %vm1015 = vweird.f32 %v1008
    %vm1016 = vweird.f32 %v1010
    %vm1017 = vmor %vm1015, %vm1016
    %v1018 = vsel %vm1017, %v1010, %v1014
    %v1019 = vand.u32 2147483647, %v1008
    %vm1020 = vcmp.eq.f32.partialorder %v1019, 8.507059e+37
    %v1021 = vand.u32 %v1008, 2147483648
    %v1022 = vor.u32 1.1754944e-38, %v1021
    %v1023 = vsel %vm1020, %v1022, %v1018
    %v1024 = vmul.f32 1.0, %v1023
    %v1025 = vrcp.pop %v1009
    %v1026 = vmul.f32 %v1009, %v1025
    %v1027 = vsub.f32 1.0, %v1026
    %v1028 = vmul.f32 %v1025, %v1027
    %v1029 = vadd.f32 %v1025, %v1028
    %vm1030 = vweird.f32 %v1009
    %vm1031 = vweird.f32 %v1025
    %vm1032 = vmor %vm1030, %vm1031
    %v1033 = vsel %vm1032, %v1025, %v1029
    %v1034 = vand.u32 2147483647, %v1009
    %vm1035 = vcmp.eq.f32.partialorder %v1034, 8.507059e+37
    %v1036 = vand.u32 %v1009, 2147483648
    %v1037 = vor.u32 1.1754944e-38, %v1036
    %v1038 = vsel %vm1035, %v1037, %v1033
    %v1039 = vmul.f32 1.0, %v1038
    %v1040 = vtanh.pop %v1000
    %v1041 = vtanh.pop %v1001
    %v1042 = vmul.f32 %v1024, %v915
    %1044 = vrot.lane.b32.xlu0 %v1040, 64
    %v1045 = vpop.permute.xlu0 %1044
    %v1047 = vmul.f32 %v1024, %v1045
    %1049 = vrot.lane.b32.xlu0 %v1047, 32
    %v1050 = vpop.permute.xlu0 %1049
    %v1052 = vadd.f32 %v1042, %v1050
    %v1053 = vtanh.pop %v1052
    %1055 = vrot.lane.b32.xlu0 %v1053, 64
    %v1056 = vpop.permute.xlu0 %1055
    %v1058 = vmul.f32 %v1024, %v1056
    %v1059 = vmul.f32 %v1039, %v932
    %1061 = vrot.lane.b32.xlu0 %v1041, 64
    %v1062 = vpop.permute.xlu0 %1061
    %v1064 = vmul.f32 %v1039, %v1062
    %1066 = vrot.lane.b32.xlu0 %v1064, 32
    %v1067 = vpop.permute.xlu0 %1066
    %v1069 = vadd.f32 %v1059, %v1067
    %v1070 = vtanh.pop %v1069
    %1072 = vrot.lane.b32.xlu0 %v1070, 64
    %v1073 = vpop.permute.xlu0 %1072
    %v1075 = vmul.f32 %v1039, %v1073
    %1077 = vrot.lane.b32.xlu0 %v1058, 32
    %v1078 = vpop.permute.xlu0 %1077
    %s1080 = scalar_lea.vmem [#allocation3], 40
    %1081 = vst.msk [vmem:[%s1080] sm:$0xff] %vm377, %v1078
    %1083 = vrot.lane.b32.xlu0 %v1075, 32
    %v1084 = vpop.permute.xlu0 %1083
    %s1086 = scalar_lea.vmem [#allocation4], 16
    %1087 = vst.msk [vmem:[%s1086] sm:$0xff] %vm377, %v1084
    %1088 = vrot.lane.b32.xlu0 %v1075, 64
    %v1089 = vpop.permute.xlu0 %1088
    %v1091 = vsel %vm377, %v1078, %v1089
    %v1093 = vsel %vm245, %v1091, 0
    %1095 = vmatpush.msra.mxu0 0.0
    %1096 = vmatpush.msra.mxu0 0.0
    %1097 = vmatpush.msra.mxu0 0.0
    %1098 = vmatpush.msra.mxu0 0.0
    %1099 = vmatpush.msra.mxu0 0.0
    %1100 = vmatpush.msra.mxu0 0.0
    %1101 = vmatpush.msra.mxu0 0.0
    %1102 = vmatpush.msra.mxu0 0.0
    %1103 = vmatpush.msra.mxu0 %v243
    %1104 = vmatpush.msra.mxu0 %v241
    %1105 = vmatpush.msra.mxu0 %v239
    %1106 = vmatpush.msra.mxu0 %v237
    %1107 = vmatpush.msra.mxu0 %v235
    %1108 = vmatpush.msra.mxu0 %v233
    %1109 = vmatpush.msra.mxu0 %v231
    %1110 = vmatpush.msra.mxu0 %v229
    %1111 = vmatmul.f32.gmra.mxu0 %v1093
    %v1112 = vpop.f32.mrf.mxu0
    %v1113 = vadd.f32 0.0, %v1112
    %1114 = vdwg.mxu0
    %1115 = vmatpush.msra.mxu0 0.0
    %1116 = vmatpush.msra.mxu0 0.0
    %1117 = vmatpush.msra.mxu0 0.0
    %1118 = vmatpush.msra.mxu0 0.0
    %1119 = vmatpush.msra.mxu0 0.0
    %1120 = vmatpush.msra.mxu0 0.0
    %1121 = vmatpush.msra.mxu0 0.0
    %1122 = vmatpush.msra.mxu0 0.0
    %1123 = vmatpush.msra.mxu0 %v244
    %1124 = vmatpush.msra.mxu0 %v242
    %1125 = vmatpush.msra.mxu0 %v240
    %1126 = vmatpush.msra.mxu0 %v238
    %1127 = vmatpush.msra.mxu0 %v236
    %1128 = vmatpush.msra.mxu0 %v234
    %1129 = vmatpush.msra.mxu0 %v232
    %1130 = vmatpush.msra.mxu0 %v230
    %1131 = vmatmul.f32.gmra.mxu0 %v1093
    %v1132 = vpop.f32.mrf.mxu0
    %v1133 = vadd.f32 0.0, %v1132
    %1134 = vdwg.mxu0
    %v1135 = vld [vmem:[%s438] sm:$0xff]
    %v1136 = vld [vmem:[%s434 + $0x8] sm:$0xff]
    %v1137 = vadd.f32 %v1135, %v1113
    %v1138 = vadd.f32 %v1136, %v1133
    %v1139 = vxor.u32 %v1137, 2147483648
    %v1140 = vxor.u32 %v1138, 2147483648
    %v1141 = vmul.f32 %v1139, 1.442695
    %v1142 = vpow.pop %v1141
    %v1143 = vmul.f32 %v1140, 1.442695
    %v1144 = vpow.pop %v1143
    %v1145 = vadd.f32 %v1142, 1.0
    %v1146 = vadd.f32 %v1144, 1.0
    %v1147 = vrcp.pop %v1145
    %v1148 = vmul.f32 %v1145, %v1147
    %v1149 = vsub.f32 1.0, %v1148
    %v1150 = vmul.f32 %v1147, %v1149
    %v1151 = vadd.f32 %v1147, %v1150
    %vm1152 = vweird.f32 %v1145
    %vm1153 = vweird.f32 %v1147
    %vm1154 = vmor %vm1152, %vm1153
    %v1155 = vsel %vm1154, %v1147, %v1151
    %v1156 = vand.u32 2147483647, %v1145
    %vm1157 = vcmp.eq.f32.partialorder %v1156, 8.507059e+37
    %v1158 = vand.u32 %v1145, 2147483648
    %v1159 = vor.u32 1.1754944e-38, %v1158
    %v1160 = vsel %vm1157, %v1159, %v1155
    %v1161 = vmul.f32 1.0, %v1160
    %v1162 = vrcp.pop %v1146
    %v1163 = vmul.f32 %v1146, %v1162
    %v1164 = vsub.f32 1.0, %v1163
    %v1165 = vmul.f32 %v1162, %v1164
    %v1166 = vadd.f32 %v1162, %v1165
    %vm1167 = vweird.f32 %v1146
    %vm1168 = vweird.f32 %v1162
    %vm1169 = vmor %vm1167, %vm1168
    %v1170 = vsel %vm1169, %v1162, %v1166
    %v1171 = vand.u32 2147483647, %v1146
    %vm1172 = vcmp.eq.f32.partialorder %v1171, 8.507059e+37
    %v1173 = vand.u32 %v1146, 2147483648
    %v1174 = vor.u32 1.1754944e-38, %v1173
    %v1175 = vsel %vm1172, %v1174, %v1170
    %v1176 = vmul.f32 1.0, %v1175
    %v1177 = vtanh.pop %v1137
    %v1178 = vtanh.pop %v1138
    %v1179 = vmul.f32 %v1161, %v1052
    %1181 = vrot.lane.b32.xlu0 %v1177, 64
    %v1182 = vpop.permute.xlu0 %1181
    %v1184 = vmul.f32 %v1161, %v1182
    %1186 = vrot.lane.b32.xlu0 %v1184, 32
    %v1187 = vpop.permute.xlu0 %1186
    %v1189 = vadd.f32 %v1179, %v1187
    %v1190 = vtanh.pop %v1189
    %1192 = vrot.lane.b32.xlu0 %v1190, 64
    %v1193 = vpop.permute.xlu0 %1192
    %v1195 = vmul.f32 %v1161, %v1193
    %v1196 = vmul.f32 %v1176, %v1069
    %1198 = vrot.lane.b32.xlu0 %v1178, 64
    %v1199 = vpop.permute.xlu0 %1198
    %v1201 = vmul.f32 %v1176, %v1199
    %1203 = vrot.lane.b32.xlu0 %v1201, 32
    %v1204 = vpop.permute.xlu0 %1203
    %v1206 = vadd.f32 %v1196, %v1204
    %v1207 = vtanh.pop %v1206
    %1209 = vrot.lane.b32.xlu0 %v1207, 64
    %v1210 = vpop.permute.xlu0 %1209
    %v1212 = vmul.f32 %v1176, %v1210
    %1214 = vrot.lane.b32.xlu0 %v1195, 32
    %v1215 = vpop.permute.xlu0 %1214
    %s1217 = scalar_lea.vmem [#allocation3], 48
    %1218 = vst.msk [vmem:[%s1217] sm:$0xff] %vm377, %v1215
    %1220 = vrot.lane.b32.xlu0 %v1212, 32
    %v1221 = vpop.permute.xlu0 %1220
    %s1223 = scalar_lea.vmem [#allocation4], 8
    %1224 = vst.msk [vmem:[%s1223] sm:$0xff] %vm377, %v1221
    %1225 = vrot.lane.b32.xlu0 %v1212, 64
    %v1226 = vpop.permute.xlu0 %1225
    %v1228 = vsel %vm377, %v1215, %v1226
    %v1230 = vsel %vm245, %v1228, 0
    %1232 = vmatpush.msra.mxu0 0.0
    %1233 = vmatpush.msra.mxu0 0.0
    %1234 = vmatpush.msra.mxu0 0.0
    %1235 = vmatpush.msra.mxu0 0.0
    %1236 = vmatpush.msra.mxu0 0.0
    %1237 = vmatpush.msra.mxu0 0.0
    %1238 = vmatpush.msra.mxu0 0.0
    %1239 = vmatpush.msra.mxu0 0.0
    %1240 = vmatpush.msra.mxu0 %v243
    %1241 = vmatpush.msra.mxu0 %v241
    %1242 = vmatpush.msra.mxu0 %v239
    %1243 = vmatpush.msra.mxu0 %v237
    %1244 = vmatpush.msra.mxu0 %v235
    %1245 = vmatpush.msra.mxu0 %v233
    %1246 = vmatpush.msra.mxu0 %v231
    %1247 = vmatpush.msra.mxu0 %v229
    %1248 = vmatmul.f32.gmra.mxu0 %v1230
    %v1249 = vpop.f32.mrf.mxu0
    %v1250 = vadd.f32 0.0, %v1249
    %1251 = vdwg.mxu0
    %1252 = vmatpush.msra.mxu0 0.0
    %1253 = vmatpush.msra.mxu0 0.0
    %1254 = vmatpush.msra.mxu0 0.0
    %1255 = vmatpush.msra.mxu0 0.0
    %1256 = vmatpush.msra.mxu0 0.0
    %1257 = vmatpush.msra.mxu0 0.0
    %1258 = vmatpush.msra.mxu0 0.0
    %1259 = vmatpush.msra.mxu0 0.0
    %1260 = vmatpush.msra.mxu0 %v244
    %1261 = vmatpush.msra.mxu0 %v242
    %1262 = vmatpush.msra.mxu0 %v240
    %1263 = vmatpush.msra.mxu0 %v238
    %1264 = vmatpush.msra.mxu0 %v236
    %1265 = vmatpush.msra.mxu0 %v234
    %1266 = vmatpush.msra.mxu0 %v232
    %1267 = vmatpush.msra.mxu0 %v230
    %1268 = vmatmul.f32.gmra.mxu0 %v1230
    %v1269 = vpop.f32.mrf.mxu0
    %v1270 = vadd.f32 0.0, %v1269
    %1271 = vdwg.mxu0
    %v1272 = vld [vmem:[%s295] sm:$0xff]
    %v1273 = vld [vmem:[%s291 + $0x8] sm:$0xff]
    %v1274 = vadd.f32 %v1272, %v1250
    %v1275 = vadd.f32 %v1273, %v1270
    %v1276 = vxor.u32 %v1274, 2147483648
    %v1277 = vxor.u32 %v1275, 2147483648
    %v1278 = vmul.f32 %v1276, 1.442695
    %v1279 = vpow.pop %v1278
    %v1280 = vmul.f32 %v1277, 1.442695
    %v1281 = vpow.pop %v1280
    %v1282 = vadd.f32 %v1279, 1.0
    %v1283 = vadd.f32 %v1281, 1.0
    %v1284 = vrcp.pop %v1282
    %v1285 = vmul.f32 %v1282, %v1284
    %v1286 = vsub.f32 1.0, %v1285
    %v1287 = vmul.f32 %v1284, %v1286
    %v1288 = vadd.f32 %v1284, %v1287
    %vm1289 = vweird.f32 %v1282
    %vm1290 = vweird.f32 %v1284
    %vm1291 = vmor %vm1289, %vm1290
    %v1292 = vsel %vm1291, %v1284, %v1288
    %v1293 = vand.u32 2147483647, %v1282
    %vm1294 = vcmp.eq.f32.partialorder %v1293, 8.507059e+37
    %v1295 = vand.u32 %v1282, 2147483648
    %v1296 = vor.u32 1.1754944e-38, %v1295
    %v1297 = vsel %vm1294, %v1296, %v1292
    %v1298 = vmul.f32 1.0, %v1297
    %v1299 = vrcp.pop %v1283
    %v1300 = vmul.f32 %v1283, %v1299
    %v1301 = vsub.f32 1.0, %v1300
    %v1302 = vmul.f32 %v1299, %v1301
    %v1303 = vadd.f32 %v1299, %v1302
    %vm1304 = vweird.f32 %v1283
    %vm1305 = vweird.f32 %v1299
    %vm1306 = vmor %vm1304, %vm1305
    %v1307 = vsel %vm1306, %v1299, %v1303
    %v1308 = vand.u32 2147483647, %v1283
    %vm1309 = vcmp.eq.f32.partialorder %v1308, 8.507059e+37
    %v1310 = vand.u32 %v1283, 2147483648
    %v1311 = vor.u32 1.1754944e-38, %v1310
    %v1312 = vsel %vm1309, %v1311, %v1307
    %v1313 = vmul.f32 1.0, %v1312
    %v1314 = vtanh.pop %v1274
    %v1315 = vtanh.pop %v1275
    %v1316 = vmul.f32 %v1298, %v1189
    %1318 = vrot.lane.b32.xlu0 %v1314, 64
    %v1319 = vpop.permute.xlu0 %1318
    %v1321 = vmul.f32 %v1298, %v1319
    %1323 = vrot.lane.b32.xlu0 %v1321, 32
    %v1324 = vpop.permute.xlu0 %1323
    %v1326 = vadd.f32 %v1316, %v1324
    %v1327 = vtanh.pop %v1326
    %1329 = vrot.lane.b32.xlu0 %v1327, 64
    %v1330 = vpop.permute.xlu0 %1329
    %v1332 = vmul.f32 %v1298, %v1330
    %v1333 = vmul.f32 %v1313, %v1206
    %1335 = vrot.lane.b32.xlu0 %v1315, 64
    %v1336 = vpop.permute.xlu0 %1335
    %v1338 = vmul.f32 %v1313, %v1336
    %1340 = vrot.lane.b32.xlu0 %v1338, 32
    %v1341 = vpop.permute.xlu0 %1340
    %v1343 = vadd.f32 %v1333, %v1341
    %v1344 = vtanh.pop %v1343
    %1346 = vrot.lane.b32.xlu0 %v1344, 64
    %v1347 = vpop.permute.xlu0 %1346
    %v1349 = vmul.f32 %v1313, %v1347
    %1351 = vrot.lane.b32.xlu0 %v1332, 32
    %v1352 = vpop.permute.xlu0 %1351
    %s1354 = scalar_lea.vmem [#allocation3], 56
    %1355 = vst.msk [vmem:[%s1354] sm:$0xff] %vm377, %v1352
    %1357 = vrot.lane.b32.xlu0 %v1349, 32
    %v1358 = vpop.permute.xlu0 %1357
    %1360 = vst.msk [vmem:[#allocation4] sm:$0xff] %vm377, %v1358
    %v1361 = vld [vmem:[#allocation3] sm:$0xff]
    %v1362 = vld [vmem:[#allocation3 + $0x8] sm:$0xff]
    %v1363 = vld [vmem:[#allocation3 + $0x10] sm:$0xff]
    %v1364 = vld [vmem:[#allocation3 + $0x18] sm:$0xff]
    %v1365 = vld [vmem:[#allocation3 + $0x20] sm:$0xff]
    %v1366 = vld [vmem:[#allocation3 + $0x28] sm:$0xff]
    %v1367 = vld [vmem:[#allocation3 + $0x30] sm:$0xff]
    %v1368 = vld [vmem:[#allocation3 + $0x38] sm:$0xff]
    %v1369 = vld [vmem:[#allocation4] sm:$0xff]
    %v1370 = vld [vmem:[#allocation4 + $0x8] sm:$0xff]
    %v1371 = vld [vmem:[#allocation4 + $0x10] sm:$0xff]
    %v1372 = vld [vmem:[#allocation4 + $0x18] sm:$0xff]
    %v1373 = vld [vmem:[#allocation4 + $0x20] sm:$0xff]
    %v1374 = vld [vmem:[#allocation4 + $0x28] sm:$0xff]
    %v1375 = vld [vmem:[#allocation4 + $0x30] sm:$0xff]
    %v1376 = vld [vmem:[#allocation4 + $0x38] sm:$0xff]
    %1385 = vrot.lane.b32.xlu0 %v1369, 32
    %v1386 = vpop.permute.xlu0 %1385
    %1387 = vrot.lane.b32.xlu0 %v1370, 32
    %v1388 = vpop.permute.xlu0 %1387
    %1389 = vrot.lane.b32.xlu0 %v1371, 32
    %v1390 = vpop.permute.xlu0 %1389
    %1391 = vrot.lane.b32.xlu0 %v1372, 32
    %v1392 = vpop.permute.xlu0 %1391
    %1393 = vrot.lane.b32.xlu0 %v1373, 32
    %v1394 = vpop.permute.xlu0 %1393
    %1395 = vrot.lane.b32.xlu0 %v1374, 32
    %v1396 = vpop.permute.xlu0 %1395
    %1397 = vrot.lane.b32.xlu0 %v1375, 32
    %v1398 = vpop.permute.xlu0 %1397
    %1399 = vrot.lane.b32.xlu0 %v1376, 32
    %v1400 = vpop.permute.xlu0 %1399
    %v1409 = vsel %vm377, %v1361, %v1386
    %v1410 = vsel %vm377, %v1362, %v1388
    %v1411 = vsel %vm377, %v1363, %v1390
    %v1412 = vsel %vm377, %v1364, %v1392
    %v1413 = vsel %vm377, %v1365, %v1394
    %v1414 = vsel %vm377, %v1366, %v1396
    %v1415 = vsel %vm377, %v1367, %v1398
    %v1416 = vsel %vm377, %v1368, %v1400
    %v1417 = vld [vmem:[#allocation9] sm:$0xff]
    %v1418 = vld [vmem:[#allocation9 + $0x8] sm:$0xff]
    %v1419 = vld [vmem:[#allocation9 + $0x10] sm:$0xff]
    %v1420 = vld [vmem:[#allocation9 + $0x18] sm:$0xff]
    %v1421 = vld [vmem:[#allocation9 + $0x20] sm:$0xff]
    %v1422 = vld [vmem:[#allocation9 + $0x28] sm:$0xff]
    %v1423 = vld [vmem:[#allocation9 + $0x30] sm:$0xff]
    %v1424 = vld [vmem:[#allocation9 + $0x38] sm:$0xff]
    %v1425 = vld [vmem:[#allocation9 + $0x40] sm:$0xff]
    %v1426 = vld [vmem:[#allocation9 + $0x48] sm:$0xff]
    %v1427 = vld [vmem:[#allocation9 + $0x50] sm:$0xff]
    %v1428 = vld [vmem:[#allocation9 + $0x58] sm:$0xff]
    %v1429 = vld [vmem:[#allocation9 + $0x60] sm:$0xff]
    %v1430 = vld [vmem:[#allocation9 + $0x68] sm:$0xff]
    %v1431 = vld [vmem:[#allocation9 + $0x70] sm:$0xff]
    %v1432 = vld [vmem:[#allocation9 + $0x78] sm:$0xff]
    %v1433 = vld [vmem:[%s5] sm:$0x3]
    %v1435 = vperm.slane %v1433, 0
    %v1436 = vperm.slane %v1433, 1
    %v1440 = vsel %vm245, %v1409, 0
    %v1443 = vsel %vm245, %v1410, 0
    %v1446 = vsel %vm245, %v1411, 0
    %v1449 = vsel %vm245, %v1412, 0
    %v1452 = vsel %vm245, %v1413, 0
    %v1455 = vsel %vm245, %v1414, 0
    %v1458 = vsel %vm245, %v1415, 0
    %v1461 = vsel %vm245, %v1416, 0
    %1463 = vmatpush.msra.mxu0 0.0
    %1464 = vmatpush.msra.mxu0 0.0
    %1465 = vmatpush.msra.mxu0 0.0
    %1466 = vmatpush.msra.mxu0 0.0
    %1467 = vmatpush.msra.mxu0 0.0
    %1468 = vmatpush.msra.mxu0 0.0
    %1469 = vmatpush.msra.mxu0 0.0
    %1470 = vmatpush.msra.mxu0 0.0
    %1471 = vmatpush.msra.mxu0 %v1431
    %1472 = vmatpush.msra.mxu0 %v1429
    %1473 = vmatpush.msra.mxu0 %v1427
    %1474 = vmatpush.msra.mxu0 %v1425
    %1475 = vmatpush.msra.mxu0 %v1423
    %1476 = vmatpush.msra.mxu0 %v1421
    %1477 = vmatpush.msra.mxu0 %v1419
    %1478 = vmatpush.msra.mxu0 %v1417
    %1479 = vmatmul.f32.gmra.mxu0 %v1440
    %v1480 = vpop.f32.mrf.mxu0
    %v1481 = vadd.f32 %v1435, %v1480
    %1482 = vmatmul.f32.gmra.mxu0 %v1443
    %v1483 = vpop.f32.mrf.mxu0
    %v1484 = vadd.f32 %v1435, %v1483
    %1485 = vmatmul.f32.gmra.mxu0 %v1446
    %v1486 = vpop.f32.mrf.mxu0
    %v1487 = vadd.f32 %v1435, %v1486
    %1488 = vmatmul.f32.gmra.mxu0 %v1449
    %v1489 = vpop.f32.mrf.mxu0
    %v1490 = vadd.f32 %v1435, %v1489
    %1491 = vmatmul.f32.gmra.mxu0 %v1452
    %v1492 = vpop.f32.mrf.mxu0
    %v1493 = vadd.f32 %v1435, %v1492
    %1494 = vmatmul.f32.gmra.mxu0 %v1455
    %v1495 = vpop.f32.mrf.mxu0
    %v1496 = vadd.f32 %v1435, %v1495
    %1497 = vmatmul.f32.gmra.mxu0 %v1458
    %v1498 = vpop.f32.mrf.mxu0
    %v1499 = vadd.f32 %v1435, %v1498
    %1500 = vmatmul.f32.gmra.mxu0 %v1461
    %v1501 = vpop.f32.mrf.mxu0
    %v1502 = vadd.f32 %v1435, %v1501
    %1503 = vdwg.mxu0
    %1504 = vmatpush.msra.mxu0 0.0
    %1505 = vmatpush.msra.mxu0 0.0
    %1506 = vmatpush.msra.mxu0 0.0
    %1507 = vmatpush.msra.mxu0 0.0
    %1508 = vmatpush.msra.mxu0 0.0
    %1509 = vmatpush.msra.mxu0 0.0
    %1510 = vmatpush.msra.mxu0 0.0
    %1511 = vmatpush.msra.mxu0 0.0
    %1512 = vmatpush.msra.mxu0 %v1432
    %1513 = vmatpush.msra.mxu0 %v1430
    %1514 = vmatpush.msra.mxu0 %v1428
    %1515 = vmatpush.msra.mxu0 %v1426
    %1516 = vmatpush.msra.mxu0 %v1424
    %1517 = vmatpush.msra.mxu0 %v1422
    %1518 = vmatpush.msra.mxu0 %v1420
    %1519 = vmatpush.msra.mxu0 %v1418
    %1520 = vmatmul.f32.gmra.mxu0 %v1440
    %v1521 = vpop.f32.mrf.mxu0
    %v1522 = vadd.f32 %v1436, %v1521
    %1523 = vmatmul.f32.gmra.mxu0 %v1443
    %v1524 = vpop.f32.mrf.mxu0
    %v1525 = vadd.f32 %v1436, %v1524
    %1526 = vmatmul.f32.gmra.mxu0 %v1446
    %v1527 = vpop.f32.mrf.mxu0
    %v1528 = vadd.f32 %v1436, %v1527
    %1529 = vmatmul.f32.gmra.mxu0 %v1449
    %v1530 = vpop.f32.mrf.mxu0
    %v1531 = vadd.f32 %v1436, %v1530
    %1532 = vmatmul.f32.gmra.mxu0 %v1452
    %v1533 = vpop.f32.mrf.mxu0
    %v1534 = vadd.f32 %v1436, %v1533
    %1535 = vmatmul.f32.gmra.mxu0 %v1455
    %v1536 = vpop.f32.mrf.mxu0
    %v1537 = vadd.f32 %v1436, %v1536
    %1538 = vmatmul.f32.gmra.mxu0 %v1458
    %v1539 = vpop.f32.mrf.mxu0
    %v1540 = vadd.f32 %v1436, %v1539
    %1541 = vmatmul.f32.gmra.mxu0 %v1461
    %v1542 = vpop.f32.mrf.mxu0
    %v1543 = vadd.f32 %v1436, %v1542
    %1544 = vdwg.mxu0
    %1545 = vst [vmem:[#allocation2] sm:$0xff] %v1481
    %1546 = vst [vmem:[#allocation2 + $0x8] sm:$0xff] %v1522
    %1547 = vst [vmem:[#allocation2 + $0x10] sm:$0xff] %v1484
    %1548 = vst [vmem:[#allocation2 + $0x18] sm:$0xff] %v1525
    %1549 = vst [vmem:[#allocation2 + $0x20] sm:$0xff] %v1487
    %1550 = vst [vmem:[#allocation2 + $0x28] sm:$0xff] %v1528
    %1551 = vst [vmem:[#allocation2 + $0x30] sm:$0xff] %v1490
    %1552 = vst [vmem:[#allocation2 + $0x38] sm:$0xff] %v1531
    %1553 = vst [vmem:[#allocation2 + $0x40] sm:$0xff] %v1493
    %1554 = vst [vmem:[#allocation2 + $0x48] sm:$0xff] %v1534
    %1555 = vst [vmem:[#allocation2 + $0x50] sm:$0xff] %v1496
    %1556 = vst [vmem:[#allocation2 + $0x58] sm:$0xff] %v1537
    %1557 = vst [vmem:[#allocation2 + $0x60] sm:$0xff] %v1499
    %1558 = vst [vmem:[#allocation2 + $0x68] sm:$0xff] %v1540
    %1559 = vst [vmem:[#allocation2 + $0x70] sm:$0xff] %v1502
    %1560 = vst [vmem:[#allocation2 + $0x78] sm:$0xff] %v1543
    %v1561 = vld [vmem:[#allocation11] sm:$0xff]
    %v1562 = vld [vmem:[#allocation11 + $0x8] sm:$0xff]
    %v1563 = vld [vmem:[#allocation11 + $0x10] sm:$0xff]
    %v1564 = vld [vmem:[#allocation11 + $0x18] sm:$0xff]
    %v1565 = vld [vmem:[#allocation11 + $0x20] sm:$0xff]
    %v1566 = vld [vmem:[#allocation11 + $0x28] sm:$0xff]
    %v1567 = vld [vmem:[#allocation11 + $0x30] sm:$0xff]
    %v1568 = vld [vmem:[#allocation11 + $0x38] sm:$0xff]
    %v1569 = vld [vmem:[#allocation11 + $0x40] sm:$0xff]
    %v1570 = vld [vmem:[#allocation11 + $0x48] sm:$0xff]
    %v1571 = vld [vmem:[#allocation11 + $0x50] sm:$0xff]
    %v1572 = vld [vmem:[#allocation11 + $0x58] sm:$0xff]
    %v1573 = vld [vmem:[#allocation11 + $0x60] sm:$0xff]
    %v1574 = vld [vmem:[#allocation11 + $0x68] sm:$0xff]
    %v1575 = vld [vmem:[#allocation11 + $0x70] sm:$0xff]
    %v1576 = vld [vmem:[#allocation11 + $0x78] sm:$0xff]
    %1577 = vmatpush.msra.mxu0 0.0
    %1578 = vmatpush.msra.mxu0 0.0
    %1579 = vmatpush.msra.mxu0 0.0
    %1580 = vmatpush.msra.mxu0 0.0
    %1581 = vmatpush.msra.mxu0 0.0
    %1582 = vmatpush.msra.mxu0 0.0
    %1583 = vmatpush.msra.mxu0 0.0
    %1584 = vmatpush.msra.mxu0 0.0
    %1585 = vmatpush.msra.mxu0 %v1575
    %1586 = vmatpush.msra.mxu0 %v1573
    %1587 = vmatpush.msra.mxu0 %v1571
    %1588 = vmatpush.msra.mxu0 %v1569
    %1589 = vmatpush.msra.mxu0 %v1567
    %1590 = vmatpush.msra.mxu0 %v1565
    %1591 = vmatpush.msra.mxu0 %v1563
    %1592 = vmatpush.msra.mxu0 %v1561
    %1593 = vmatmul.f32.gmra.mxu0 %v247
    %v1594 = vpop.f32.mrf.mxu0
    %v1595 = vadd.f32 0.0, %v1594
    %1596 = vdwg.mxu0
    %1597 = vmatpush.msra.mxu0 0.0
    %1598 = vmatpush.msra.mxu0 0.0
    %1599 = vmatpush.msra.mxu0 0.0
    %1600 = vmatpush.msra.mxu0 0.0
    %1601 = vmatpush.msra.mxu0 0.0
    %1602 = vmatpush.msra.mxu0 0.0
    %1603 = vmatpush.msra.mxu0 0.0
    %1604 = vmatpush.msra.mxu0 0.0
    %1605 = vmatpush.msra.mxu0 %v1576
    %1606 = vmatpush.msra.mxu0 %v1574
    %1607 = vmatpush.msra.mxu0 %v1572
    %1608 = vmatpush.msra.mxu0 %v1570
    %1609 = vmatpush.msra.mxu0 %v1568
    %1610 = vmatpush.msra.mxu0 %v1566
    %1611 = vmatpush.msra.mxu0 %v1564
    %1612 = vmatpush.msra.mxu0 %v1562
    %1613 = vmatmul.f32.gmra.mxu0 %v247
    %v1614 = vpop.f32.mrf.mxu0
    %v1615 = vadd.f32 0.0, %v1614
    %1616 = vdwg.mxu0
    %v1617 = vld [vmem:[%s291] sm:$0xff]
    %v1618 = vld [vmem:[%s295 + $0x8] sm:$0xff]
    %v1619 = vadd.f32 %v1617, %v1595
    %v1620 = vadd.f32 %v1618, %v1615
    %v1621 = vxor.u32 %v1619, 2147483648
    %v1622 = vxor.u32 %v1620, 2147483648
    %v1623 = vmul.f32 %v1621, 1.442695
    %v1624 = vpow.pop %v1623
    %v1625 = vmul.f32 %v1622, 1.442695
    %v1626 = vpow.pop %v1625
    %v1627 = vadd.f32 %v1624, 1.0
    %v1628 = vadd.f32 %v1626, 1.0
    %v1629 = vrcp.pop %v1627
    %v1630 = vmul.f32 %v1627, %v1629
    %v1631 = vsub.f32 1.0, %v1630
    %v1632 = vmul.f32 %v1629, %v1631
    %v1633 = vadd.f32 %v1629, %v1632
    %vm1634 = vweird.f32 %v1627
    %vm1635 = vweird.f32 %v1629
    %vm1636 = vmor %vm1634, %vm1635
    %v1637 = vsel %vm1636, %v1629, %v1633
    %v1638 = vand.u32 2147483647, %v1627
    %vm1639 = vcmp.eq.f32.partialorder %v1638, 8.507059e+37
    %v1640 = vand.u32 %v1627, 2147483648
    %v1641 = vor.u32 1.1754944e-38, %v1640
    %v1642 = vsel %vm1639, %v1641, %v1637
    %v1643 = vmul.f32 1.0, %v1642
    %v1644 = vrcp.pop %v1628
    %v1645 = vmul.f32 %v1628, %v1644
    %v1646 = vsub.f32 1.0, %v1645
    %v1647 = vmul.f32 %v1644, %v1646
    %v1648 = vadd.f32 %v1644, %v1647
    %vm1649 = vweird.f32 %v1628
    %vm1650 = vweird.f32 %v1644
    %vm1651 = vmor %vm1649, %vm1650
    %v1652 = vsel %vm1651, %v1644, %v1648
    %v1653 = vand.u32 2147483647, %v1628
    %vm1654 = vcmp.eq.f32.partialorder %v1653, 8.507059e+37
    %v1655 = vand.u32 %v1628, 2147483648
    %v1656 = vor.u32 1.1754944e-38, %v1655
    %v1657 = vsel %vm1654, %v1656, %v1652
    %v1658 = vmul.f32 1.0, %v1657
    %v1659 = vtanh.pop %v1619
    %v1660 = vtanh.pop %v1620
    %v1661 = vmul.f32 %v1643, 0.0
    %1663 = vrot.lane.b32.xlu0 %v1659, 64
    %v1664 = vpop.permute.xlu0 %1663
    %v1666 = vmul.f32 %v1643, %v1664
    %1668 = vrot.lane.b32.xlu0 %v1666, 32
    %v1669 = vpop.permute.xlu0 %1668
    %v1671 = vadd.f32 %v1661, %v1669
    %v1672 = vtanh.pop %v1671
    %1674 = vrot.lane.b32.xlu0 %v1672, 64
    %v1675 = vpop.permute.xlu0 %1674
    %v1677 = vmul.f32 %v1643, %v1675
    %v1678 = vmul.f32 %v1658, 0.0
    %1680 = vrot.lane.b32.xlu0 %v1660, 64
    %v1681 = vpop.permute.xlu0 %1680
    %v1683 = vmul.f32 %v1658, %v1681
    %1685 = vrot.lane.b32.xlu0 %v1683, 32
    %v1686 = vpop.permute.xlu0 %1685
    %v1688 = vadd.f32 %v1678, %v1686
    %v1689 = vtanh.pop %v1688
    %1691 = vrot.lane.b32.xlu0 %v1689, 64
    %v1692 = vpop.permute.xlu0 %1691
    %v1694 = vmul.f32 %v1658, %v1692
    %1696 = vrot.lane.b32.xlu0 %v1677, 32
    %v1697 = vpop.permute.xlu0 %1696
    %1699 = vst.msk [vmem:[#allocation3] sm:$0xff] %vm377, %v1697
    %1701 = vrot.lane.b32.xlu0 %v1694, 32
    %v1702 = vpop.permute.xlu0 %1701
    %1704 = vst.msk [vmem:[%s383] sm:$0xff] %vm377, %v1702
    %1705 = vrot.lane.b32.xlu0 %v1694, 64
    %v1706 = vpop.permute.xlu0 %1705
    %v1708 = vsel %vm377, %v1697, %v1706
    %v1710 = vsel %vm245, %v1708, 0
    %1712 = vmatpush.msra.mxu0 0.0
    %1713 = vmatpush.msra.mxu0 0.0
    %1714 = vmatpush.msra.mxu0 0.0
    %1715 = vmatpush.msra.mxu0 0.0
    %1716 = vmatpush.msra.mxu0 0.0
    %1717 = vmatpush.msra.mxu0 0.0
    %1718 = vmatpush.msra.mxu0 0.0
    %1719 = vmatpush.msra.mxu0 0.0
    %1720 = vmatpush.msra.mxu0 %v1575
    %1721 = vmatpush.msra.mxu0 %v1573
    %1722 = vmatpush.msra.mxu0 %v1571
    %1723 = vmatpush.msra.mxu0 %v1569
    %1724 = vmatpush.msra.mxu0 %v1567
    %1725 = vmatpush.msra.mxu0 %v1565
    %1726 = vmatpush.msra.mxu0 %v1563
    %1727 = vmatpush.msra.mxu0 %v1561
    %1728 = vmatmul.f32.gmra.mxu0 %v1710
    %v1729 = vpop.f32.mrf.mxu0
    %v1730 = vadd.f32 0.0, %v1729
    %1731 = vdwg.mxu0
    %1732 = vmatpush.msra.mxu0 0.0
    %1733 = vmatpush.msra.mxu0 0.0
    %1734 = vmatpush.msra.mxu0 0.0
    %1735 = vmatpush.msra.mxu0 0.0
    %1736 = vmatpush.msra.mxu0 0.0
    %1737 = vmatpush.msra.mxu0 0.0
    %1738 = vmatpush.msra.mxu0 0.0
    %1739 = vmatpush.msra.mxu0 0.0
    %1740 = vmatpush.msra.mxu0 %v1576
    %1741 = vmatpush.msra.mxu0 %v1574
    %1742 = vmatpush.msra.mxu0 %v1572
    %1743 = vmatpush.msra.mxu0 %v1570
    %1744 = vmatpush.msra.mxu0 %v1568
    %1745 = vmatpush.msra.mxu0 %v1566
    %1746 = vmatpush.msra.mxu0 %v1564
    %1747 = vmatpush.msra.mxu0 %v1562
    %1748 = vmatmul.f32.gmra.mxu0 %v1710
    %v1749 = vpop.f32.mrf.mxu0
    %v1750 = vadd.f32 0.0, %v1749
    %1751 = vdwg.mxu0
    %v1752 = vld [vmem:[%s434] sm:$0xff]
    %v1753 = vld [vmem:[%s438 + $0x8] sm:$0xff]
    %v1754 = vadd.f32 %v1752, %v1730
    %v1755 = vadd.f32 %v1753, %v1750
    %v1756 = vxor.u32 %v1754, 2147483648
    %v1757 = vxor.u32 %v1755, 2147483648
    %v1758 = vmul.f32 %v1756, 1.442695
    %v1759 = vpow.pop %v1758
    %v1760 = vmul.f32 %v1757, 1.442695
    %v1761 = vpow.pop %v1760
    %v1762 = vadd.f32 %v1759, 1.0
    %v1763 = vadd.f32 %v1761, 1.0
    %v1764 = vrcp.pop %v1762
    %v1765 = vmul.f32 %v1762, %v1764
    %v1766 = vsub.f32 1.0, %v1765
    %v1767 = vmul.f32 %v1764, %v1766
    %v1768 = vadd.f32 %v1764, %v1767
    %vm1769 = vweird.f32 %v1762
    %vm1770 = vweird.f32 %v1764
    %vm1771 = vmor %vm1769, %vm1770
    %v1772 = vsel %vm1771, %v1764, %v1768
    %v1773 = vand.u32 2147483647, %v1762
    %vm1774 = vcmp.eq.f32.partialorder %v1773, 8.507059e+37
    %v1775 = vand.u32 %v1762, 2147483648
    %v1776 = vor.u32 1.1754944e-38, %v1775
    %v1777 = vsel %vm1774, %v1776, %v1772
    %v1778 = vmul.f32 1.0, %v1777
    %v1779 = vrcp.pop %v1763
    %v1780 = vmul.f32 %v1763, %v1779
    %v1781 = vsub.f32 1.0, %v1780
    %v1782 = vmul.f32 %v1779, %v1781
    %v1783 = vadd.f32 %v1779, %v1782
    %vm1784 = vweird.f32 %v1763
    %vm1785 = vweird.f32 %v1779
    %vm1786 = vmor %vm1784, %vm1785
    %v1787 = vsel %vm1786, %v1779, %v1783
    %v1788 = vand.u32 2147483647, %v1763
    %vm1789 = vcmp.eq.f32.partialorder %v1788, 8.507059e+37
    %v1790 = vand.u32 %v1763, 2147483648
    %v1791 = vor.u32 1.1754944e-38, %v1790
    %v1792 = vsel %vm1789, %v1791, %v1787
    %v1793 = vmul.f32 1.0, %v1792
    %v1794 = vtanh.pop %v1754
    %v1795 = vtanh.pop %v1755
    %v1796 = vmul.f32 %v1778, %v1671
    %1798 = vrot.lane.b32.xlu0 %v1794, 64
    %v1799 = vpop.permute.xlu0 %1798
    %v1801 = vmul.f32 %v1778, %v1799
    %1803 = vrot.lane.b32.xlu0 %v1801, 32
    %v1804 = vpop.permute.xlu0 %1803
    %v1806 = vadd.f32 %v1796, %v1804
    %v1807 = vtanh.pop %v1806
    %1809 = vrot.lane.b32.xlu0 %v1807, 64
    %v1810 = vpop.permute.xlu0 %1809
    %v1812 = vmul.f32 %v1778, %v1810
    %v1813 = vmul.f32 %v1793, %v1688
    %1815 = vrot.lane.b32.xlu0 %v1795, 64
    %v1816 = vpop.permute.xlu0 %1815
    %v1818 = vmul.f32 %v1793, %v1816
    %1820 = vrot.lane.b32.xlu0 %v1818, 32
    %v1821 = vpop.permute.xlu0 %1820
    %v1823 = vadd.f32 %v1813, %v1821
    %v1824 = vtanh.pop %v1823
    %1826 = vrot.lane.b32.xlu0 %v1824, 64
    %v1827 = vpop.permute.xlu0 %1826
    %v1829 = vmul.f32 %v1793, %v1827
    %1831 = vrot.lane.b32.xlu0 %v1812, 32
    %v1832 = vpop.permute.xlu0 %1831
    %1834 = vst.msk [vmem:[%s520] sm:$0xff] %vm377, %v1832
    %1836 = vrot.lane.b32.xlu0 %v1829, 32
    %v1837 = vpop.permute.xlu0 %1836
    %1839 = vst.msk [vmem:[%s526] sm:$0xff] %vm377, %v1837
    %1840 = vrot.lane.b32.xlu0 %v1829, 64
    %v1841 = vpop.permute.xlu0 %1840
    %v1843 = vsel %vm377, %v1832, %v1841
    %v1845 = vsel %vm245, %v1843, 0
    %1847 = vmatpush.msra.mxu0 0.0
    %1848 = vmatpush.msra.mxu0 0.0
    %1849 = vmatpush.msra.mxu0 0.0
    %1850 = vmatpush.msra.mxu0 0.0
    %1851 = vmatpush.msra.mxu0 0.0
    %1852 = vmatpush.msra.mxu0 0.0
    %1853 = vmatpush.msra.mxu0 0.0
    %1854 = vmatpush.msra.mxu0 0.0
    %1855 = vmatpush.msra.mxu0 %v1575
    %1856 = vmatpush.msra.mxu0 %v1573
    %1857 = vmatpush.msra.mxu0 %v1571
    %1858 = vmatpush.msra.mxu0 %v1569
    %1859 = vmatpush.msra.mxu0 %v1567
    %1860 = vmatpush.msra.mxu0 %v1565
    %1861 = vmatpush.msra.mxu0 %v1563
    %1862 = vmatpush.msra.mxu0 %v1561
    %1863 = vmatmul.f32.gmra.mxu0 %v1845
    %v1864 = vpop.f32.mrf.mxu0
    %v1865 = vadd.f32 0.0, %v1864
    %1866 = vdwg.mxu0
    %1867 = vmatpush.msra.mxu0 0.0
    %1868 = vmatpush.msra.mxu0 0.0
    %1869 = vmatpush.msra.mxu0 0.0
    %1870 = vmatpush.msra.mxu0 0.0
    %1871 = vmatpush.msra.mxu0 0.0
    %1872 = vmatpush.msra.mxu0 0.0
    %1873 = vmatpush.msra.mxu0 0.0
    %1874 = vmatpush.msra.mxu0 0.0
    %1875 = vmatpush.msra.mxu0 %v1576
    %1876 = vmatpush.msra.mxu0 %v1574
    %1877 = vmatpush.msra.mxu0 %v1572
    %1878 = vmatpush.msra.mxu0 %v1570
    %1879 = vmatpush.msra.mxu0 %v1568
    %1880 = vmatpush.msra.mxu0 %v1566
    %1881 = vmatpush.msra.mxu0 %v1564
    %1882 = vmatpush.msra.mxu0 %v1562
    %1883 = vmatmul.f32.gmra.mxu0 %v1845
    %v1884 = vpop.f32.mrf.mxu0
    %v1885 = vadd.f32 0.0, %v1884
    %1886 = vdwg.mxu0
    %v1887 = vld [vmem:[%s577] sm:$0xff]
    %v1888 = vld [vmem:[%s581 + $0x8] sm:$0xff]
    %v1889 = vadd.f32 %v1887, %v1865
    %v1890 = vadd.f32 %v1888, %v1885
    %v1891 = vxor.u32 %v1889, 2147483648
    %v1892 = vxor.u32 %v1890, 2147483648
    %v1893 = vmul.f32 %v1891, 1.442695
    %v1894 = vpow.pop %v1893
    %v1895 = vmul.f32 %v1892, 1.442695
    %v1896 = vpow.pop %v1895
    %v1897 = vadd.f32 %v1894, 1.0
    %v1898 = vadd.f32 %v1896, 1.0
    %v1899 = vrcp.pop %v1897
    %v1900 = vmul.f32 %v1897, %v1899
    %v1901 = vsub.f32 1.0, %v1900
    %v1902 = vmul.f32 %v1899, %v1901
    %v1903 = vadd.f32 %v1899, %v1902
    %vm1904 = vweird.f32 %v1897
    %vm1905 = vweird.f32 %v1899
    %vm1906 = vmor %vm1904, %vm1905
    %v1907 = vsel %vm1906, %v1899, %v1903
    %v1908 = vand.u32 2147483647, %v1897
    %vm1909 = vcmp.eq.f32.partialorder %v1908, 8.507059e+37
    %v1910 = vand.u32 %v1897, 2147483648
    %v1911 = vor.u32 1.1754944e-38, %v1910
    %v1912 = vsel %vm1909, %v1911, %v1907
    %v1913 = vmul.f32 1.0, %v1912
    %v1914 = vrcp.pop %v1898
    %v1915 = vmul.f32 %v1898, %v1914
    %v1916 = vsub.f32 1.0, %v1915
    %v1917 = vmul.f32 %v1914, %v1916
    %v1918 = vadd.f32 %v1914, %v1917
    %vm1919 = vweird.f32 %v1898
    %vm1920 = vweird.f32 %v1914
    %vm1921 = vmor %vm1919, %vm1920
    %v1922 = vsel %vm1921, %v1914, %v1918
    %v1923 = vand.u32 2147483647, %v1898
    %vm1924 = vcmp.eq.f32.partialorder %v1923, 8.507059e+37
    %v1925 = vand.u32 %v1898, 2147483648
    %v1926 = vor.u32 1.1754944e-38, %v1925
    %v1927 = vsel %vm1924, %v1926, %v1922
    %v1928 = vmul.f32 1.0, %v1927
    %v1929 = vtanh.pop %v1889
    %v1930 = vtanh.pop %v1890
    %v1931 = vmul.f32 %v1913, %v1806
    %1933 = vrot.lane.b32.xlu0 %v1929, 64
    %v1934 = vpop.permute.xlu0 %1933
    %v1936 = vmul.f32 %v1913, %v1934
    %1938 = vrot.lane.b32.xlu0 %v1936, 32
    %v1939 = vpop.permute.xlu0 %1938
    %v1941 = vadd.f32 %v1931, %v1939
    %v1942 = vtanh.pop %v1941
    %1944 = vrot.lane.b32.xlu0 %v1942, 64
    %v1945 = vpop.permute.xlu0 %1944
    %v1947 = vmul.f32 %v1913, %v1945
    %v1948 = vmul.f32 %v1928, %v1823
    %1950 = vrot.lane.b32.xlu0 %v1930, 64
    %v1951 = vpop.permute.xlu0 %1950
    %v1953 = vmul.f32 %v1928, %v1951
    %1955 = vrot.lane.b32.xlu0 %v1953, 32
    %v1956 = vpop.permute.xlu0 %1955
    %v1958 = vadd.f32 %v1948, %v1956
    %v1959 = vtanh.pop %v1958
    %1961 = vrot.lane.b32.xlu0 %v1959, 64
    %v1962 = vpop.permute.xlu0 %1961
    %v1964 = vmul.f32 %v1928, %v1962
    %1966 = vrot.lane.b32.xlu0 %v1947, 32
    %v1967 = vpop.permute.xlu0 %1966
    %1969 = vst.msk [vmem:[%s663] sm:$0xff] %vm377, %v1967
    %1971 = vrot.lane.b32.xlu0 %v1964, 32
    %v1972 = vpop.permute.xlu0 %1971
    %1974 = vst.msk [vmem:[%s669] sm:$0xff] %vm377, %v1972
    %1975 = vrot.lane.b32.xlu0 %v1964, 64
    %v1976 = vpop.permute.xlu0 %1975
    %v1978 = vsel %vm377, %v1967, %v1976
    %v1980 = vsel %vm245, %v1978, 0
    %1982 = vmatpush.msra.mxu0 0.0
    %1983 = vmatpush.msra.mxu0 0.0
    %1984 = vmatpush.msra.mxu0 0.0
    %1985 = vmatpush.msra.mxu0 0.0
    %1986 = vmatpush.msra.mxu0 0.0
    %1987 = vmatpush.msra.mxu0 0.0
    %1988 = vmatpush.msra.mxu0 0.0
    %1989 = vmatpush.msra.mxu0 0.0
    %1990 = vmatpush.msra.mxu0 %v1575
    %1991 = vmatpush.msra.mxu0 %v1573
    %1992 = vmatpush.msra.mxu0 %v1571
    %1993 = vmatpush.msra.mxu0 %v1569
    %1994 = vmatpush.msra.mxu0 %v1567
    %1995 = vmatpush.msra.mxu0 %v1565
    %1996 = vmatpush.msra.mxu0 %v1563
    %1997 = vmatpush.msra.mxu0 %v1561
    %1998 = vmatmul.f32.gmra.mxu0 %v1980
    %v1999 = vpop.f32.mrf.mxu0
    %v2000 = vadd.f32 0.0, %v1999
    %2001 = vdwg.mxu0
    %2002 = vmatpush.msra.mxu0 0.0
    %2003 = vmatpush.msra.mxu0 0.0
    %2004 = vmatpush.msra.mxu0 0.0
    %2005 = vmatpush.msra.mxu0 0.0
    %2006 = vmatpush.msra.mxu0 0.0
    %2007 = vmatpush.msra.mxu0 0.0
    %2008 = vmatpush.msra.mxu0 0.0
    %2009 = vmatpush.msra.mxu0 0.0
    %2010 = vmatpush.msra.mxu0 %v1576
    %2011 = vmatpush.msra.mxu0 %v1574
    %2012 = vmatpush.msra.mxu0 %v1572
    %2013 = vmatpush.msra.mxu0 %v1570
    %2014 = vmatpush.msra.mxu0 %v1568
    %2015 = vmatpush.msra.mxu0 %v1566
    %2016 = vmatpush.msra.mxu0 %v1564
    %2017 = vmatpush.msra.mxu0 %v1562
    %2018 = vmatmul.f32.gmra.mxu0 %v1980
    %v2019 = vpop.f32.mrf.mxu0
    %v2020 = vadd.f32 0.0, %v2019
    %2021 = vdwg.mxu0
    %v2022 = vld [vmem:[%s720] sm:$0xff]
    %v2023 = vld [vmem:[%s724 + $0x8] sm:$0xff]
    %v2024 = vadd.f32 %v2022, %v2000
    %v2025 = vadd.f32 %v2023, %v2020
    %v2026 = vxor.u32 %v2024, 2147483648
    %v2027 = vxor.u32 %v2025, 2147483648
    %v2028 = vmul.f32 %v2026, 1.442695
    %v2029 = vpow.pop %v2028
    %v2030 = vmul.f32 %v2027, 1.442695
    %v2031 = vpow.pop %v2030
    %v2032 = vadd.f32 %v2029, 1.0
    %v2033 = vadd.f32 %v2031, 1.0
    %v2034 = vrcp.pop %v2032
    %v2035 = vmul.f32 %v2032, %v2034
    %v2036 = vsub.f32 1.0, %v2035
    %v2037 = vmul.f32 %v2034, %v2036
    %v2038 = vadd.f32 %v2034, %v2037
    %vm2039 = vweird.f32 %v2032
    %vm2040 = vweird.f32 %v2034
    %vm2041 = vmor %vm2039, %vm2040
    %v2042 = vsel %vm2041, %v2034, %v2038
    %v2043 = vand.u32 2147483647, %v2032
    %vm2044 = vcmp.eq.f32.partialorder %v2043, 8.507059e+37
    %v2045 = vand.u32 %v2032, 2147483648
    %v2046 = vor.u32 1.1754944e-38, %v2045
    %v2047 = vsel %vm2044, %v2046, %v2042
    %v2048 = vmul.f32 1.0, %v2047
    %v2049 = vrcp.pop %v2033
    %v2050 = vmul.f32 %v2033, %v2049
    %v2051 = vsub.f32 1.0, %v2050
    %v2052 = vmul.f32 %v2049, %v2051
    %v2053 = vadd.f32 %v2049, %v2052
    %vm2054 = vweird.f32 %v2033
    %vm2055 = vweird.f32 %v2049
    %vm2056 = vmor %vm2054, %vm2055
    %v2057 = vsel %vm2056, %v2049, %v2053
    %v2058 = vand.u32 2147483647, %v2033
    %vm2059 = vcmp.eq.f32.partialorder %v2058, 8.507059e+37
    %v2060 = vand.u32 %v2033, 2147483648
    %v2061 = vor.u32 1.1754944e-38, %v2060
    %v2062 = vsel %vm2059, %v2061, %v2057
    %v2063 = vmul.f32 1.0, %v2062
    %v2064 = vtanh.pop %v2024
    %v2065 = vtanh.pop %v2025
    %v2066 = vmul.f32 %v2048, %v1941
    %2068 = vrot.lane.b32.xlu0 %v2064, 64
    %v2069 = vpop.permute.xlu0 %2068
    %v2071 = vmul.f32 %v2048, %v2069
    %2073 = vrot.lane.b32.xlu0 %v2071, 32
    %v2074 = vpop.permute.xlu0 %2073
    %v2076 = vadd.f32 %v2066, %v2074
    %v2077 = vtanh.pop %v2076
    %2079 = vrot.lane.b32.xlu0 %v2077, 64
    %v2080 = vpop.permute.xlu0 %2079
    %v2082 = vmul.f32 %v2048, %v2080
    %v2083 = vmul.f32 %v2063, %v1958
    %2085 = vrot.lane.b32.xlu0 %v2065, 64
    %v2086 = vpop.permute.xlu0 %2085
    %v2088 = vmul.f32 %v2063, %v2086
    %2090 = vrot.lane.b32.xlu0 %v2088, 32
    %v2091 = vpop.permute.xlu0 %2090
    %v2093 = vadd.f32 %v2083, %v2091
    %v2094 = vtanh.pop %v2093
    %2096 = vrot.lane.b32.xlu0 %v2094, 64
    %v2097 = vpop.permute.xlu0 %2096
    %v2099 = vmul.f32 %v2063, %v2097
    %2101 = vrot.lane.b32.xlu0 %v2082, 32
    %v2102 = vpop.permute.xlu0 %2101
    %2104 = vst.msk [vmem:[%s806] sm:$0xff] %vm377, %v2102
    %2106 = vrot.lane.b32.xlu0 %v2099, 32
    %v2107 = vpop.permute.xlu0 %2106
    %2109 = vst.msk [vmem:[%s812] sm:$0xff] %vm377, %v2107
    %2110 = vrot.lane.b32.xlu0 %v2099, 64
    %v2111 = vpop.permute.xlu0 %2110
    %v2113 = vsel %vm377, %v2102, %v2111
    %v2115 = vsel %vm245, %v2113, 0
    %2117 = vmatpush.msra.mxu0 0.0
    %2118 = vmatpush.msra.mxu0 0.0
    %2119 = vmatpush.msra.mxu0 0.0
    %2120 = vmatpush.msra.mxu0 0.0
    %2121 = vmatpush.msra.mxu0 0.0
    %2122 = vmatpush.msra.mxu0 0.0
    %2123 = vmatpush.msra.mxu0 0.0
    %2124 = vmatpush.msra.mxu0 0.0
    %2125 = vmatpush.msra.mxu0 %v1575
    %2126 = vmatpush.msra.mxu0 %v1573
    %2127 = vmatpush.msra.mxu0 %v1571
    %2128 = vmatpush.msra.mxu0 %v1569
    %2129 = vmatpush.msra.mxu0 %v1567
    %2130 = vmatpush.msra.mxu0 %v1565
    %2131 = vmatpush.msra.mxu0 %v1563
    %2132 = vmatpush.msra.mxu0 %v1561
    %2133 = vmatmul.f32.gmra.mxu0 %v2115
    %v2134 = vpop.f32.mrf.mxu0
    %v2135 = vadd.f32 0.0, %v2134
    %2136 = vdwg.mxu0
    %2137 = vmatpush.msra.mxu0 0.0
    %2138 = vmatpush.msra.mxu0 0.0
    %2139 = vmatpush.msra.mxu0 0.0
    %2140 = vmatpush.msra.mxu0 0.0
    %2141 = vmatpush.msra.mxu0 0.0
    %2142 = vmatpush.msra.mxu0 0.0
    %2143 = vmatpush.msra.mxu0 0.0
    %2144 = vmatpush.msra.mxu0 0.0
    %2145 = vmatpush.msra.mxu0 %v1576
    %2146 = vmatpush.msra.mxu0 %v1574
    %2147 = vmatpush.msra.mxu0 %v1572
    %2148 = vmatpush.msra.mxu0 %v1570
    %2149 = vmatpush.msra.mxu0 %v1568
    %2150 = vmatpush.msra.mxu0 %v1566
    %2151 = vmatpush.msra.mxu0 %v1564
    %2152 = vmatpush.msra.mxu0 %v1562
    %2153 = vmatmul.f32.gmra.mxu0 %v2115
    %v2154 = vpop.f32.mrf.mxu0
    %v2155 = vadd.f32 0.0, %v2154
    %2156 = vdwg.mxu0
    %v2157 = vld [vmem:[%s724] sm:$0xff]
    %v2158 = vld [vmem:[%s720 + $0x8] sm:$0xff]
    %v2159 = vadd.f32 %v2157, %v2135
    %v2160 = vadd.f32 %v2158, %v2155
    %v2161 = vxor.u32 %v2159, 2147483648
    %v2162 = vxor.u32 %v2160, 2147483648
    %v2163 = vmul.f32 %v2161, 1.442695
    %v2164 = vpow.pop %v2163
    %v2165 = vmul.f32 %v2162, 1.442695
    %v2166 = vpow.pop %v2165
    %v2167 = vadd.f32 %v2164, 1.0
    %v2168 = vadd.f32 %v2166, 1.0
    %v2169 = vrcp.pop %v2167
    %v2170 = vmul.f32 %v2167, %v2169
    %v2171 = vsub.f32 1.0, %v2170
    %v2172 = vmul.f32 %v2169, %v2171
    %v2173 = vadd.f32 %v2169, %v2172
    %vm2174 = vweird.f32 %v2167
    %vm2175 = vweird.f32 %v2169
    %vm2176 = vmor %vm2174, %vm2175
    %v2177 = vsel %vm2176, %v2169, %v2173
    %v2178 = vand.u32 2147483647, %v2167
    %vm2179 = vcmp.eq.f32.partialorder %v2178, 8.507059e+37
    %v2180 = vand.u32 %v2167, 2147483648
    %v2181 = vor.u32 1.1754944e-38, %v2180
    %v2182 = vsel %vm2179, %v2181, %v2177
    %v2183 = vmul.f32 1.0, %v2182
    %v2184 = vrcp.pop %v2168
    %v2185 = vmul.f32 %v2168, %v2184
    %v2186 = vsub.f32 1.0, %v2185
    %v2187 = vmul.f32 %v2184, %v2186
    %v2188 = vadd.f32 %v2184, %v2187
    %vm2189 = vweird.f32 %v2168
    %vm2190 = vweird.f32 %v2184
    %vm2191 = vmor %vm2189, %vm2190
    %v2192 = vsel %vm2191, %v2184, %v2188
    %v2193 = vand.u32 2147483647, %v2168
    %vm2194 = vcmp.eq.f32.partialorder %v2193, 8.507059e+37
    %v2195 = vand.u32 %v2168, 2147483648
    %v2196 = vor.u32 1.1754944e-38, %v2195
    %v2197 = vsel %vm2194, %v2196, %v2192
    %v2198 = vmul.f32 1.0, %v2197
    %v2199 = vtanh.pop %v2159
    %v2200 = vtanh.pop %v2160
    %v2201 = vmul.f32 %v2183, %v2076
    %2203 = vrot.lane.b32.xlu0 %v2199, 64
    %v2204 = vpop.permute.xlu0 %2203
    %v2206 = vmul.f32 %v2183, %v2204
    %2208 = vrot.lane.b32.xlu0 %v2206, 32
    %v2209 = vpop.permute.xlu0 %2208
    %v2211 = vadd.f32 %v2201, %v2209
    %v2212 = vtanh.pop %v2211
    %2214 = vrot.lane.b32.xlu0 %v2212, 64
    %v2215 = vpop.permute.xlu0 %2214
    %v2217 = vmul.f32 %v2183, %v2215
    %v2218 = vmul.f32 %v2198, %v2093
    %2220 = vrot.lane.b32.xlu0 %v2200, 64
    %v2221 = vpop.permute.xlu0 %2220
    %v2223 = vmul.f32 %v2198, %v2221
    %2225 = vrot.lane.b32.xlu0 %v2223, 32
    %v2226 = vpop.permute.xlu0 %2225
    %v2228 = vadd.f32 %v2218, %v2226
    %v2229 = vtanh.pop %v2228
    %2231 = vrot.lane.b32.xlu0 %v2229, 64
    %v2232 = vpop.permute.xlu0 %2231
    %v2234 = vmul.f32 %v2198, %v2232
    %2236 = vrot.lane.b32.xlu0 %v2217, 32
    %v2237 = vpop.permute.xlu0 %2236
    %2239 = vst.msk [vmem:[%s943] sm:$0xff] %vm377, %v2237
    %2241 = vrot.lane.b32.xlu0 %v2234, 32
    %v2242 = vpop.permute.xlu0 %2241
    %2244 = vst.msk [vmem:[%s949] sm:$0xff] %vm377, %v2242
    %2245 = vrot.lane.b32.xlu0 %v2234, 64
    %v2246 = vpop.permute.xlu0 %2245
    %v2248 = vsel %vm377, %v2237, %v2246
    %v2250 = vsel %vm245, %v2248, 0
    %2252 = vmatpush.msra.mxu0 0.0
    %2253 = vmatpush.msra.mxu0 0.0
    %2254 = vmatpush.msra.mxu0 0.0
    %2255 = vmatpush.msra.mxu0 0.0
    %2256 = vmatpush.msra.mxu0 0.0
    %2257 = vmatpush.msra.mxu0 0.0
    %2258 = vmatpush.msra.mxu0 0.0
    %2259 = vmatpush.msra.mxu0 0.0
    %2260 = vmatpush.msra.mxu0 %v1575
    %2261 = vmatpush.msra.mxu0 %v1573
    %2262 = vmatpush.msra.mxu0 %v1571
    %2263 = vmatpush.msra.mxu0 %v1569
    %2264 = vmatpush.msra.mxu0 %v1567
    %2265 = vmatpush.msra.mxu0 %v1565
    %2266 = vmatpush.msra.mxu0 %v1563
    %2267 = vmatpush.msra.mxu0 %v1561
    %2268 = vmatmul.f32.gmra.mxu0 %v2250
    %v2269 = vpop.f32.mrf.mxu0
    %v2270 = vadd.f32 0.0, %v2269
    %2271 = vdwg.mxu0
    %2272 = vmatpush.msra.mxu0 0.0
    %2273 = vmatpush.msra.mxu0 0.0
    %2274 = vmatpush.msra.mxu0 0.0
    %2275 = vmatpush.msra.mxu0 0.0
    %2276 = vmatpush.msra.mxu0 0.0
    %2277 = vmatpush.msra.mxu0 0.0
    %2278 = vmatpush.msra.mxu0 0.0
    %2279 = vmatpush.msra.mxu0 0.0
    %2280 = vmatpush.msra.mxu0 %v1576
    %2281 = vmatpush.msra.mxu0 %v1574
    %2282 = vmatpush.msra.mxu0 %v1572
    %2283 = vmatpush.msra.mxu0 %v1570
    %2284 = vmatpush.msra.mxu0 %v1568
    %2285 = vmatpush.msra.mxu0 %v1566
    %2286 = vmatpush.msra.mxu0 %v1564
    %2287 = vmatpush.msra.mxu0 %v1562
    %2288 = vmatmul.f32.gmra.mxu0 %v2250
    %v2289 = vpop.f32.mrf.mxu0
    %v2290 = vadd.f32 0.0, %v2289
    %2291 = vdwg.mxu0
    %v2292 = vld [vmem:[%s581] sm:$0xff]
    %v2293 = vld [vmem:[%s577 + $0x8] sm:$0xff]
    %v2294 = vadd.f32 %v2292, %v2270
    %v2295 = vadd.f32 %v2293, %v2290
    %v2296 = vxor.u32 %v2294, 2147483648
    %v2297 = vxor.u32 %v2295, 2147483648
    %v2298 = vmul.f32 %v2296, 1.442695
    %v2299 = vpow.pop %v2298
    %v2300 = vmul.f32 %v2297, 1.442695
    %v2301 = vpow.pop %v2300
    %v2302 = vadd.f32 %v2299, 1.0
    %v2303 = vadd.f32 %v2301, 1.0
    %v2304 = vrcp.pop %v2302
    %v2305 = vmul.f32 %v2302, %v2304
    %v2306 = vsub.f32 1.0, %v2305
    %v2307 = vmul.f32 %v2304, %v2306
    %v2308 = vadd.f32 %v2304, %v2307
    %vm2309 = vweird.f32 %v2302
    %vm2310 = vweird.f32 %v2304
    %vm2311 = vmor %vm2309, %vm2310
    %v2312 = vsel %vm2311, %v2304, %v2308
    %v2313 = vand.u32 2147483647, %v2302
    %vm2314 = vcmp.eq.f32.partialorder %v2313, 8.507059e+37
    %v2315 = vand.u32 %v2302, 2147483648
    %v2316 = vor.u32 1.1754944e-38, %v2315
    %v2317 = vsel %vm2314, %v2316, %v2312
    %v2318 = vmul.f32 1.0, %v2317
    %v2319 = vrcp.pop %v2303
    %v2320 = vmul.f32 %v2303, %v2319
    %v2321 = vsub.f32 1.0, %v2320
    %v2322 = vmul.f32 %v2319, %v2321
    %v2323 = vadd.f32 %v2319, %v2322
    %vm2324 = vweird.f32 %v2303
    %vm2325 = vweird.f32 %v2319
    %vm2326 = vmor %vm2324, %vm2325
    %v2327 = vsel %vm2326, %v2319, %v2323
    %v2328 = vand.u32 2147483647, %v2303
    %vm2329 = vcmp.eq.f32.partialorder %v2328, 8.507059e+37
    %v2330 = vand.u32 %v2303, 2147483648
    %v2331 = vor.u32 1.1754944e-38, %v2330
    %v2332 = vsel %vm2329, %v2331, %v2327
    %v2333 = vmul.f32 1.0, %v2332
    %v2334 = vtanh.pop %v2294
    %v2335 = vtanh.pop %v2295
    %v2336 = vmul.f32 %v2318, %v2211
    %2338 = vrot.lane.b32.xlu0 %v2334, 64
    %v2339 = vpop.permute.xlu0 %2338
    %v2341 = vmul.f32 %v2318, %v2339
    %2343 = vrot.lane.b32.xlu0 %v2341, 32
    %v2344 = vpop.permute.xlu0 %2343
    %v2346 = vadd.f32 %v2336, %v2344
    %v2347 = vtanh.pop %v2346
    %2349 = vrot.lane.b32.xlu0 %v2347, 64
    %v2350 = vpop.permute.xlu0 %2349
    %v2352 = vmul.f32 %v2318, %v2350
    %v2353 = vmul.f32 %v2333, %v2228
    %2355 = vrot.lane.b32.xlu0 %v2335, 64
    %v2356 = vpop.permute.xlu0 %2355
    %v2358 = vmul.f32 %v2333, %v2356
    %2360 = vrot.lane.b32.xlu0 %v2358, 32
    %v2361 = vpop.permute.xlu0 %2360
    %v2363 = vadd.f32 %v2353, %v2361
    %v2364 = vtanh.pop %v2363
    %2366 = vrot.lane.b32.xlu0 %v2364, 64
    %v2367 = vpop.permute.xlu0 %2366
    %v2369 = vmul.f32 %v2333, %v2367
    %2371 = vrot.lane.b32.xlu0 %v2352, 32
    %v2372 = vpop.permute.xlu0 %2371
    %2374 = vst.msk [vmem:[%s1080] sm:$0xff] %vm377, %v2372
    %2376 = vrot.lane.b32.xlu0 %v2369, 32
    %v2377 = vpop.permute.xlu0 %2376
    %2379 = vst.msk [vmem:[%s1086] sm:$0xff] %vm377, %v2377
    %2380 = vrot.lane.b32.xlu0 %v2369, 64
    %v2381 = vpop.permute.xlu0 %2380
    %v2383 = vsel %vm377, %v2372, %v2381
    %v2385 = vsel %vm245, %v2383, 0
    %2387 = vmatpush.msra.mxu0 0.0
    %2388 = vmatpush.msra.mxu0 0.0
    %2389 = vmatpush.msra.mxu0 0.0
    %2390 = vmatpush.msra.mxu0 0.0
    %2391 = vmatpush.msra.mxu0 0.0
    %2392 = vmatpush.msra.mxu0 0.0
    %2393 = vmatpush.msra.mxu0 0.0
    %2394 = vmatpush.msra.mxu0 0.0
    %2395 = vmatpush.msra.mxu0 %v1575
    %2396 = vmatpush.msra.mxu0 %v1573
    %2397 = vmatpush.msra.mxu0 %v1571
    %2398 = vmatpush.msra.mxu0 %v1569
    %2399 = vmatpush.msra.mxu0 %v1567
    %2400 = vmatpush.msra.mxu0 %v1565
    %2401 = vmatpush.msra.mxu0 %v1563
    %2402 = vmatpush.msra.mxu0 %v1561
    %2403 = vmatmul.f32.gmra.mxu0 %v2385
    %v2404 = vpop.f32.mrf.mxu0
    %v2405 = vadd.f32 0.0, %v2404
    %2406 = vdwg.mxu0
    %2407 = vmatpush.msra.mxu0 0.0
    %2408 = vmatpush.msra.mxu0 0.0
    %2409 = vmatpush.msra.mxu0 0.0
    %2410 = vmatpush.msra.mxu0 0.0
    %2411 = vmatpush.msra.mxu0 0.0
    %2412 = vmatpush.msra.mxu0 0.0
    %2413 = vmatpush.msra.mxu0 0.0
    %2414 = vmatpush.msra.mxu0 0.0
    %2415 = vmatpush.msra.mxu0 %v1576
    %2416 = vmatpush.msra.mxu0 %v1574
    %2417 = vmatpush.msra.mxu0 %v1572
    %2418 = vmatpush.msra.mxu0 %v1570
    %2419 = vmatpush.msra.mxu0 %v1568
    %2420 = vmatpush.msra.mxu0 %v1566
    %2421 = vmatpush.msra.mxu0 %v1564
    %2422 = vmatpush.msra.mxu0 %v1562
    %2423 = vmatmul.f32.gmra.mxu0 %v2385
    %v2424 = vpop.f32.mrf.mxu0
    %v2425 = vadd.f32 0.0, %v2424
    %2426 = vdwg.mxu0
    %v2427 = vld [vmem:[%s438] sm:$0xff]
    %v2428 = vld [vmem:[%s434 + $0x8] sm:$0xff]
    %v2429 = vadd.f32 %v2427, %v2405
    %v2430 = vadd.f32 %v2428, %v2425
    %v2431 = vxor.u32 %v2429, 2147483648
    %v2432 = vxor.u32 %v2430, 2147483648
    %v2433 = vmul.f32 %v2431, 1.442695
    %v2434 = vpow.pop %v2433
    %v2435 = vmul.f32 %v2432, 1.442695
    %v2436 = vpow.pop %v2435
    %v2437 = vadd.f32 %v2434, 1.0
    %v2438 = vadd.f32 %v2436, 1.0
    %v2439 = vrcp.pop %v2437
    %v2440 = vmul.f32 %v2437, %v2439
    %v2441 = vsub.f32 1.0, %v2440
    %v2442 = vmul.f32 %v2439, %v2441
    %v2443 = vadd.f32 %v2439, %v2442
    %vm2444 = vweird.f32 %v2437
    %vm2445 = vweird.f32 %v2439
    %vm2446 = vmor %vm2444, %vm2445
    %v2447 = vsel %vm2446, %v2439, %v2443
    %v2448 = vand.u32 2147483647, %v2437
    %vm2449 = vcmp.eq.f32.partialorder %v2448, 8.507059e+37
    %v2450 = vand.u32 %v2437, 2147483648
    %v2451 = vor.u32 1.1754944e-38, %v2450
    %v2452 = vsel %vm2449, %v2451, %v2447
    %v2453 = vmul.f32 1.0, %v2452
    %v2454 = vrcp.pop %v2438
    %v2455 = vmul.f32 %v2438, %v2454
    %v2456 = vsub.f32 1.0, %v2455
    %v2457 = vmul.f32 %v2454, %v2456
    %v2458 = vadd.f32 %v2454, %v2457
    %vm2459 = vweird.f32 %v2438
    %vm2460 = vweird.f32 %v2454
    %vm2461 = vmor %vm2459, %vm2460
    %v2462 = vsel %vm2461, %v2454, %v2458
    %v2463 = vand.u32 2147483647, %v2438
    %vm2464 = vcmp.eq.f32.partialorder %v2463, 8.507059e+37
    %v2465 = vand.u32 %v2438, 2147483648
    %v2466 = vor.u32 1.1754944e-38, %v2465
    %v2467 = vsel %vm2464, %v2466, %v2462
    %v2468 = vmul.f32 1.0, %v2467
    %v2469 = vtanh.pop %v2429
    %v2470 = vtanh.pop %v2430
    %v2471 = vmul.f32 %v2453, %v2346
    %2473 = vrot.lane.b32.xlu0 %v2469, 64
    %v2474 = vpop.permute.xlu0 %2473
    %v2476 = vmul.f32 %v2453, %v2474
    %2478 = vrot.lane.b32.xlu0 %v2476, 32
    %v2479 = vpop.permute.xlu0 %2478
    %v2481 = vadd.f32 %v2471, %v2479
    %v2482 = vtanh.pop %v2481
    %2484 = vrot.lane.b32.xlu0 %v2482, 64
    %v2485 = vpop.permute.xlu0 %2484
    %v2487 = vmul.f32 %v2453, %v2485
    %v2488 = vmul.f32 %v2468, %v2363
    %2490 = vrot.lane.b32.xlu0 %v2470, 64
    %v2491 = vpop.permute.xlu0 %2490
    %v2493 = vmul.f32 %v2468, %v2491
    %2495 = vrot.lane.b32.xlu0 %v2493, 32
    %v2496 = vpop.permute.xlu0 %2495
    %v2498 = vadd.f32 %v2488, %v2496
    %v2499 = vtanh.pop %v2498
    %2501 = vrot.lane.b32.xlu0 %v2499, 64
    %v2502 = vpop.permute.xlu0 %2501
    %v2504 = vmul.f32 %v2468, %v2502
    %2506 = vrot.lane.b32.xlu0 %v2487, 32
    %v2507 = vpop.permute.xlu0 %2506
    %2509 = vst.msk [vmem:[%s1217] sm:$0xff] %vm377, %v2507
    %2511 = vrot.lane.b32.xlu0 %v2504, 32
    %v2512 = vpop.permute.xlu0 %2511
    %2514 = vst.msk [vmem:[%s1223] sm:$0xff] %vm377, %v2512
    %2515 = vrot.lane.b32.xlu0 %v2504, 64
    %v2516 = vpop.permute.xlu0 %2515
    %v2518 = vsel %vm377, %v2507, %v2516
    %v2520 = vsel %vm245, %v2518, 0
    %2522 = vmatpush.msra.mxu0 0.0
    %2523 = vmatpush.msra.mxu0 0.0
    %2524 = vmatpush.msra.mxu0 0.0
    %2525 = vmatpush.msra.mxu0 0.0
    %2526 = vmatpush.msra.mxu0 0.0
    %2527 = vmatpush.msra.mxu0 0.0
    %2528 = vmatpush.msra.mxu0 0.0
    %2529 = vmatpush.msra.mxu0 0.0
    %2530 = vmatpush.msra.mxu0 %v1575
    %2531 = vmatpush.msra.mxu0 %v1573
    %2532 = vmatpush.msra.mxu0 %v1571
    %2533 = vmatpush.msra.mxu0 %v1569
    %2534 = vmatpush.msra.mxu0 %v1567
    %2535 = vmatpush.msra.mxu0 %v1565
    %2536 = vmatpush.msra.mxu0 %v1563
    %2537 = vmatpush.msra.mxu0 %v1561
    %2538 = vmatmul.f32.gmra.mxu0 %v2520
    %v2539 = vpop.f32.mrf.mxu0
    %v2540 = vadd.f32 0.0, %v2539
    %2541 = vdwg.mxu0
    %2542 = vmatpush.msra.mxu0 0.0
    %2543 = vmatpush.msra.mxu0 0.0
    %2544 = vmatpush.msra.mxu0 0.0
    %2545 = vmatpush.msra.mxu0 0.0
    %2546 = vmatpush.msra.mxu0 0.0
    %2547 = vmatpush.msra.mxu0 0.0
    %2548 = vmatpush.msra.mxu0 0.0
    %2549 = vmatpush.msra.mxu0 0.0
    %2550 = vmatpush.msra.mxu0 %v1576
    %2551 = vmatpush.msra.mxu0 %v1574
    %2552 = vmatpush.msra.mxu0 %v1572
    %2553 = vmatpush.msra.mxu0 %v1570
    %2554 = vmatpush.msra.mxu0 %v1568
    %2555 = vmatpush.msra.mxu0 %v1566
    %2556 = vmatpush.msra.mxu0 %v1564
    %2557 = vmatpush.msra.mxu0 %v1562
    %2558 = vmatmul.f32.gmra.mxu0 %v2520
    %v2559 = vpop.f32.mrf.mxu0
    %v2560 = vadd.f32 0.0, %v2559
    %2561 = vdwg.mxu0
    %v2562 = vld [vmem:[%s295] sm:$0xff]
    %v2563 = vld [vmem:[%s291 + $0x8] sm:$0xff]
    %v2564 = vadd.f32 %v2562, %v2540
    %v2565 = vadd.f32 %v2563, %v2560
    %v2566 = vxor.u32 %v2564, 2147483648
    %v2567 = vxor.u32 %v2565, 2147483648
    %v2568 = vmul.f32 %v2566, 1.442695
    %v2569 = vpow.pop %v2568
    %v2570 = vmul.f32 %v2567, 1.442695
    %v2571 = vpow.pop %v2570
    %v2572 = vadd.f32 %v2569, 1.0
    %v2573 = vadd.f32 %v2571, 1.0
    %v2574 = vrcp.pop %v2572
    %v2575 = vmul.f32 %v2572, %v2574
    %v2576 = vsub.f32 1.0, %v2575
    %v2577 = vmul.f32 %v2574, %v2576
    %v2578 = vadd.f32 %v2574, %v2577
    %vm2579 = vweird.f32 %v2572
    %vm2580 = vweird.f32 %v2574
    %vm2581 = vmor %vm2579, %vm2580
    %v2582 = vsel %vm2581, %v2574, %v2578
    %v2583 = vand.u32 2147483647, %v2572
    %vm2584 = vcmp.eq.f32.partialorder %v2583, 8.507059e+37
    %v2585 = vand.u32 %v2572, 2147483648
    %v2586 = vor.u32 1.1754944e-38, %v2585
    %v2587 = vsel %vm2584, %v2586, %v2582
    %v2588 = vmul.f32 1.0, %v2587
    %v2589 = vrcp.pop %v2573
    %v2590 = vmul.f32 %v2573, %v2589
    %v2591 = vsub.f32 1.0, %v2590
    %v2592 = vmul.f32 %v2589, %v2591
    %v2593 = vadd.f32 %v2589, %v2592
    %vm2594 = vweird.f32 %v2573
    %vm2595 = vweird.f32 %v2589
    %vm2596 = vmor %vm2594, %vm2595
    %v2597 = vsel %vm2596, %v2589, %v2593
    %v2598 = vand.u32 2147483647, %v2573
    %vm2599 = vcmp.eq.f32.partialorder %v2598, 8.507059e+37
    %v2600 = vand.u32 %v2573, 2147483648
    %v2601 = vor.u32 1.1754944e-38, %v2600
    %v2602 = vsel %vm2599, %v2601, %v2597
    %v2603 = vmul.f32 1.0, %v2602
    %v2604 = vtanh.pop %v2564
    %v2605 = vtanh.pop %v2565
    %v2606 = vmul.f32 %v2588, %v2481
    %2608 = vrot.lane.b32.xlu0 %v2604, 64
    %v2609 = vpop.permute.xlu0 %2608
    %v2611 = vmul.f32 %v2588, %v2609
    %2613 = vrot.lane.b32.xlu0 %v2611, 32
    %v2614 = vpop.permute.xlu0 %2613
    %v2616 = vadd.f32 %v2606, %v2614
    %v2617 = vtanh.pop %v2616
    %2619 = vrot.lane.b32.xlu0 %v2617, 64
    %v2620 = vpop.permute.xlu0 %2619
    %v2622 = vmul.f32 %v2588, %v2620
    %v2623 = vmul.f32 %v2603, %v2498
    %2625 = vrot.lane.b32.xlu0 %v2605, 64
    %v2626 = vpop.permute.xlu0 %2625
    %v2628 = vmul.f32 %v2603, %v2626
    %2630 = vrot.lane.b32.xlu0 %v2628, 32
    %v2631 = vpop.permute.xlu0 %2630
    %v2633 = vadd.f32 %v2623, %v2631
    %v2634 = vtanh.pop %v2633
    %2636 = vrot.lane.b32.xlu0 %v2634, 64
    %v2637 = vpop.permute.xlu0 %2636
    %v2639 = vmul.f32 %v2603, %v2637
    %2641 = vrot.lane.b32.xlu0 %v2622, 32
    %v2642 = vpop.permute.xlu0 %2641
    %2644 = vst.msk [vmem:[%s1354] sm:$0xff] %vm377, %v2642
    %2646 = vrot.lane.b32.xlu0 %v2639, 32
    %v2647 = vpop.permute.xlu0 %2646
    %2649 = vst.msk [vmem:[#allocation4] sm:$0xff] %vm377, %v2647
    %v2650 = vld [vmem:[#allocation3] sm:$0xff]
    %v2651 = vld [vmem:[#allocation3 + $0x8] sm:$0xff]
    %v2652 = vld [vmem:[#allocation3 + $0x10] sm:$0xff]
    %v2653 = vld [vmem:[#allocation3 + $0x18] sm:$0xff]
    %v2654 = vld [vmem:[#allocation3 + $0x20] sm:$0xff]
    %v2655 = vld [vmem:[#allocation3 + $0x28] sm:$0xff]
    %v2656 = vld [vmem:[#allocation3 + $0x30] sm:$0xff]
    %v2657 = vld [vmem:[#allocation3 + $0x38] sm:$0xff]
    %v2658 = vld [vmem:[#allocation4] sm:$0xff]
    %v2659 = vld [vmem:[#allocation4 + $0x8] sm:$0xff]
    %v2660 = vld [vmem:[#allocation4 + $0x10] sm:$0xff]
    %v2661 = vld [vmem:[#allocation4 + $0x18] sm:$0xff]
    %v2662 = vld [vmem:[#allocation4 + $0x20] sm:$0xff]
    %v2663 = vld [vmem:[#allocation4 + $0x28] sm:$0xff]
    %v2664 = vld [vmem:[#allocation4 + $0x30] sm:$0xff]
    %v2665 = vld [vmem:[#allocation4 + $0x38] sm:$0xff]
    %2674 = vrot.lane.b32.xlu0 %v2658, 32
    %v2675 = vpop.permute.xlu0 %2674
    %2676 = vrot.lane.b32.xlu0 %v2659, 32
    %v2677 = vpop.permute.xlu0 %2676
    %2678 = vrot.lane.b32.xlu0 %v2660, 32
    %v2679 = vpop.permute.xlu0 %2678
    %2680 = vrot.lane.b32.xlu0 %v2661, 32
    %v2681 = vpop.permute.xlu0 %2680
    %2682 = vrot.lane.b32.xlu0 %v2662, 32
    %v2683 = vpop.permute.xlu0 %2682
    %2684 = vrot.lane.b32.xlu0 %v2663, 32
    %v2685 = vpop.permute.xlu0 %2684
    %2686 = vrot.lane.b32.xlu0 %v2664, 32
    %v2687 = vpop.permute.xlu0 %2686
    %2688 = vrot.lane.b32.xlu0 %v2665, 32
    %v2689 = vpop.permute.xlu0 %2688
    %v2698 = vsel %vm377, %v2650, %v2675
    %v2699 = vsel %vm377, %v2651, %v2677
    %v2700 = vsel %vm377, %v2652, %v2679
    %v2701 = vsel %vm377, %v2653, %v2681
    %v2702 = vsel %vm377, %v2654, %v2683
    %v2703 = vsel %vm377, %v2655, %v2685
    %v2704 = vsel %vm377, %v2656, %v2687
    %v2705 = vsel %vm377, %v2657, %v2689
    %v2706 = vld [vmem:[%s7] sm:$0xff]
    %v2707 = vld [vmem:[%s7 + $0x8] sm:$0xff]
    %v2708 = vld [vmem:[%s8] sm:$0xff]
    %v2709 = vld [vmem:[%s8 + $0x8] sm:$0xff]
    %2711 = vset.pattern.permute.xlu0 0
    %2712 = vperm.xlu0 %2711, %v2708
    %v2713 = vpop.permute.xlu0 %2712
    %2716 = vset.pattern.permute.xlu0 0
    %2717 = vperm.xlu0 %2716, %v2709
    %v2718 = vpop.permute.xlu0 %2717
    %v2721 = vsel %vm245, %v2706, 0
    %v2724 = vsel %vm245, %v2707, 0
    %v2727 = vsel %vm245, %v2698, 0
    %v2730 = vsel %vm245, %v2699, 0
    %v2733 = vsel %vm245, %v2700, 0
    %v2736 = vsel %vm245, %v2701, 0
    %v2739 = vsel %vm245, %v2702, 0
    %v2742 = vsel %vm245, %v2703, 0
    %v2745 = vsel %vm245, %v2704, 0
    %v2748 = vsel %vm245, %v2705, 0
    %2750 = vmatpush.xpose.msra.mxu0 0.0
    %2751 = vmatpush.xpose.msra.mxu0 0.0
    %2752 = vmatpush.xpose.msra.mxu0 0.0
    %2753 = vmatpush.xpose.msra.mxu0 0.0
    %2754 = vmatpush.xpose.msra.mxu0 0.0
    %2755 = vmatpush.xpose.msra.mxu0 0.0
    %2756 = vmatpush.xpose.msra.mxu0 0.0
    %2757 = vmatpush.xpose.msra.mxu0 0.0
    %2758 = vmatpush.xpose.msra.mxu0 %v2748
    %2759 = vmatpush.xpose.msra.mxu0 %v2745
    %2760 = vmatpush.xpose.msra.mxu0 %v2742
    %2761 = vmatpush.xpose.msra.mxu0 %v2739
    %2762 = vmatpush.xpose.msra.mxu0 %v2736
    %2763 = vmatpush.xpose.msra.mxu0 %v2733
    %2764 = vmatpush.xpose.msra.mxu0 %v2730
    %2765 = vmatpush.xpose.msra.mxu0 %v2727
    %2766 = vmatmul.f32.gmra.mxu0 %v2721
    %v2767 = vpop.f32.mrf.mxu0
    %v2768 = vadd.f32 %v2713, %v2767
    %2769 = vmatmul.f32.gmra.mxu0 %v2724
    %v2770 = vpop.f32.mrf.mxu0
    %v2771 = vadd.f32 %v2718, %v2770
    %2772 = vdwg.mxu0
    %vm2773 = vcmp.gt.f32.partialorder %v2768, 0.0
    %vm2774 = vcmp.gt.f32.partialorder %v2771, 0.0
    %v2775 = vmul.f32 %v2768, 0.01
    %v2776 = vmul.f32 %v2771, 0.01
    %v2777 = vsel %vm2773, %v2768, %v2775
    %v2778 = vsel %vm2774, %v2771, %v2776
    %v2779 = vld [vmem:[%s9] sm:$0x1]
    %v2780 = vld [vmem:[#allocation5] sm:$0x1]
    %2782 = vset.pattern.permute.xlu0 0
    %2783 = vperm.xlu0 %2782, %v2780
    %v2784 = vpop.permute.xlu0 %2783
    %v2786 = vperm.slane %v2784, 0
    %v2788 = vsel %vm106, %v2779, 0
    %2790 = vmatpush.msra.mxu0 0.0
    %2791 = vmatpush.msra.mxu0 0.0
    %2792 = vmatpush.msra.mxu0 0.0
    %2793 = vmatpush.msra.mxu0 0.0
    %2794 = vmatpush.msra.mxu0 0.0
    %2795 = vmatpush.msra.mxu0 0.0
    %2796 = vmatpush.msra.mxu0 0.0
    %2797 = vmatpush.msra.mxu0 0.0
    %2798 = vmatpush.msra.mxu0 0.0
    %2799 = vmatpush.msra.mxu0 0.0
    %2800 = vmatpush.msra.mxu0 0.0
    %2801 = vmatpush.msra.mxu0 0.0
    %2802 = vmatpush.msra.mxu0 0.0
    %2803 = vmatpush.msra.mxu0 0.0
    %2804 = vmatpush.msra.mxu0 %v2778
    %2805 = vmatpush.msra.mxu0 %v2777
    %2806 = vmatmul.f32.gmra.mxu0 %v2788
    %v2807 = vpop.f32.mrf.mxu0
    %v2808 = vadd.f32 %v2786, %v2807
    %2809 = vdwg.mxu0
    %v2810 = vxor.u32 %v2808, 2147483648
    %v2811 = vmul.f32 %v2810, 1.442695
    %v2812 = vpow.pop %v2811
    %v2813 = vadd.f32 %v2812, 1.0
    %v2814 = vrcp.pop %v2813
    %v2815 = vmul.f32 %v2813, %v2814
    %v2816 = vsub.f32 1.0, %v2815
    %v2817 = vmul.f32 %v2814, %v2816
    %v2818 = vadd.f32 %v2814, %v2817
    %vm2819 = vweird.f32 %v2813
    %vm2820 = vweird.f32 %v2814
    %vm2821 = vmor %vm2819, %vm2820
    %v2822 = vsel %vm2821, %v2814, %v2818
    %v2823 = vand.u32 2147483647, %v2813
    %vm2824 = vcmp.eq.f32.partialorder %v2823, 8.507059e+37
    %v2825 = vand.u32 %v2813, 2147483648
    %v2826 = vor.u32 1.1754944e-38, %v2825
    %v2827 = vsel %vm2824, %v2826, %v2822
    %v2828 = vmul.f32 1.0, %v2827
    %vm2829 = vcmask 516096
    %2830 = vst.msk [vmem:[#allocation12] sm:$0x1] %vm2829, %v2828
    // Predicated region
    $region58: #{tpu_custom_call.1} parent=1 // pred_check
      _
    $region59: #{tpu_custom_call.1} parent=1 // pred_check_branch
      %2832 = sbr.rel (0) target = $region61
    $region60: #{tpu_custom_call.1} parent=1 // pred_region
      %2834 = vsyncadd [#allocation8], 0
      %s2836 = sshll.u32 [#allocation12], 4
      %s2837 = int_to_ptr.vmem [resolvable:$true] %s2836
      %s2838 = sshll.u32 %s11, 4
      %s2839 = int_to_ptr.hbm [resolvable:$true] %s2838
      %2841 = dma.vmem_to_hbm [thread:$0]  %s2837, 16, %s2839, [#allocation8]
    $region61: #{tpu_custom_call.1} parent=1 // pred_fallthru
      _
    // Predicated region
    $region62: #{tpu_custom_call.1} parent=1 // pred_check
      _
    $region63: #{tpu_custom_call.1} parent=1 // pred_check_branch
      %2843 = sbr.rel (0) target = $region65
    $region64: #{tpu_custom_call.1} parent=1 // pred_region
      %2845 = dma.done [#allocation8], 16
    $region65: #{tpu_custom_call.1} parent=1 // pred_fallthru
      _
    %2846 = vsyncpa [#allocation7], 1
    %2847 = vsyncpa [#allocation10], 1
    %2848 = vsyncpa [#allocation8], 1

</llo_original>
